<compile_context>
chip_gen: v7x
topology: tpu7x:2x2x1
jax: 0.10.0
libtpu: 0.0.40
codegen_flags: <defaults>
</compile_context>

<pallas_src>
import jax
import jax.numpy as jnp
from jax import lax
from jax.experimental import pallas as pl
from jax.experimental.pallas import tpu as pltpu

# Problem sizes (SingleTransformer(input_size=16))
D = 16           # d_model
NHEAD = 4
HD = D // NHEAD  # head dim
H = 2 * D        # LSTM hidden size per direction (bidirectional -> 2H features)
T = 8            # sequence length
B = 2            # batch
EPS = 1e-5


def _layer_norm(x, w, b):
    mu = jnp.mean(x, axis=-1, keepdims=True)
    xc = x - mu
    var = jnp.mean(xc * xc, axis=-1, keepdims=True)
    return xc * lax.rsqrt(var + EPS) * w + b


def transformer_kernel(
    x_ref,
    in_wT_ref, in_b_ref, kmask_ref, ones_bd_ref,
    out_wT_ref, out_b_ref,
    ln1_w_ref, ln1_b_ref,
    wih_ref, whh_ref, b_ref,
    lin2_wT_ref, lin2_b_ref,
    ln2_w_ref, ln2_b_ref,
    o_ref,
    hs_ref,
):
    xf = x_ref[...]                                           # (B*T, D)

    # -------- MultiheadAttention: heads packed along the key axis --------
    qkv = jnp.dot(xf, in_wT_ref[...],
                  preferred_element_type=jnp.float32) + in_b_ref[...]   # (B*T, 3D)
    q = qkv[:, 0:D].reshape(B, T, D)
    k = qkv[:, D:2 * D].reshape(B, T, D)
    v = qkv[:, 2 * D:3 * D].reshape(B, T, D)

    kmask = kmask_ref[...]                                    # (NHEAD*T, D) head block mask
    k_big = jnp.concatenate([k] * NHEAD, axis=1) * kmask      # (B, NHEAD*T, D)
    v_big = jnp.concatenate([v] * NHEAD, axis=1) * kmask

    # s[b, q, h*T + j] = q_h[b,q,:] . k_h[b,j,:]   (q pre-scaled by 1/sqrt(HD) on host)
    s = jnp.einsum('bqd,bkd->bqk', q, k_big,
                   preferred_element_type=jnp.float32)        # (B, T, NHEAD*T)
    s2 = s.reshape(B * T, NHEAD * T)
    # a per-row (global) max keeps exp() in range and cancels inside each head's softmax
    s2 = s2 - jnp.max(s2, axis=-1, keepdims=True)
    e = jnp.exp(s2)
    denom = jnp.dot(e, ones_bd_ref[...],
                    preferred_element_type=jnp.float32)       # per-head sums, lane-broadcast
    p = (e * pl.reciprocal(denom, approx=True)).reshape(B, T, NHEAD * T)
    o_attn = jnp.einsum('bqk,bkd->bqd', p, v_big,
                        preferred_element_type=jnp.float32)   # (B, T, D) head-concatenated
    attn = jnp.dot(o_attn.reshape(B * T, D), out_wT_ref[...],
                   preferred_element_type=jnp.float32) + out_b_ref[...]

    # residual + LayerNorm1
    src = _layer_norm(xf + attn, ln1_w_ref[...], ln1_b_ref[...])         # (B*T, D)

    # -------- fused bidirectional LSTM ("linear1") --------
    xg = (jnp.dot(src, wih_ref[...], preferred_element_type=jnp.float32)
          + b_ref[...]).reshape(B, T, 8 * H)                  # (B, T, 8H)
    whh = whh_ref[...]                                        # (2H, 8H) block-diagonal

    col = lax.broadcasted_iota(jnp.int32, (1, 8 * H), 1)
    fwd_lanes = (col % (2 * H)) < H                           # forward-direction gate columns

    h = jnp.zeros((B, 2 * H), jnp.float32)                    # lanes: [h_fwd | h_rev]
    c = jnp.zeros((B, 2 * H), jnp.float32)
    for s_i in range(T):                                      # static unroll over time
        # forward gates read input at time s_i, reverse gates at time T-1-s_i
        g_in = jnp.where(fwd_lanes, xg[:, s_i, :], xg[:, T - 1 - s_i, :])
        g = g_in + jnp.dot(h, whh, preferred_element_type=jnp.float32)   # (B, 8H)
        sg = jax.nn.sigmoid(g[:, 0:6 * H])                    # [i | f | o], both dirs
        gg = jnp.tanh(g[:, 6 * H:8 * H])                      # [g], both dirs
        c = sg[:, 2 * H:4 * H] * c + sg[:, 0:2 * H] * gg
        h = sg[:, 4 * H:6 * H] * jnp.tanh(c)
        hs_ref[:, s_i, 0:H] = h[:, 0:H]                       # forward hidden -> time s_i
        hs_ref[:, T - 1 - s_i, H:2 * H] = h[:, H:2 * H]       # reverse hidden -> time T-1-s_i

    # -------- ReLU -> Linear2 -> residual -> LayerNorm2 --------
    hcat = hs_ref[...].reshape(B * T, 2 * H)
    ff = (jnp.dot(jnp.maximum(hcat, 0.0), lin2_wT_ref[...],
                  preferred_element_type=jnp.float32) + lin2_b_ref[...])
    out = _layer_norm(src + ff, ln2_w_ref[...], ln2_b_ref[...])
    o_ref[...] = out.astype(o_ref.dtype)


def single_transformer(x, params):
    """x: (B, T, D) float32. params: dict of PyTorch-layout weights."""
    B_, T_, D_ = x.shape
    H_ = 2 * D_
    HD_ = D_ // NHEAD
    scale = 1.0 / (HD_ ** 0.5)

    def permute_gates(w, axis):
        # PyTorch LSTM gate order [i, f, g, o] -> kernel per-direction order [i, f, o, g]
        i, f, g, o = jnp.split(w, 4, axis=axis)
        return jnp.concatenate([i, f, o, g], axis=axis)

    def interleave_dirs(wf, wr, axis):
        # wf/wr have 4 gate blocks (each H_ wide) along `axis`; interleave per gate:
        # [i_f, i_r, f_f, f_r, o_f, o_r, g_f, g_r]
        fs = jnp.split(wf, 4, axis=axis)
        rs = jnp.split(wr, 4, axis=axis)
        return jnp.concatenate([blk for pair in zip(fs, rs) for blk in pair], axis=axis)

    # Fold 1/sqrt(head_dim) into the q rows of the in-projection.
    in_wT = params['in_proj_w'].T
    in_wT = jnp.concatenate([in_wT[:, :D_] * scale, in_wT[:, D_:]], axis=1)
    in_b = jnp.concatenate([params['in_proj_b'][:, :D_] * scale,
                            params['in_proj_b'][:, D_:]], axis=1)

    # Head-packing constants: row h*T+j keeps only head h's lanes; block-diag ones for denom.
    row_head = jnp.arange(NHEAD * T_) // T_
    lane_head = jnp.arange(D_) // HD_
    kmask = (row_head[:, None] == lane_head[None, :]).astype(jnp.float32)     # (NHEAD*T, D)
    ones_bd = (row_head[:, None] == row_head[None, :]).astype(jnp.float32)    # (NHEAD*T, NHEAD*T)

    # Fused bidirectional LSTM weights: gate order [i,f,o,g], direction-interleaved per gate,
    # b_hh folded into b_ih.
    wih_f = permute_gates(params['w_ih_f'], 0).T                              # (D, 4H)
    wih_r = permute_gates(params['w_ih_r'], 0).T
    wih_big = interleave_dirs(wih_f, wih_r, axis=1)                           # (D, 8H)

    whh_f = permute_gates(params['w_hh_f'], 0).T                              # (H, 4H)
    whh_r = permute_gates(params['w_hh_r'], 0).T
    zeros_h = jnp.zeros_like(whh_f)
    whh_big = interleave_dirs(jnp.concatenate([whh_f, zeros_h], axis=0),
                              jnp.concatenate([zeros_h, whh_r], axis=0),
                              axis=1)                                         # (2H, 8H)

    b_f = permute_gates(params['b_ih_f'] + params['b_hh_f'], 1)
    b_r = permute_gates(params['b_ih_r'] + params['b_hh_r'], 1)
    b_big = interleave_dirs(b_f, b_r, axis=1)                                 # (1, 8H)

    plist = [
        in_wT, in_b, kmask, ones_bd,
        params['out_proj_w'].T, params['out_proj_b'],
        params['ln1_w'], params['ln1_b'],
        wih_big, whh_big, b_big,
        params['lin2_w'].T, params['lin2_b'],
        params['ln2_w'], params['ln2_b'],
    ]

    # Whole-problem, whole-array VMEM kernel: no grid, no pipelining (total resident
    # data ~100 KiB, so per-step pipeline bookkeeping would be pure overhead).
    out = pl.pallas_call(
        transformer_kernel,
        out_shape=jax.ShapeDtypeStruct((B_ * T_, D_), jnp.float32),
        scratch_shapes=[pltpu.VMEM((B_, T_, 2 * H_), jnp.float32)],
    )(x.reshape(B_ * T_, D_), *plist)
    return out.reshape(B_, T_, D_)


# ---------------- pure-JAX reference (same math, for verification) ----------------
def reference(x, p):
    def ln(v, w, b):
        mu = v.mean(-1, keepdims=True)
        var = ((v - mu) ** 2).mean(-1, keepdims=True)
        return (v - mu) / jnp.sqrt(var + EPS) * w + b

    outs = []
    for bi in range(x.shape[0]):
        s = x[bi]
        qkv = s @ p['in_proj_w'].T + p['in_proj_b'][0]
        q = qkv[:, :D] / (HD ** 0.5)
        k = qkv[:, D:2 * D]
        v = qkv[:, 2 * D:]
        heads = []
        for h in range(NHEAD):
            qh, kh, vh = (q[:, h * HD:(h + 1) * HD], k[:, h * HD:(h + 1) * HD],
                          v[:, h * HD:(h + 1) * HD])
            a = jax.nn.softmax(qh @ kh.T, axis=-1)
            heads.append(a @ vh)
        att = jnp.concatenate(heads, -1) @ p['out_proj_w'].T + p['out_proj_b'][0]
        s1 = ln(s + att, p['ln1_w'][0], p['ln1_b'][0])

        def run_lstm(seq, wih, whh, bih, bhh):
            def step(carry, xt):
                hh, cc = carry
                g = xt @ wih.T + bih[0] + hh @ whh.T + bhh[0]
                i = jax.nn.sigmoid(g[:H]); f = jax.nn.sigmoid(g[H:2 * H])
                gg = jnp.tanh(g[2 * H:3 * H]); o = jax.nn.sigmoid(g[3 * H:])
                cc = f * cc + i * gg
                hh = o * jnp.tanh(cc)
                return (hh, cc), hh
            init = (jnp.zeros((H,), jnp.float32), jnp.zeros((H,), jnp.float32))
            _, hs = lax.scan(step, init, seq)
            return hs

        hf = run_lstm(s1, p['w_ih_f'], p['w_hh_f'], p['b_ih_f'], p['b_hh_f'])
        hr = run_lstm(s1[::-1], p['w_ih_r'], p['w_hh_r'], p['b_ih_r'], p['b_hh_r'])[::-1]
        lstm_out = jnp.concatenate([hf, hr], -1)
        ff = jnp.maximum(lstm_out, 0.0) @ p['lin2_w'].T + p['lin2_b'][0]
        outs.append(ln(s1 + ff, p['ln2_w'][0], p['ln2_b'][0]))
    return jnp.stack(outs)


if __name__ == "__main__":
    key = jax.random.PRNGKey(0)
    ks = jax.random.split(key, 20)

    def rnd(k, shape, scale=0.1):
        return jax.random.normal(k, shape, jnp.float32) * scale

    params = {
        # MultiheadAttention(d_model=D, nhead=4)
        'in_proj_w': rnd(ks[0], (3 * D, D)),
        'in_proj_b': rnd(ks[1], (1, 3 * D)),
        'out_proj_w': rnd(ks[2], (D, D)),
        'out_proj_b': rnd(ks[3], (1, D)),
        'ln1_w': jnp.ones((1, D), jnp.float32) + rnd(ks[4], (1, D), 0.05),
        'ln1_b': rnd(ks[5], (1, D)),
        # LSTM(D, 2D, 1, bidirectional=True)
        'w_ih_f': rnd(ks[6], (4 * H, D)),
        'w_hh_f': rnd(ks[7], (4 * H, H)),
        'b_ih_f': rnd(ks[8], (1, 4 * H)),
        'b_hh_f': rnd(ks[9], (1, 4 * H)),
        'w_ih_r': rnd(ks[10], (4 * H, D)),
        'w_hh_r': rnd(ks[11], (4 * H, H)),
        'b_ih_r': rnd(ks[12], (1, 4 * H)),
        'b_hh_r': rnd(ks[13], (1, 4 * H)),
        # Linear(4D, D)   (4D == 2H)
        'lin2_w': rnd(ks[14], (D, 2 * H)),
        'lin2_b': rnd(ks[15], (1, D)),
        'ln2_w': jnp.ones((1, D), jnp.float32) + rnd(ks[16], (1, D), 0.05),
        'ln2_b': rnd(ks[17], (1, D)),
    }

    x = jax.random.normal(ks[18], (B, T, D), jnp.float32)

    out = single_transformer(x, params)
    jax.block_until_ready(out)

    ref = reference(x, params)
    assert out.shape == (B, T, D)
    assert bool(jnp.all(jnp.isfinite(out)))
    err = float(jnp.max(jnp.abs(out - ref)))
    assert err < 2e-2, f"max abs err {err}"
    print("KERNEL_OK")
</pallas_src>

<mosaic_0001>
module attributes {stable_mosaic.version = 11 : i64} {
  func.func @transformer_kernel(%arg0: memref<16x16xf32, #tpu.memory_space<vmem>>, %arg1: memref<16x48xf32, #tpu.memory_space<vmem>>, %arg2: memref<1x48xf32, #tpu.memory_space<vmem>>, %arg3: memref<32x16xf32, #tpu.memory_space<vmem>>, %arg4: memref<32x32xf32, #tpu.memory_space<vmem>>, %arg5: memref<16x16xf32, #tpu.memory_space<vmem>>, %arg6: memref<1x16xf32, #tpu.memory_space<vmem>>, %arg7: memref<1x16xf32, #tpu.memory_space<vmem>>, %arg8: memref<1x16xf32, #tpu.memory_space<vmem>>, %arg9: memref<16x256xf32, #tpu.memory_space<vmem>>, %arg10: memref<64x256xf32, #tpu.memory_space<vmem>>, %arg11: memref<1x256xf32, #tpu.memory_space<vmem>>, %arg12: memref<64x16xf32, #tpu.memory_space<vmem>>, %arg13: memref<1x16xf32, #tpu.memory_space<vmem>>, %arg14: memref<1x16xf32, #tpu.memory_space<vmem>>, %arg15: memref<1x16xf32, #tpu.memory_space<vmem>>, %arg16: memref<16x16xf32, #tpu.memory_space<vmem>>, %arg17: memref<2x8x64xf32, #tpu.memory_space<vmem>>) attributes {dimension_semantics = [], scalar_prefetch = 0 : i64, scratch_operands = 1 : i64, tpu.core_type = #tpu.core_type<tc>} {
    %c0 = arith.constant 0 : index
    %c0_0 = arith.constant 0 : index
    %0 = vector.load %arg0[%c0, %c0_0] : memref<16x16xf32, #tpu.memory_space<vmem>>, vector<16x16xf32>
    %c0_1 = arith.constant 0 : index
    %c0_2 = arith.constant 0 : index
    %1 = vector.load %arg1[%c0_1, %c0_2] : memref<16x48xf32, #tpu.memory_space<vmem>>, vector<16x48xf32>
    %cst = arith.constant dense<0.000000e+00> : vector<16x48xf32>
    %2 = tpu.matmul %0, %1, %cst {dimension_numbers = #tpu.dot_dimension_numbers<[1], [0], [0], [1], [0, 0, 1, 1], [], []>} : vector<16x16xf32>, vector<16x48xf32>, vector<16x48xf32> -> vector<16x48xf32>
    %c0_3 = arith.constant 0 : index
    %c0_4 = arith.constant 0 : index
    %3 = vector.load %arg2[%c0_3, %c0_4] : memref<1x48xf32, #tpu.memory_space<vmem>>, vector<1x48xf32>
    %4 = vector.broadcast %3 : vector<1x48xf32> to vector<16x48xf32>
    %5 = arith.addf %2, %4 : vector<16x48xf32>
    %6 = vector.extract_strided_slice %5 {offsets = [0, 0], sizes = [16, 16], strides = [1, 1]} : vector<16x48xf32> to vector<16x16xf32>
    %7 = vector.shape_cast %6 : vector<16x16xf32> to vector<2x8x16xf32>
    %8 = vector.extract_strided_slice %5 {offsets = [0, 16], sizes = [16, 16], strides = [1, 1]} : vector<16x48xf32> to vector<16x16xf32>
    %9 = vector.shape_cast %8 : vector<16x16xf32> to vector<2x8x16xf32>
    %10 = vector.extract_strided_slice %5 {offsets = [0, 32], sizes = [16, 16], strides = [1, 1]} : vector<16x48xf32> to vector<16x16xf32>
    %11 = vector.shape_cast %10 : vector<16x16xf32> to vector<2x8x16xf32>
    %c0_5 = arith.constant 0 : index
    %c0_6 = arith.constant 0 : index
    %12 = vector.load %arg3[%c0_5, %c0_6] : memref<32x16xf32, #tpu.memory_space<vmem>>, vector<32x16xf32>
    %13 = tpu.concatenate %9, %9, %9, %9 in 1 : vector<2x8x16xf32>, vector<2x8x16xf32>, vector<2x8x16xf32>, vector<2x8x16xf32> -> vector<2x32x16xf32>
    %14 = vector.shape_cast %12 : vector<32x16xf32> to vector<1x32x16xf32>
    %15 = vector.broadcast %14 : vector<1x32x16xf32> to vector<2x32x16xf32>
    %16 = arith.mulf %13, %15 : vector<2x32x16xf32>
    %17 = tpu.concatenate %11, %11, %11, %11 in 1 : vector<2x8x16xf32>, vector<2x8x16xf32>, vector<2x8x16xf32>, vector<2x8x16xf32> -> vector<2x32x16xf32>
    %18 = vector.shape_cast %12 : vector<32x16xf32> to vector<1x32x16xf32>
    %19 = vector.broadcast %18 : vector<1x32x16xf32> to vector<2x32x16xf32>
    %20 = arith.mulf %17, %19 : vector<2x32x16xf32>
    "tpu.trace_start"() <{level = 10 : i32, message = "bqd,bkd->bqk"}> : () -> ()
    %cst_7 = arith.constant dense<0.000000e+00> : vector<2x8x32xf32>
    %21 = tpu.matmul %7, %16, %cst_7 {dimension_numbers = #tpu.dot_dimension_numbers<[2], [2], [1], [1], [0, 0, 0, 1, 1, 1], [0], [0]>} : vector<2x8x16xf32>, vector<2x32x16xf32>, vector<2x8x32xf32> -> vector<2x8x32xf32>
    "tpu.trace_stop"() : () -> ()
    %22 = vector.shape_cast %21 : vector<2x8x32xf32> to vector<16x32xf32>
    %cst_8 = arith.constant dense<0xFF800000> : vector<16xf32>
    %23 = vector.multi_reduction <maximumf>, %22, %cst_8 [1] : vector<16x32xf32> to vector<16xf32>
    %24 = vector.shape_cast %23 : vector<16xf32> to vector<16x1xf32>
    %25 = vector.broadcast %24 : vector<16x1xf32> to vector<16x32xf32>
    %26 = arith.subf %22, %25 : vector<16x32xf32>
    %27 = math.exp %26 : vector<16x32xf32>
    %c0_9 = arith.constant 0 : index
    %c0_10 = arith.constant 0 : index
    %28 = vector.load %arg4[%c0_9, %c0_10] : memref<32x32xf32, #tpu.memory_space<vmem>>, vector<32x32xf32>
    %cst_11 = arith.constant dense<0.000000e+00> : vector<16x32xf32>
    %29 = tpu.matmul %27, %28, %cst_11 {dimension_numbers = #tpu.dot_dimension_numbers<[1], [0], [0], [1], [0, 0, 1, 1], [], []>} : vector<16x32xf32>, vector<32x32xf32>, vector<16x32xf32> -> vector<16x32xf32>
    %30 = tpu.reciprocal %29 {approx = true} : vector<16x32xf32> -> vector<16x32xf32>
    %31 = arith.mulf %27, %30 : vector<16x32xf32>
    %32 = vector.shape_cast %31 : vector<16x32xf32> to vector<2x8x32xf32>
    "tpu.trace_start"() <{level = 10 : i32, message = "bqk,bkd->bqd"}> : () -> ()
    %cst_12 = arith.constant dense<0.000000e+00> : vector<2x8x16xf32>
    %33 = tpu.matmul %32, %20, %cst_12 {dimension_numbers = #tpu.dot_dimension_numbers<[2], [1], [1], [2], [0, 0, 0, 1, 1, 2], [0], [0]>} : vector<2x8x32xf32>, vector<2x32x16xf32>, vector<2x8x16xf32> -> vector<2x8x16xf32>
    "tpu.trace_stop"() : () -> ()
    %34 = vector.shape_cast %33 : vector<2x8x16xf32> to vector<16x16xf32>
    %c0_13 = arith.constant 0 : index
    %c0_14 = arith.constant 0 : index
    %35 = vector.load %arg5[%c0_13, %c0_14] : memref<16x16xf32, #tpu.memory_space<vmem>>, vector<16x16xf32>
    %cst_15 = arith.constant dense<0.000000e+00> : vector<16x16xf32>
    %36 = tpu.matmul %34, %35, %cst_15 {dimension_numbers = #tpu.dot_dimension_numbers<[1], [0], [0], [1], [0, 0, 1, 1], [], []>} : vector<16x16xf32>, vector<16x16xf32>, vector<16x16xf32> -> vector<16x16xf32>
    %c0_16 = arith.constant 0 : index
    %c0_17 = arith.constant 0 : index
    %37 = vector.load %arg6[%c0_16, %c0_17] : memref<1x16xf32, #tpu.memory_space<vmem>>, vector<1x16xf32>
    %38 = vector.broadcast %37 : vector<1x16xf32> to vector<16x16xf32>
    %39 = arith.addf %36, %38 : vector<16x16xf32>
    %40 = arith.addf %0, %39 : vector<16x16xf32>
    %c0_18 = arith.constant 0 : index
    %c0_19 = arith.constant 0 : index
    %41 = vector.load %arg7[%c0_18, %c0_19] : memref<1x16xf32, #tpu.memory_space<vmem>>, vector<1x16xf32>
    %c0_20 = arith.constant 0 : index
    %c0_21 = arith.constant 0 : index
    %42 = vector.load %arg8[%c0_20, %c0_21] : memref<1x16xf32, #tpu.memory_space<vmem>>, vector<1x16xf32>
    %cst_22 = arith.constant dense<0.000000e+00> : vector<16xf32>
    %43 = vector.multi_reduction <add>, %40, %cst_22 [1] : vector<16x16xf32> to vector<16xf32>
    %44 = vector.shape_cast %43 : vector<16xf32> to vector<16x1xf32>
    %cst_23 = arith.constant 1.600000e+01 : f32
    %45 = vector.broadcast %cst_23 : f32 to vector<16x1xf32>
    %46 = arith.divf %44, %45 : vector<16x1xf32>
    %47 = vector.broadcast %46 : vector<16x1xf32> to vector<16x16xf32>
    %48 = arith.subf %40, %47 : vector<16x16xf32>
    %49 = arith.mulf %48, %48 : vector<16x16xf32>
    %cst_24 = arith.constant dense<0.000000e+00> : vector<16xf32>
    %50 = vector.multi_reduction <add>, %49, %cst_24 [1] : vector<16x16xf32> to vector<16xf32>
    %51 = vector.shape_cast %50 : vector<16xf32> to vector<16x1xf32>
    %cst_25 = arith.constant 1.600000e+01 : f32
    %52 = vector.broadcast %cst_25 : f32 to vector<16x1xf32>
    %53 = arith.divf %51, %52 : vector<16x1xf32>
    %cst_26 = arith.constant 9.99999974E-6 : f32
    %54 = vector.broadcast %cst_26 : f32 to vector<16x1xf32>
    %55 = arith.addf %53, %54 : vector<16x1xf32>
    %56 = math.rsqrt %55 : vector<16x1xf32>
    %57 = vector.broadcast %56 : vector<16x1xf32> to vector<16x16xf32>
    %58 = arith.mulf %48, %57 : vector<16x16xf32>
    %59 = vector.broadcast %41 : vector<1x16xf32> to vector<16x16xf32>
    %60 = arith.mulf %58, %59 : vector<16x16xf32>
    %61 = vector.broadcast %42 : vector<1x16xf32> to vector<16x16xf32>
    %62 = arith.addf %60, %61 : vector<16x16xf32>
    %c0_27 = arith.constant 0 : index
    %c0_28 = arith.constant 0 : index
    %63 = vector.load %arg9[%c0_27, %c0_28] : memref<16x256xf32, #tpu.memory_space<vmem>>, vector<16x256xf32>
    %cst_29 = arith.constant dense<0.000000e+00> : vector<16x256xf32>
    %64 = tpu.matmul %62, %63, %cst_29 {dimension_numbers = #tpu.dot_dimension_numbers<[1], [0], [0], [1], [0, 0, 1, 1], [], []>} : vector<16x16xf32>, vector<16x256xf32>, vector<16x256xf32> -> vector<16x256xf32>
    %c0_30 = arith.constant 0 : index
    %c0_31 = arith.constant 0 : index
    %65 = vector.load %arg11[%c0_30, %c0_31] : memref<1x256xf32, #tpu.memory_space<vmem>>, vector<1x256xf32>
    %66 = vector.broadcast %65 : vector<1x256xf32> to vector<16x256xf32>
    %67 = arith.addf %64, %66 : vector<16x256xf32>
    %68 = vector.shape_cast %67 : vector<16x256xf32> to vector<2x8x256xf32>
    %c0_32 = arith.constant 0 : index
    %c0_33 = arith.constant 0 : index
    %69 = vector.load %arg10[%c0_32, %c0_33] : memref<64x256xf32, #tpu.memory_space<vmem>>, vector<64x256xf32>
    %70 = tpu.iota {dimensions = array<i32: 1>} : vector<1x256xi32>
    %c64_i32 = arith.constant 64 : i32
    %c0_i32 = arith.constant 0 : i32
    %71 = arith.cmpi eq, %c64_i32, %c0_i32 : i32
    %c1_i32 = arith.constant 1 : i32
    %72 = arith.select %71, %c1_i32, %c64_i32 : i32
    %73 = vector.broadcast %72 : i32 to vector<1x256xi32>
    %74 = arith.remsi %70, %73 : vector<1x256xi32>
    %c0_i32_34 = arith.constant 0 : i32
    %75 = vector.broadcast %c0_i32_34 : i32 to vector<1x256xi32>
    %76 = arith.cmpi ne, %74, %75 : vector<1x256xi32>
    %c0_i32_35 = arith.constant 0 : i32
    %77 = vector.broadcast %c0_i32_35 : i32 to vector<1x256xi32>
    %78 = arith.cmpi slt, %74, %77 : vector<1x256xi32>
    %c0_i32_36 = arith.constant 0 : i32
    %79 = arith.cmpi slt, %72, %c0_i32_36 : i32
    %80 = vector.broadcast %79 : i1 to vector<1x256xi1>
    %81 = vector.broadcast %80 : vector<1x256xi1> to vector<1x256xi1>
    %82 = arith.xori %78, %81 : vector<1x256xi1>
    %83 = arith.andi %82, %76 : vector<1x256xi1>
    %84 = vector.broadcast %72 : i32 to vector<1x256xi32>
    %85 = arith.addi %74, %84 : vector<1x256xi32>
    %86 = arith.select %83, %85, %74 : vector<1x256xi1>, vector<1x256xi32>
    %c32_i32 = arith.constant 32 : i32
    %87 = vector.broadcast %c32_i32 : i32 to vector<1x256xi32>
    %88 = arith.cmpi slt, %86, %87 : vector<1x256xi32>
    %cst_37 = arith.constant 0.000000e+00 : f32
    %89 = vector.broadcast %cst_37 : f32 to vector<2x64xf32>
    %cst_38 = arith.constant 0.000000e+00 : f32
    %90 = vector.broadcast %cst_38 : f32 to vector<2x64xf32>
    %91 = vector.extract_strided_slice %68 {offsets = [0, 0, 0], sizes = [2, 1, 256], strides = [1, 1, 1]} : vector<2x8x256xf32> to vector<2x1x256xf32>
    %92 = vector.shape_cast %91 : vector<2x1x256xf32> to vector<2x256xf32>
    %93 = vector.extract_strided_slice %68 {offsets = [0, 7, 0], sizes = [2, 1, 256], strides = [1, 1, 1]} : vector<2x8x256xf32> to vector<2x1x256xf32>
    %94 = vector.shape_cast %93 : vector<2x1x256xf32> to vector<2x256xf32>
    %95 = vector.shape_cast %88 : vector<1x256xi1> to vector<1x256xi1>
    %96 = vector.broadcast %95 : vector<1x256xi1> to vector<2x256xi1>
    %97 = arith.select %96, %92, %94 : vector<2x256xi1>, vector<2x256xf32>
    %cst_39 = arith.constant dense<0.000000e+00> : vector<2x256xf32>
    %98 = tpu.matmul %89, %69, %cst_39 {dimension_numbers = #tpu.dot_dimension_numbers<[1], [0], [0], [1], [0, 0, 1, 1], [], []>} : vector<2x64xf32>, vector<64x256xf32>, vector<2x256xf32> -> vector<2x256xf32>
    %99 = arith.addf %97, %98 : vector<2x256xf32>
    %100 = vector.extract_strided_slice %99 {offsets = [0, 0], sizes = [2, 192], strides = [1, 1]} : vector<2x256xf32> to vector<2x192xf32>
    %101 = arith.negf %100 : vector<2x192xf32>
    %102 = math.exp %101 : vector<2x192xf32>
    %cst_40 = arith.constant 1.000000e+00 : f32
    %103 = vector.broadcast %cst_40 : f32 to vector<2x192xf32>
    %104 = arith.addf %103, %102 : vector<2x192xf32>
    %105 = arith.divf %103, %104 : vector<2x192xf32>
    %106 = vector.extract_strided_slice %99 {offsets = [0, 192], sizes = [2, 64], strides = [1, 1]} : vector<2x256xf32> to vector<2x64xf32>
    %107 = math.tanh %106 : vector<2x64xf32>
    %108 = vector.extract_strided_slice %105 {offsets = [0, 64], sizes = [2, 64], strides = [1, 1]} : vector<2x192xf32> to vector<2x64xf32>
    %109 = arith.mulf %108, %90 : vector<2x64xf32>
    %110 = vector.extract_strided_slice %105 {offsets = [0, 0], sizes = [2, 64], strides = [1, 1]} : vector<2x192xf32> to vector<2x64xf32>
    %111 = arith.mulf %110, %107 : vector<2x64xf32>
    %112 = arith.addf %109, %111 : vector<2x64xf32>
    %113 = vector.extract_strided_slice %105 {offsets = [0, 128], sizes = [2, 64], strides = [1, 1]} : vector<2x192xf32> to vector<2x64xf32>
    %114 = math.tanh %112 : vector<2x64xf32>
    %115 = arith.mulf %113, %114 : vector<2x64xf32>
    %116 = vector.extract_strided_slice %115 {offsets = [0, 0], sizes = [2, 32], strides = [1, 1]} : vector<2x64xf32> to vector<2x32xf32>
    %c0_41 = arith.constant 0 : index
    %c0_42 = arith.constant 0 : index
    %c0_43 = arith.constant 0 : index
    %117 = vector.load %arg17[%c0_41, %c0_42, %c0_43] : memref<2x8x64xf32, #tpu.memory_space<vmem>>, vector<2x1x32xf32>
    %118 = vector.shape_cast %117 : vector<2x1x32xf32> to vector<2x32xf32>
    %119 = vector.shape_cast %116 : vector<2x32xf32> to vector<2x1x32xf32>
    tpu.vector_store %arg17[%c0_41, %c0_42, %c0_43], %119 {strides = array<i32>} : memref<2x8x64xf32, #tpu.memory_space<vmem>>, vector<2x1x32xf32>,
    %120 = vector.extract_strided_slice %115 {offsets = [0, 32], sizes = [2, 32], strides = [1, 1]} : vector<2x64xf32> to vector<2x32xf32>
    %c0_44 = arith.constant 0 : index
    %c7 = arith.constant 7 : index
    %c32 = arith.constant 32 : index
    %121 = vector.load %arg17[%c0_44, %c7, %c32] : memref<2x8x64xf32, #tpu.memory_space<vmem>>, vector<2x1x32xf32>
    %122 = vector.shape_cast %121 : vector<2x1x32xf32> to vector<2x32xf32>
    %123 = vector.shape_cast %120 : vector<2x32xf32> to vector<2x1x32xf32>
    tpu.vector_store %arg17[%c0_44, %c7, %c32], %123 {strides = array<i32>} : memref<2x8x64xf32, #tpu.memory_space<vmem>>, vector<2x1x32xf32>,
    %124 = vector.extract_strided_slice %68 {offsets = [0, 1, 0], sizes = [2, 1, 256], strides = [1, 1, 1]} : vector<2x8x256xf32> to vector<2x1x256xf32>
    %125 = vector.shape_cast %124 : vector<2x1x256xf32> to vector<2x256xf32>
    %126 = vector.extract_strided_slice %68 {offsets = [0, 6, 0], sizes = [2, 1, 256], strides = [1, 1, 1]} : vector<2x8x256xf32> to vector<2x1x256xf32>
    %127 = vector.shape_cast %126 : vector<2x1x256xf32> to vector<2x256xf32>
    %128 = vector.shape_cast %88 : vector<1x256xi1> to vector<1x256xi1>
    %129 = vector.broadcast %128 : vector<1x256xi1> to vector<2x256xi1>
    %130 = arith.select %129, %125, %127 : vector<2x256xi1>, vector<2x256xf32>
    %cst_45 = arith.constant dense<0.000000e+00> : vector<2x256xf32>
    %131 = tpu.matmul %115, %69, %cst_45 {dimension_numbers = #tpu.dot_dimension_numbers<[1], [0], [0], [1], [0, 0, 1, 1], [], []>} : vector<2x64xf32>, vector<64x256xf32>, vector<2x256xf32> -> vector<2x256xf32>
    %132 = arith.addf %130, %131 : vector<2x256xf32>
    %133 = vector.extract_strided_slice %132 {offsets = [0, 0], sizes = [2, 192], strides = [1, 1]} : vector<2x256xf32> to vector<2x192xf32>
    %134 = arith.negf %133 : vector<2x192xf32>
    %135 = math.exp %134 : vector<2x192xf32>
    %cst_46 = arith.constant 1.000000e+00 : f32
    %136 = vector.broadcast %cst_46 : f32 to vector<2x192xf32>
    %137 = arith.addf %136, %135 : vector<2x192xf32>
    %138 = arith.divf %136, %137 : vector<2x192xf32>
    %139 = vector.extract_strided_slice %132 {offsets = [0, 192], sizes = [2, 64], strides = [1, 1]} : vector<2x256xf32> to vector<2x64xf32>
    %140 = math.tanh %139 : vector<2x64xf32>
    %141 = vector.extract_strided_slice %138 {offsets = [0, 64], sizes = [2, 64], strides = [1, 1]} : vector<2x192xf32> to vector<2x64xf32>
    %142 = arith.mulf %141, %112 : vector<2x64xf32>
    %143 = vector.extract_strided_slice %138 {offsets = [0, 0], sizes = [2, 64], strides = [1, 1]} : vector<2x192xf32> to vector<2x64xf32>
    %144 = arith.mulf %143, %140 : vector<2x64xf32>
    %145 = arith.addf %142, %144 : vector<2x64xf32>
    %146 = vector.extract_strided_slice %138 {offsets = [0, 128], sizes = [2, 64], strides = [1, 1]} : vector<2x192xf32> to vector<2x64xf32>
    %147 = math.tanh %145 : vector<2x64xf32>
    %148 = arith.mulf %146, %147 : vector<2x64xf32>
    %149 = vector.extract_strided_slice %148 {offsets = [0, 0], sizes = [2, 32], strides = [1, 1]} : vector<2x64xf32> to vector<2x32xf32>
    %c0_47 = arith.constant 0 : index
    %c1 = arith.constant 1 : index
    %c0_48 = arith.constant 0 : index
    %150 = vector.load %arg17[%c0_47, %c1, %c0_48] : memref<2x8x64xf32, #tpu.memory_space<vmem>>, vector<2x1x32xf32>
    %151 = vector.shape_cast %150 : vector<2x1x32xf32> to vector<2x32xf32>
    %152 = vector.shape_cast %149 : vector<2x32xf32> to vector<2x1x32xf32>
    tpu.vector_store %arg17[%c0_47, %c1, %c0_48], %152 {strides = array<i32>} : memref<2x8x64xf32, #tpu.memory_space<vmem>>, vector<2x1x32xf32>,
    %153 = vector.extract_strided_slice %148 {offsets = [0, 32], sizes = [2, 32], strides = [1, 1]} : vector<2x64xf32> to vector<2x32xf32>
    %c0_49 = arith.constant 0 : index
    %c6 = arith.constant 6 : index
    %c32_50 = arith.constant 32 : index
    %154 = vector.load %arg17[%c0_49, %c6, %c32_50] : memref<2x8x64xf32, #tpu.memory_space<vmem>>, vector<2x1x32xf32>
    %155 = vector.shape_cast %154 : vector<2x1x32xf32> to vector<2x32xf32>
    %156 = vector.shape_cast %153 : vector<2x32xf32> to vector<2x1x32xf32>
    tpu.vector_store %arg17[%c0_49, %c6, %c32_50], %156 {strides = array<i32>} : memref<2x8x64xf32, #tpu.memory_space<vmem>>, vector<2x1x32xf32>,
    %157 = vector.extract_strided_slice %68 {offsets = [0, 2, 0], sizes = [2, 1, 256], strides = [1, 1, 1]} : vector<2x8x256xf32> to vector<2x1x256xf32>
    %158 = vector.shape_cast %157 : vector<2x1x256xf32> to vector<2x256xf32>
    %159 = vector.extract_strided_slice %68 {offsets = [0, 5, 0], sizes = [2, 1, 256], strides = [1, 1, 1]} : vector<2x8x256xf32> to vector<2x1x256xf32>
    %160 = vector.shape_cast %159 : vector<2x1x256xf32> to vector<2x256xf32>
    %161 = vector.shape_cast %88 : vector<1x256xi1> to vector<1x256xi1>
    %162 = vector.broadcast %161 : vector<1x256xi1> to vector<2x256xi1>
    %163 = arith.select %162, %158, %160 : vector<2x256xi1>, vector<2x256xf32>
    %cst_51 = arith.constant dense<0.000000e+00> : vector<2x256xf32>
    %164 = tpu.matmul %148, %69, %cst_51 {dimension_numbers = #tpu.dot_dimension_numbers<[1], [0], [0], [1], [0, 0, 1, 1], [], []>} : vector<2x64xf32>, vector<64x256xf32>, vector<2x256xf32> -> vector<2x256xf32>
    %165 = arith.addf %163, %164 : vector<2x256xf32>
    %166 = vector.extract_strided_slice %165 {offsets = [0, 0], sizes = [2, 192], strides = [1, 1]} : vector<2x256xf32> to vector<2x192xf32>
    %167 = arith.negf %166 : vector<2x192xf32>
    %168 = math.exp %167 : vector<2x192xf32>
    %cst_52 = arith.constant 1.000000e+00 : f32
    %169 = vector.broadcast %cst_52 : f32 to vector<2x192xf32>
    %170 = arith.addf %169, %168 : vector<2x192xf32>
    %171 = arith.divf %169, %170 : vector<2x192xf32>
    %172 = vector.extract_strided_slice %165 {offsets = [0, 192], sizes = [2, 64], strides = [1, 1]} : vector<2x256xf32> to vector<2x64xf32>
    %173 = math.tanh %172 : vector<2x64xf32>
    %174 = vector.extract_strided_slice %171 {offsets = [0, 64], sizes = [2, 64], strides = [1, 1]} : vector<2x192xf32> to vector<2x64xf32>
    %175 = arith.mulf %174, %145 : vector<2x64xf32>
    %176 = vector.extract_strided_slice %171 {offsets = [0, 0], sizes = [2, 64], strides = [1, 1]} : vector<2x192xf32> to vector<2x64xf32>
    %177 = arith.mulf %176, %173 : vector<2x64xf32>
    %178 = arith.addf %175, %177 : vector<2x64xf32>
    %179 = vector.extract_strided_slice %171 {offsets = [0, 128], sizes = [2, 64], strides = [1, 1]} : vector<2x192xf32> to vector<2x64xf32>
    %180 = math.tanh %178 : vector<2x64xf32>
    %181 = arith.mulf %179, %180 : vector<2x64xf32>
    %182 = vector.extract_strided_slice %181 {offsets = [0, 0], sizes = [2, 32], strides = [1, 1]} : vector<2x64xf32> to vector<2x32xf32>
    %c0_53 = arith.constant 0 : index
    %c2 = arith.constant 2 : index
    %c0_54 = arith.constant 0 : index
    %183 = vector.load %arg17[%c0_53, %c2, %c0_54] : memref<2x8x64xf32, #tpu.memory_space<vmem>>, vector<2x1x32xf32>
    %184 = vector.shape_cast %183 : vector<2x1x32xf32> to vector<2x32xf32>
    %185 = vector.shape_cast %182 : vector<2x32xf32> to vector<2x1x32xf32>
    tpu.vector_store %arg17[%c0_53, %c2, %c0_54], %185 {strides = array<i32>} : memref<2x8x64xf32, #tpu.memory_space<vmem>>, vector<2x1x32xf32>,
    %186 = vector.extract_strided_slice %181 {offsets = [0, 32], sizes = [2, 32], strides = [1, 1]} : vector<2x64xf32> to vector<2x32xf32>
    %c0_55 = arith.constant 0 : index
    %c5 = arith.constant 5 : index
    %c32_56 = arith.constant 32 : index
    %187 = vector.load %arg17[%c0_55, %c5, %c32_56] : memref<2x8x64xf32, #tpu.memory_space<vmem>>, vector<2x1x32xf32>
    %188 = vector.shape_cast %187 : vector<2x1x32xf32> to vector<2x32xf32>
    %189 = vector.shape_cast %186 : vector<2x32xf32> to vector<2x1x32xf32>
    tpu.vector_store %arg17[%c0_55, %c5, %c32_56], %189 {strides = array<i32>} : memref<2x8x64xf32, #tpu.memory_space<vmem>>, vector<2x1x32xf32>,
    %190 = vector.extract_strided_slice %68 {offsets = [0, 3, 0], sizes = [2, 1, 256], strides = [1, 1, 1]} : vector<2x8x256xf32> to vector<2x1x256xf32>
    %191 = vector.shape_cast %190 : vector<2x1x256xf32> to vector<2x256xf32>
    %192 = vector.extract_strided_slice %68 {offsets = [0, 4, 0], sizes = [2, 1, 256], strides = [1, 1, 1]} : vector<2x8x256xf32> to vector<2x1x256xf32>
    %193 = vector.shape_cast %192 : vector<2x1x256xf32> to vector<2x256xf32>
    %194 = vector.shape_cast %88 : vector<1x256xi1> to vector<1x256xi1>
    %195 = vector.broadcast %194 : vector<1x256xi1> to vector<2x256xi1>
    %196 = arith.select %195, %191, %193 : vector<2x256xi1>, vector<2x256xf32>
    %cst_57 = arith.constant dense<0.000000e+00> : vector<2x256xf32>
    %197 = tpu.matmul %181, %69, %cst_57 {dimension_numbers = #tpu.dot_dimension_numbers<[1], [0], [0], [1], [0, 0, 1, 1], [], []>} : vector<2x64xf32>, vector<64x256xf32>, vector<2x256xf32> -> vector<2x256xf32>
    %198 = arith.addf %196, %197 : vector<2x256xf32>
    %199 = vector.extract_strided_slice %198 {offsets = [0, 0], sizes = [2, 192], strides = [1, 1]} : vector<2x256xf32> to vector<2x192xf32>
    %200 = arith.negf %199 : vector<2x192xf32>
    %201 = math.exp %200 : vector<2x192xf32>
    %cst_58 = arith.constant 1.000000e+00 : f32
    %202 = vector.broadcast %cst_58 : f32 to vector<2x192xf32>
    %203 = arith.addf %202, %201 : vector<2x192xf32>
    %204 = arith.divf %202, %203 : vector<2x192xf32>
    %205 = vector.extract_strided_slice %198 {offsets = [0, 192], sizes = [2, 64], strides = [1, 1]} : vector<2x256xf32> to vector<2x64xf32>
    %206 = math.tanh %205 : vector<2x64xf32>
    %207 = vector.extract_strided_slice %204 {offsets = [0, 64], sizes = [2, 64], strides = [1, 1]} : vector<2x192xf32> to vector<2x64xf32>
    %208 = arith.mulf %207, %178 : vector<2x64xf32>
    %209 = vector.extract_strided_slice %204 {offsets = [0, 0], sizes = [2, 64], strides = [1, 1]} : vector<2x192xf32> to vector<2x64xf32>
    %210 = arith.mulf %209, %206 : vector<2x64xf32>
    %211 = arith.addf %208, %210 : vector<2x64xf32>
    %212 = vector.extract_strided_slice %204 {offsets = [0, 128], sizes = [2, 64], strides = [1, 1]} : vector<2x192xf32> to vector<2x64xf32>
    %213 = math.tanh %211 : vector<2x64xf32>
    %214 = arith.mulf %212, %213 : vector<2x64xf32>
    %215 = vector.extract_strided_slice %214 {offsets = [0, 0], sizes = [2, 32], strides = [1, 1]} : vector<2x64xf32> to vector<2x32xf32>
    %c0_59 = arith.constant 0 : index
    %c3 = arith.constant 3 : index
    %c0_60 = arith.constant 0 : index
    %216 = vector.load %arg17[%c0_59, %c3, %c0_60] : memref<2x8x64xf32, #tpu.memory_space<vmem>>, vector<2x1x32xf32>
    %217 = vector.shape_cast %216 : vector<2x1x32xf32> to vector<2x32xf32>
    %218 = vector.shape_cast %215 : vector<2x32xf32> to vector<2x1x32xf32>
    tpu.vector_store %arg17[%c0_59, %c3, %c0_60], %218 {strides = array<i32>} : memref<2x8x64xf32, #tpu.memory_space<vmem>>, vector<2x1x32xf32>,
    %219 = vector.extract_strided_slice %214 {offsets = [0, 32], sizes = [2, 32], strides = [1, 1]} : vector<2x64xf32> to vector<2x32xf32>
    %c0_61 = arith.constant 0 : index
    %c4 = arith.constant 4 : index
    %c32_62 = arith.constant 32 : index
    %220 = vector.load %arg17[%c0_61, %c4, %c32_62] : memref<2x8x64xf32, #tpu.memory_space<vmem>>, vector<2x1x32xf32>
    %221 = vector.shape_cast %220 : vector<2x1x32xf32> to vector<2x32xf32>
    %222 = vector.shape_cast %219 : vector<2x32xf32> to vector<2x1x32xf32>
    tpu.vector_store %arg17[%c0_61, %c4, %c32_62], %222 {strides = array<i32>} : memref<2x8x64xf32, #tpu.memory_space<vmem>>, vector<2x1x32xf32>,
    %223 = vector.extract_strided_slice %68 {offsets = [0, 4, 0], sizes = [2, 1, 256], strides = [1, 1, 1]} : vector<2x8x256xf32> to vector<2x1x256xf32>
    %224 = vector.shape_cast %223 : vector<2x1x256xf32> to vector<2x256xf32>
    %225 = vector.extract_strided_slice %68 {offsets = [0, 3, 0], sizes = [2, 1, 256], strides = [1, 1, 1]} : vector<2x8x256xf32> to vector<2x1x256xf32>
    %226 = vector.shape_cast %225 : vector<2x1x256xf32> to vector<2x256xf32>
    %227 = vector.shape_cast %88 : vector<1x256xi1> to vector<1x256xi1>
    %228 = vector.broadcast %227 : vector<1x256xi1> to vector<2x256xi1>
    %229 = arith.select %228, %224, %226 : vector<2x256xi1>, vector<2x256xf32>
    %cst_63 = arith.constant dense<0.000000e+00> : vector<2x256xf32>
    %230 = tpu.matmul %214, %69, %cst_63 {dimension_numbers = #tpu.dot_dimension_numbers<[1], [0], [0], [1], [0, 0, 1, 1], [], []>} : vector<2x64xf32>, vector<64x256xf32>, vector<2x256xf32> -> vector<2x256xf32>
    %231 = arith.addf %229, %230 : vector<2x256xf32>
    %232 = vector.extract_strided_slice %231 {offsets = [0, 0], sizes = [2, 192], strides = [1, 1]} : vector<2x256xf32> to vector<2x192xf32>
    %233 = arith.negf %232 : vector<2x192xf32>
    %234 = math.exp %233 : vector<2x192xf32>
    %cst_64 = arith.constant 1.000000e+00 : f32
    %235 = vector.broadcast %cst_64 : f32 to vector<2x192xf32>
    %236 = arith.addf %235, %234 : vector<2x192xf32>
    %237 = arith.divf %235, %236 : vector<2x192xf32>
    %238 = vector.extract_strided_slice %231 {offsets = [0, 192], sizes = [2, 64], strides = [1, 1]} : vector<2x256xf32> to vector<2x64xf32>
    %239 = math.tanh %238 : vector<2x64xf32>
    %240 = vector.extract_strided_slice %237 {offsets = [0, 64], sizes = [2, 64], strides = [1, 1]} : vector<2x192xf32> to vector<2x64xf32>
    %241 = arith.mulf %240, %211 : vector<2x64xf32>
    %242 = vector.extract_strided_slice %237 {offsets = [0, 0], sizes = [2, 64], strides = [1, 1]} : vector<2x192xf32> to vector<2x64xf32>
    %243 = arith.mulf %242, %239 : vector<2x64xf32>
    %244 = arith.addf %241, %243 : vector<2x64xf32>
    %245 = vector.extract_strided_slice %237 {offsets = [0, 128], sizes = [2, 64], strides = [1, 1]} : vector<2x192xf32> to vector<2x64xf32>
    %246 = math.tanh %244 : vector<2x64xf32>
    %247 = arith.mulf %245, %246 : vector<2x64xf32>
    %248 = vector.extract_strided_slice %247 {offsets = [0, 0], sizes = [2, 32], strides = [1, 1]} : vector<2x64xf32> to vector<2x32xf32>
    %c0_65 = arith.constant 0 : index
    %c4_66 = arith.constant 4 : index
    %c0_67 = arith.constant 0 : index
    %249 = vector.load %arg17[%c0_65, %c4_66, %c0_67] : memref<2x8x64xf32, #tpu.memory_space<vmem>>, vector<2x1x32xf32>
    %250 = vector.shape_cast %249 : vector<2x1x32xf32> to vector<2x32xf32>
    %251 = vector.shape_cast %248 : vector<2x32xf32> to vector<2x1x32xf32>
    tpu.vector_store %arg17[%c0_65, %c4_66, %c0_67], %251 {strides = array<i32>} : memref<2x8x64xf32, #tpu.memory_space<vmem>>, vector<2x1x32xf32>,
    %252 = vector.extract_strided_slice %247 {offsets = [0, 32], sizes = [2, 32], strides = [1, 1]} : vector<2x64xf32> to vector<2x32xf32>
    %c0_68 = arith.constant 0 : index
    %c3_69 = arith.constant 3 : index
    %c32_70 = arith.constant 32 : index
    %253 = vector.load %arg17[%c0_68, %c3_69, %c32_70] : memref<2x8x64xf32, #tpu.memory_space<vmem>>, vector<2x1x32xf32>
    %254 = vector.shape_cast %253 : vector<2x1x32xf32> to vector<2x32xf32>
    %255 = vector.shape_cast %252 : vector<2x32xf32> to vector<2x1x32xf32>
    tpu.vector_store %arg17[%c0_68, %c3_69, %c32_70], %255 {strides = array<i32>} : memref<2x8x64xf32, #tpu.memory_space<vmem>>, vector<2x1x32xf32>,
    %256 = vector.extract_strided_slice %68 {offsets = [0, 5, 0], sizes = [2, 1, 256], strides = [1, 1, 1]} : vector<2x8x256xf32> to vector<2x1x256xf32>
    %257 = vector.shape_cast %256 : vector<2x1x256xf32> to vector<2x256xf32>
    %258 = vector.extract_strided_slice %68 {offsets = [0, 2, 0], sizes = [2, 1, 256], strides = [1, 1, 1]} : vector<2x8x256xf32> to vector<2x1x256xf32>
    %259 = vector.shape_cast %258 : vector<2x1x256xf32> to vector<2x256xf32>
    %260 = vector.shape_cast %88 : vector<1x256xi1> to vector<1x256xi1>
    %261 = vector.broadcast %260 : vector<1x256xi1> to vector<2x256xi1>
    %262 = arith.select %261, %257, %259 : vector<2x256xi1>, vector<2x256xf32>
    %cst_71 = arith.constant dense<0.000000e+00> : vector<2x256xf32>
    %263 = tpu.matmul %247, %69, %cst_71 {dimension_numbers = #tpu.dot_dimension_numbers<[1], [0], [0], [1], [0, 0, 1, 1], [], []>} : vector<2x64xf32>, vector<64x256xf32>, vector<2x256xf32> -> vector<2x256xf32>
    %264 = arith.addf %262, %263 : vector<2x256xf32>
    %265 = vector.extract_strided_slice %264 {offsets = [0, 0], sizes = [2, 192], strides = [1, 1]} : vector<2x256xf32> to vector<2x192xf32>
    %266 = arith.negf %265 : vector<2x192xf32>
    %267 = math.exp %266 : vector<2x192xf32>
    %cst_72 = arith.constant 1.000000e+00 : f32
    %268 = vector.broadcast %cst_72 : f32 to vector<2x192xf32>
    %269 = arith.addf %268, %267 : vector<2x192xf32>
    %270 = arith.divf %268, %269 : vector<2x192xf32>
    %271 = vector.extract_strided_slice %264 {offsets = [0, 192], sizes = [2, 64], strides = [1, 1]} : vector<2x256xf32> to vector<2x64xf32>
    %272 = math.tanh %271 : vector<2x64xf32>
    %273 = vector.extract_strided_slice %270 {offsets = [0, 64], sizes = [2, 64], strides = [1, 1]} : vector<2x192xf32> to vector<2x64xf32>
    %274 = arith.mulf %273, %244 : vector<2x64xf32>
    %275 = vector.extract_strided_slice %270 {offsets = [0, 0], sizes = [2, 64], strides = [1, 1]} : vector<2x192xf32> to vector<2x64xf32>
    %276 = arith.mulf %275, %272 : vector<2x64xf32>
    %277 = arith.addf %274, %276 : vector<2x64xf32>
    %278 = vector.extract_strided_slice %270 {offsets = [0, 128], sizes = [2, 64], strides = [1, 1]} : vector<2x192xf32> to vector<2x64xf32>
    %279 = math.tanh %277 : vector<2x64xf32>
    %280 = arith.mulf %278, %279 : vector<2x64xf32>
    %281 = vector.extract_strided_slice %280 {offsets = [0, 0], sizes = [2, 32], strides = [1, 1]} : vector<2x64xf32> to vector<2x32xf32>
    %c0_73 = arith.constant 0 : index
    %c5_74 = arith.constant 5 : index
    %c0_75 = arith.constant 0 : index
    %282 = vector.load %arg17[%c0_73, %c5_74, %c0_75] : memref<2x8x64xf32, #tpu.memory_space<vmem>>, vector<2x1x32xf32>
    %283 = vector.shape_cast %282 : vector<2x1x32xf32> to vector<2x32xf32>
    %284 = vector.shape_cast %281 : vector<2x32xf32> to vector<2x1x32xf32>
    tpu.vector_store %arg17[%c0_73, %c5_74, %c0_75], %284 {strides = array<i32>} : memref<2x8x64xf32, #tpu.memory_space<vmem>>, vector<2x1x32xf32>,
    %285 = vector.extract_strided_slice %280 {offsets = [0, 32], sizes = [2, 32], strides = [1, 1]} : vector<2x64xf32> to vector<2x32xf32>
    %c0_76 = arith.constant 0 : index
    %c2_77 = arith.constant 2 : index
    %c32_78 = arith.constant 32 : index
    %286 = vector.load %arg17[%c0_76, %c2_77, %c32_78] : memref<2x8x64xf32, #tpu.memory_space<vmem>>, vector<2x1x32xf32>
    %287 = vector.shape_cast %286 : vector<2x1x32xf32> to vector<2x32xf32>
    %288 = vector.shape_cast %285 : vector<2x32xf32> to vector<2x1x32xf32>
    tpu.vector_store %arg17[%c0_76, %c2_77, %c32_78], %288 {strides = array<i32>} : memref<2x8x64xf32, #tpu.memory_space<vmem>>, vector<2x1x32xf32>,
    %289 = vector.extract_strided_slice %68 {offsets = [0, 6, 0], sizes = [2, 1, 256], strides = [1, 1, 1]} : vector<2x8x256xf32> to vector<2x1x256xf32>
    %290 = vector.shape_cast %289 : vector<2x1x256xf32> to vector<2x256xf32>
    %291 = vector.extract_strided_slice %68 {offsets = [0, 1, 0], sizes = [2, 1, 256], strides = [1, 1, 1]} : vector<2x8x256xf32> to vector<2x1x256xf32>
    %292 = vector.shape_cast %291 : vector<2x1x256xf32> to vector<2x256xf32>
    %293 = vector.shape_cast %88 : vector<1x256xi1> to vector<1x256xi1>
    %294 = vector.broadcast %293 : vector<1x256xi1> to vector<2x256xi1>
    %295 = arith.select %294, %290, %292 : vector<2x256xi1>, vector<2x256xf32>
    %cst_79 = arith.constant dense<0.000000e+00> : vector<2x256xf32>
    %296 = tpu.matmul %280, %69, %cst_79 {dimension_numbers = #tpu.dot_dimension_numbers<[1], [0], [0], [1], [0, 0, 1, 1], [], []>} : vector<2x64xf32>, vector<64x256xf32>, vector<2x256xf32> -> vector<2x256xf32>
    %297 = arith.addf %295, %296 : vector<2x256xf32>
    %298 = vector.extract_strided_slice %297 {offsets = [0, 0], sizes = [2, 192], strides = [1, 1]} : vector<2x256xf32> to vector<2x192xf32>
    %299 = arith.negf %298 : vector<2x192xf32>
    %300 = math.exp %299 : vector<2x192xf32>
    %cst_80 = arith.constant 1.000000e+00 : f32
    %301 = vector.broadcast %cst_80 : f32 to vector<2x192xf32>
    %302 = arith.addf %301, %300 : vector<2x192xf32>
    %303 = arith.divf %301, %302 : vector<2x192xf32>
    %304 = vector.extract_strided_slice %297 {offsets = [0, 192], sizes = [2, 64], strides = [1, 1]} : vector<2x256xf32> to vector<2x64xf32>
    %305 = math.tanh %304 : vector<2x64xf32>
    %306 = vector.extract_strided_slice %303 {offsets = [0, 64], sizes = [2, 64], strides = [1, 1]} : vector<2x192xf32> to vector<2x64xf32>
    %307 = arith.mulf %306, %277 : vector<2x64xf32>
    %308 = vector.extract_strided_slice %303 {offsets = [0, 0], sizes = [2, 64], strides = [1, 1]} : vector<2x192xf32> to vector<2x64xf32>
    %309 = arith.mulf %308, %305 : vector<2x64xf32>
    %310 = arith.addf %307, %309 : vector<2x64xf32>
    %311 = vector.extract_strided_slice %303 {offsets = [0, 128], sizes = [2, 64], strides = [1, 1]} : vector<2x192xf32> to vector<2x64xf32>
    %312 = math.tanh %310 : vector<2x64xf32>
    %313 = arith.mulf %311, %312 : vector<2x64xf32>
    %314 = vector.extract_strided_slice %313 {offsets = [0, 0], sizes = [2, 32], strides = [1, 1]} : vector<2x64xf32> to vector<2x32xf32>
    %c0_81 = arith.constant 0 : index
    %c6_82 = arith.constant 6 : index
    %c0_83 = arith.constant 0 : index
    %315 = vector.load %arg17[%c0_81, %c6_82, %c0_83] : memref<2x8x64xf32, #tpu.memory_space<vmem>>, vector<2x1x32xf32>
    %316 = vector.shape_cast %315 : vector<2x1x32xf32> to vector<2x32xf32>
    %317 = vector.shape_cast %314 : vector<2x32xf32> to vector<2x1x32xf32>
    tpu.vector_store %arg17[%c0_81, %c6_82, %c0_83], %317 {strides = array<i32>} : memref<2x8x64xf32, #tpu.memory_space<vmem>>, vector<2x1x32xf32>,
    %318 = vector.extract_strided_slice %313 {offsets = [0, 32], sizes = [2, 32], strides = [1, 1]} : vector<2x64xf32> to vector<2x32xf32>
    %c0_84 = arith.constant 0 : index
    %c1_85 = arith.constant 1 : index
    %c32_86 = arith.constant 32 : index
    %319 = vector.load %arg17[%c0_84, %c1_85, %c32_86] : memref<2x8x64xf32, #tpu.memory_space<vmem>>, vector<2x1x32xf32>
    %320 = vector.shape_cast %319 : vector<2x1x32xf32> to vector<2x32xf32>
    %321 = vector.shape_cast %318 : vector<2x32xf32> to vector<2x1x32xf32>
    tpu.vector_store %arg17[%c0_84, %c1_85, %c32_86], %321 {strides = array<i32>} : memref<2x8x64xf32, #tpu.memory_space<vmem>>, vector<2x1x32xf32>,
    %322 = vector.extract_strided_slice %68 {offsets = [0, 7, 0], sizes = [2, 1, 256], strides = [1, 1, 1]} : vector<2x8x256xf32> to vector<2x1x256xf32>
    %323 = vector.shape_cast %322 : vector<2x1x256xf32> to vector<2x256xf32>
    %324 = vector.extract_strided_slice %68 {offsets = [0, 0, 0], sizes = [2, 1, 256], strides = [1, 1, 1]} : vector<2x8x256xf32> to vector<2x1x256xf32>
    %325 = vector.shape_cast %324 : vector<2x1x256xf32> to vector<2x256xf32>
    %326 = vector.shape_cast %88 : vector<1x256xi1> to vector<1x256xi1>
    %327 = vector.broadcast %326 : vector<1x256xi1> to vector<2x256xi1>
    %328 = arith.select %327, %323, %325 : vector<2x256xi1>, vector<2x256xf32>
    %cst_87 = arith.constant dense<0.000000e+00> : vector<2x256xf32>
    %329 = tpu.matmul %313, %69, %cst_87 {dimension_numbers = #tpu.dot_dimension_numbers<[1], [0], [0], [1], [0, 0, 1, 1], [], []>} : vector<2x64xf32>, vector<64x256xf32>, vector<2x256xf32> -> vector<2x256xf32>
    %330 = arith.addf %328, %329 : vector<2x256xf32>
    %331 = vector.extract_strided_slice %330 {offsets = [0, 0], sizes = [2, 192], strides = [1, 1]} : vector<2x256xf32> to vector<2x192xf32>
    %332 = arith.negf %331 : vector<2x192xf32>
    %333 = math.exp %332 : vector<2x192xf32>
    %cst_88 = arith.constant 1.000000e+00 : f32
    %334 = vector.broadcast %cst_88 : f32 to vector<2x192xf32>
    %335 = arith.addf %334, %333 : vector<2x192xf32>
    %336 = arith.divf %334, %335 : vector<2x192xf32>
    %337 = vector.extract_strided_slice %330 {offsets = [0, 192], sizes = [2, 64], strides = [1, 1]} : vector<2x256xf32> to vector<2x64xf32>
    %338 = math.tanh %337 : vector<2x64xf32>
    %339 = vector.extract_strided_slice %336 {offsets = [0, 64], sizes = [2, 64], strides = [1, 1]} : vector<2x192xf32> to vector<2x64xf32>
    %340 = arith.mulf %339, %310 : vector<2x64xf32>
    %341 = vector.extract_strided_slice %336 {offsets = [0, 0], sizes = [2, 64], strides = [1, 1]} : vector<2x192xf32> to vector<2x64xf32>
    %342 = arith.mulf %341, %338 : vector<2x64xf32>
    %343 = arith.addf %340, %342 : vector<2x64xf32>
    %344 = vector.extract_strided_slice %336 {offsets = [0, 128], sizes = [2, 64], strides = [1, 1]} : vector<2x192xf32> to vector<2x64xf32>
    %345 = math.tanh %343 : vector<2x64xf32>
    %346 = arith.mulf %344, %345 : vector<2x64xf32>
    %347 = vector.extract_strided_slice %346 {offsets = [0, 0], sizes = [2, 32], strides = [1, 1]} : vector<2x64xf32> to vector<2x32xf32>
    %c0_89 = arith.constant 0 : index
    %c7_90 = arith.constant 7 : index
    %c0_91 = arith.constant 0 : index
    %348 = vector.load %arg17[%c0_89, %c7_90, %c0_91] : memref<2x8x64xf32, #tpu.memory_space<vmem>>, vector<2x1x32xf32>
    %349 = vector.shape_cast %348 : vector<2x1x32xf32> to vector<2x32xf32>
    %350 = vector.shape_cast %347 : vector<2x32xf32> to vector<2x1x32xf32>
    tpu.vector_store %arg17[%c0_89, %c7_90, %c0_91], %350 {strides = array<i32>} : memref<2x8x64xf32, #tpu.memory_space<vmem>>, vector<2x1x32xf32>,
    %351 = vector.extract_strided_slice %346 {offsets = [0, 32], sizes = [2, 32], strides = [1, 1]} : vector<2x64xf32> to vector<2x32xf32>
    %c0_92 = arith.constant 0 : index
    %c0_93 = arith.constant 0 : index
    %c32_94 = arith.constant 32 : index
    %352 = vector.load %arg17[%c0_92, %c0_93, %c32_94] : memref<2x8x64xf32, #tpu.memory_space<vmem>>, vector<2x1x32xf32>
    %353 = vector.shape_cast %352 : vector<2x1x32xf32> to vector<2x32xf32>
    %354 = vector.shape_cast %351 : vector<2x32xf32> to vector<2x1x32xf32>
    tpu.vector_store %arg17[%c0_92, %c0_93, %c32_94], %354 {strides = array<i32>} : memref<2x8x64xf32, #tpu.memory_space<vmem>>, vector<2x1x32xf32>,
    %c0_95 = arith.constant 0 : index
    %c0_96 = arith.constant 0 : index
    %c0_97 = arith.constant 0 : index
    %355 = vector.load %arg17[%c0_95, %c0_96, %c0_97] : memref<2x8x64xf32, #tpu.memory_space<vmem>>, vector<2x8x64xf32>
    %356 = vector.shape_cast %355 : vector<2x8x64xf32> to vector<16x64xf32>
    %cst_98 = arith.constant 0.000000e+00 : f32
    %357 = vector.broadcast %cst_98 : f32 to vector<16x64xf32>
    %358 = arith.maximumf %356, %357 : vector<16x64xf32>
    %c0_99 = arith.constant 0 : index
    %c0_100 = arith.constant 0 : index
    %359 = vector.load %arg12[%c0_99, %c0_100] : memref<64x16xf32, #tpu.memory_space<vmem>>, vector<64x16xf32>
    %cst_101 = arith.constant dense<0.000000e+00> : vector<16x16xf32>
    %360 = tpu.matmul %358, %359, %cst_101 {dimension_numbers = #tpu.dot_dimension_numbers<[1], [0], [0], [1], [0, 0, 1, 1], [], []>} : vector<16x64xf32>, vector<64x16xf32>, vector<16x16xf32> -> vector<16x16xf32>
    %c0_102 = arith.constant 0 : index
    %c0_103 = arith.constant 0 : index
    %361 = vector.load %arg13[%c0_102, %c0_103] : memref<1x16xf32, #tpu.memory_space<vmem>>, vector<1x16xf32>
    %362 = vector.broadcast %361 : vector<1x16xf32> to vector<16x16xf32>
    %363 = arith.addf %360, %362 : vector<16x16xf32>
    %364 = arith.addf %62, %363 : vector<16x16xf32>
    %c0_104 = arith.constant 0 : index
    %c0_105 = arith.constant 0 : index
    %365 = vector.load %arg14[%c0_104, %c0_105] : memref<1x16xf32, #tpu.memory_space<vmem>>, vector<1x16xf32>
    %c0_106 = arith.constant 0 : index
    %c0_107 = arith.constant 0 : index
    %366 = vector.load %arg15[%c0_106, %c0_107] : memref<1x16xf32, #tpu.memory_space<vmem>>, vector<1x16xf32>
    %cst_108 = arith.constant dense<0.000000e+00> : vector<16xf32>
    %367 = vector.multi_reduction <add>, %364, %cst_108 [1] : vector<16x16xf32> to vector<16xf32>
    %368 = vector.shape_cast %367 : vector<16xf32> to vector<16x1xf32>
    %cst_109 = arith.constant 1.600000e+01 : f32
    %369 = vector.broadcast %cst_109 : f32 to vector<16x1xf32>
    %370 = arith.divf %368, %369 : vector<16x1xf32>
    %371 = vector.broadcast %370 : vector<16x1xf32> to vector<16x16xf32>
    %372 = arith.subf %364, %371 : vector<16x16xf32>
    %373 = arith.mulf %372, %372 : vector<16x16xf32>
    %cst_110 = arith.constant dense<0.000000e+00> : vector<16xf32>
    %374 = vector.multi_reduction <add>, %373, %cst_110 [1] : vector<16x16xf32> to vector<16xf32>
    %375 = vector.shape_cast %374 : vector<16xf32> to vector<16x1xf32>
    %cst_111 = arith.constant 1.600000e+01 : f32
    %376 = vector.broadcast %cst_111 : f32 to vector<16x1xf32>
    %377 = arith.divf %375, %376 : vector<16x1xf32>
    %cst_112 = arith.constant 9.99999974E-6 : f32
    %378 = vector.broadcast %cst_112 : f32 to vector<16x1xf32>
    %379 = arith.addf %377, %378 : vector<16x1xf32>
    %380 = math.rsqrt %379 : vector<16x1xf32>
    %381 = vector.broadcast %380 : vector<16x1xf32> to vector<16x16xf32>
    %382 = arith.mulf %372, %381 : vector<16x16xf32>
    %383 = vector.broadcast %365 : vector<1x16xf32> to vector<16x16xf32>
    %384 = arith.mulf %382, %383 : vector<16x16xf32>
    %385 = vector.broadcast %366 : vector<1x16xf32> to vector<16x16xf32>
    %386 = arith.addf %384, %385 : vector<16x16xf32>
    %c0_113 = arith.constant 0 : index
    %c0_114 = arith.constant 0 : index
    %387 = vector.load %arg16[%c0_113, %c0_114] : memref<16x16xf32, #tpu.memory_space<vmem>>, vector<16x16xf32>
    tpu.vector_store %arg16[%c0_113, %c0_114], %386 {strides = array<i32>} : memref<16x16xf32, #tpu.memory_space<vmem>>, vector<16x16xf32>,
    return
  }
}

</mosaic_0001>

<llo_original>
// kernel: tpu_custom_call.1
$region0: #{tpu_custom_call.1}
  #allocation0 [shape = 'u32[]', space=smem, size = 0x4, offset = 0x4, fixed_abs, tag = 'smem constant byte address 0x4 - core index']
  #allocation1 [shape = 'u32[144,128]{1,0:T(1,128)}', space=vmem, size = 0x12000, scoped, tag = 'internal scratch']
  #allocation2 [shape = 'f32[2,8,64]{2,1,0:T(8,128)}', space=vmem, size = 0x2000, scoped, tag = 'scratch operand']
  %s0 = inlined_call_operand.hbm [shape: f32[16,16], index: 0, kind: input, shape index: {}]
  %s1 = inlined_call_operand.hbm [shape: f32[16,48], index: 1, kind: input, shape index: {}]
  %s2 = inlined_call_operand.vmem [shape: f32[1,48], index: 2, kind: input, shape index: {}]
  %s3 = inlined_call_operand.vmem [shape: f32[32,16], index: 3, kind: input, shape index: {}]
  %s4 = inlined_call_operand.vmem [shape: f32[32,32], index: 4, kind: input, shape index: {}]
  %s5 = inlined_call_operand.hbm [shape: f32[16,16], index: 5, kind: input, shape index: {}]
  %s6 = inlined_call_operand.vmem [shape: f32[1,16], index: 6, kind: input, shape index: {}]
  %s7 = inlined_call_operand.vmem [shape: f32[1,16], index: 7, kind: input, shape index: {}]
  %s8 = inlined_call_operand.hbm [shape: f32[1,16], index: 8, kind: input, shape index: {}]
  %s9 = inlined_call_operand.hbm [shape: f32[16,256], index: 9, kind: input, shape index: {}]
  %s10 = inlined_call_operand.vmem [shape: f32[64,256], index: 10, kind: input, shape index: {}]
  %s11 = inlined_call_operand.vmem [shape: f32[1,256], index: 11, kind: input, shape index: {}]
  %s12 = inlined_call_operand.vmem [shape: f32[64,16], index: 12, kind: input, shape index: {}]
  %s13 = inlined_call_operand.vmem [shape: f32[1,16], index: 13, kind: input, shape index: {}]
  %s14 = inlined_call_operand.vmem [shape: f32[1,16], index: 14, kind: input, shape index: {}]
  %s15 = inlined_call_operand.vmem [shape: f32[1,16], index: 15, kind: input, shape index: {}]
  %s16 = inlined_call_operand.hbm [shape: f32[16,16], index: 16, kind: output, shape index: {}]
  %s17 = sld [smem:[#allocation0]]
  $region94: #{tpu_custom_call.1} parent=0
    _
  %s19 = ssub.s32 1, %s17
  %s20 = scalar_select 0, %s19, %s17
  $region1: #{tpu_custom_call.1} parent=0
    #allocation3 [shape = 'u8[8192]{0}', space=vmem, size = 0x2000, scoped, tag = 'input window, operand 0, single buffered']
    #allocation4 [shape = 's32[1]{0}', space=sflag, size = 0x4, scoped, tag = 'scoped memory for tpu_custom_call.1']
    #allocation5 [shape = 's32[1]{0}', space=sflag, size = 0x4, scoped, tag = 'scoped memory for tpu_custom_call.1']
    #allocation6 [shape = 'u8[8192]{0}', space=vmem, size = 0x2000, scoped, tag = 'input window, operand 1, single buffered']
    #allocation7 [shape = 's32[1]{0}', space=sflag, size = 0x4, scoped, tag = 'scoped memory for tpu_custom_call.1']
    #allocation8 [shape = 'u8[8192]{0}', space=vmem, size = 0x2000, scoped, tag = 'input window, operand 5, single buffered']
    #allocation9 [shape = 'u8[512]{0}', space=vmem, size = 0x400, scoped, tag = 'input window, operand 8, single buffered']
    #allocation10 [shape = 's32[1]{0}', space=sflag, size = 0x4, scoped, tag = 'scoped memory for tpu_custom_call.1']
    #allocation11 [shape = 'u8[16384]{0}', space=vmem, size = 0x4000, scoped, tag = 'input window, operand 9, single buffered']
    #allocation12 [shape = 'u8[8192]{0}', space=vmem, size = 0x2000, scoped, tag = 'output window, operand 0, single buffered']
    %21 = vsyncpa [#allocation4], 0
    %22 = vsyncpa [#allocation7], 0
    %23 = vsyncpa [#allocation10], 0
    %24 = vsyncpa [#allocation5], 0
    // Predicated region
    $region2: #{tpu_custom_call.1} parent=1 // pred_check
      _
    $region3: #{tpu_custom_call.1} parent=1 // pred_check_branch
      %26 = sbr.rel (0) target = $region5
    $region4: #{tpu_custom_call.1} parent=1 // pred_region
      %s28 = ssub.s32 256, 256
      %29 = vsyncadd [#allocation4], %s28
      %s30 = sshll.u32 [#allocation3], 4
      %s31 = int_to_ptr.vmem [resolvable:$true] %s30
      %36 = dma.hbm_to_vmem [thread:$0]  %s0, 256, %s31, [#allocation4], 128, 128, 8
    $region5: #{tpu_custom_call.1} parent=1 // pred_fallthru
      _
    // Predicated region
    $region6: #{tpu_custom_call.1} parent=1 // pred_check
      _
    $region7: #{tpu_custom_call.1} parent=1 // pred_check_branch
      %38 = sbr.rel (0) target = $region9
    $region8: #{tpu_custom_call.1} parent=1 // pred_region
      %s40 = ssub.s32 256, 256
      %41 = vsyncadd [#allocation7], %s40
      %s42 = sshll.u32 [#allocation6], 4
      %s43 = int_to_ptr.vmem [resolvable:$true] %s42
      %48 = dma.hbm_to_vmem [thread:$0]  %s1, 256, %s43, [#allocation7], 128, 128, 8
    $region9: #{tpu_custom_call.1} parent=1 // pred_fallthru
      _
    // Predicated region
    $region10: #{tpu_custom_call.1} parent=1 // pred_check
      _
    $region11: #{tpu_custom_call.1} parent=1 // pred_check_branch
      %50 = sbr.rel (0) target = $region13
    $region12: #{tpu_custom_call.1} parent=1 // pred_region
      _
    $region13: #{tpu_custom_call.1} parent=1 // pred_fallthru
      _
    // Predicated region
    $region14: #{tpu_custom_call.1} parent=1 // pred_check
      _
    $region15: #{tpu_custom_call.1} parent=1 // pred_check_branch
      %52 = sbr.rel (0) target = $region17
    $region16: #{tpu_custom_call.1} parent=1 // pred_region
      _
    $region17: #{tpu_custom_call.1} parent=1 // pred_fallthru
      _
    // Predicated region
    $region18: #{tpu_custom_call.1} parent=1 // pred_check
      _
    $region19: #{tpu_custom_call.1} parent=1 // pred_check_branch
      %54 = sbr.rel (0) target = $region21
    $region20: #{tpu_custom_call.1} parent=1 // pred_region
      _
    $region21: #{tpu_custom_call.1} parent=1 // pred_fallthru
      _
    // Predicated region
    $region22: #{tpu_custom_call.1} parent=1 // pred_check
      _
    $region23: #{tpu_custom_call.1} parent=1 // pred_check_branch
      %56 = sbr.rel (0) target = $region25
    $region24: #{tpu_custom_call.1} parent=1 // pred_region
      %s58 = ssub.s32 256, 256
      %59 = vsyncadd [#allocation7], %s58
      %s60 = sshll.u32 [#allocation8], 4
      %s61 = int_to_ptr.vmem [resolvable:$true] %s60
      %66 = dma.hbm_to_vmem [thread:$0]  %s5, 256, %s61, [#allocation7], 128, 128, 8
    $region25: #{tpu_custom_call.1} parent=1 // pred_fallthru
      _
    // Predicated region
    $region26: #{tpu_custom_call.1} parent=1 // pred_check
      _
    $region27: #{tpu_custom_call.1} parent=1 // pred_check_branch
      %68 = sbr.rel (0) target = $region29
    $region28: #{tpu_custom_call.1} parent=1 // pred_region
      _
    $region29: #{tpu_custom_call.1} parent=1 // pred_fallthru
      _
    // Predicated region
    $region30: #{tpu_custom_call.1} parent=1 // pred_check
      _
    $region31: #{tpu_custom_call.1} parent=1 // pred_check_branch
      %70 = sbr.rel (0) target = $region33
    $region32: #{tpu_custom_call.1} parent=1 // pred_region
      _
    $region33: #{tpu_custom_call.1} parent=1 // pred_fallthru
      _
    // Predicated region
    $region34: #{tpu_custom_call.1} parent=1 // pred_check
      _
    $region35: #{tpu_custom_call.1} parent=1 // pred_check_branch
      %72 = sbr.rel (0) target = $region37
    $region36: #{tpu_custom_call.1} parent=1 // pred_region
      %s74 = ssub.s32 16, 16
      %75 = vsyncadd [#allocation10], %s74
      %s77 = sshll.u32 [#allocation9], 4
      %s78 = int_to_ptr.vmem [resolvable:$true] %s77
      %80 = dma.hbm_to_vmem [thread:$0]  %s8, 16, %s78, [#allocation10]
    $region37: #{tpu_custom_call.1} parent=1 // pred_fallthru
      _
    // Predicated region
    $region38: #{tpu_custom_call.1} parent=1 // pred_check
      _
    $region39: #{tpu_custom_call.1} parent=1 // pred_check_branch
      %82 = sbr.rel (0) target = $region41
    $region40: #{tpu_custom_call.1} parent=1 // pred_region
      %s84 = ssub.s32 512, 512
      %85 = vsyncadd [#allocation10], %s84
      %s86 = sshll.u32 [#allocation11], 4
      %s87 = int_to_ptr.vmem [resolvable:$true] %s86
      %92 = dma.hbm_to_vmem [thread:$0]  %s9, 512, %s87, [#allocation10], 256, 256, 16
    $region41: #{tpu_custom_call.1} parent=1 // pred_fallthru
      _
    // Predicated region
    $region42: #{tpu_custom_call.1} parent=1 // pred_check
      _
    $region43: #{tpu_custom_call.1} parent=1 // pred_check_branch
      %94 = sbr.rel (0) target = $region45
    $region44: #{tpu_custom_call.1} parent=1 // pred_region
      _
    $region45: #{tpu_custom_call.1} parent=1 // pred_fallthru
      _
    // Predicated region
    $region46: #{tpu_custom_call.1} parent=1 // pred_check
      _
    $region47: #{tpu_custom_call.1} parent=1 // pred_check_branch
      %96 = sbr.rel (0) target = $region49
    $region48: #{tpu_custom_call.1} parent=1 // pred_region
      _
    $region49: #{tpu_custom_call.1} parent=1 // pred_fallthru
      _
    // Predicated region
    $region50: #{tpu_custom_call.1} parent=1 // pred_check
      _
    $region51: #{tpu_custom_call.1} parent=1 // pred_check_branch
      %98 = sbr.rel (0) target = $region53
    $region52: #{tpu_custom_call.1} parent=1 // pred_region
      _
    $region53: #{tpu_custom_call.1} parent=1 // pred_fallthru
      _
    // Predicated region
    $region54: #{tpu_custom_call.1} parent=1 // pred_check
      _
    $region55: #{tpu_custom_call.1} parent=1 // pred_check_branch
      %100 = sbr.rel (0) target = $region57
    $region56: #{tpu_custom_call.1} parent=1 // pred_region
      _
    $region57: #{tpu_custom_call.1} parent=1 // pred_fallthru
      _
    // Predicated region
    $region58: #{tpu_custom_call.1} parent=1 // pred_check
      _
    $region59: #{tpu_custom_call.1} parent=1 // pred_check_branch
      %102 = sbr.rel (0) target = $region61
    $region60: #{tpu_custom_call.1} parent=1 // pred_region
      _
    $region61: #{tpu_custom_call.1} parent=1 // pred_fallthru
      _
    // Predicated region
    $region62: #{tpu_custom_call.1} parent=1 // pred_check
      _
    $region63: #{tpu_custom_call.1} parent=1 // pred_check_branch
      %104 = sbr.rel (0) target = $region65
    $region64: #{tpu_custom_call.1} parent=1 // pred_region
      _
    $region65: #{tpu_custom_call.1} parent=1 // pred_fallthru
      _
    // Predicated region
    $region66: #{tpu_custom_call.1} parent=1 // pred_check
      _
    $region67: #{tpu_custom_call.1} parent=1 // pred_check_branch
      %106 = sbr.rel (0) target = $region69
    $region68: #{tpu_custom_call.1} parent=1 // pred_region
      %107 = dma.done [#allocation4], 256
    $region69: #{tpu_custom_call.1} parent=1 // pred_fallthru
      _
    // Predicated region
    $region70: #{tpu_custom_call.1} parent=1 // pred_check
      _
    $region71: #{tpu_custom_call.1} parent=1 // pred_check_branch
      %109 = sbr.rel (0) target = $region73
    $region72: #{tpu_custom_call.1} parent=1 // pred_region
      %110 = dma.done [#allocation7], 256
    $region73: #{tpu_custom_call.1} parent=1 // pred_fallthru
      _
    // Predicated region
    $region74: #{tpu_custom_call.1} parent=1 // pred_check
      _
    $region75: #{tpu_custom_call.1} parent=1 // pred_check_branch
      %112 = sbr.rel (0) target = $region77
    $region76: #{tpu_custom_call.1} parent=1 // pred_region
      %113 = dma.done [#allocation7], 256
    $region77: #{tpu_custom_call.1} parent=1 // pred_fallthru
      _
    // Predicated region
    $region78: #{tpu_custom_call.1} parent=1 // pred_check
      _
    $region79: #{tpu_custom_call.1} parent=1 // pred_check_branch
      %115 = sbr.rel (0) target = $region81
    $region80: #{tpu_custom_call.1} parent=1 // pred_region
      %116 = dma.done [#allocation10], 16
    $region81: #{tpu_custom_call.1} parent=1 // pred_fallthru
      _
    // Predicated region
    $region82: #{tpu_custom_call.1} parent=1 // pred_check
      _
    $region83: #{tpu_custom_call.1} parent=1 // pred_check_branch
      %118 = sbr.rel (0) target = $region85
    $region84: #{tpu_custom_call.1} parent=1 // pred_region
      %119 = dma.done [#allocation10], 512
    $region85: #{tpu_custom_call.1} parent=1 // pred_fallthru
      _
    %v120 = vld [vmem:[#allocation3] sm:$0xff]
    %v121 = vld [vmem:[#allocation3 + $0x8] sm:$0xff]
    %v122 = vld [vmem:[#allocation6] sm:$0xff]
    %v123 = vld [vmem:[#allocation6 + $0x8] sm:$0xff]
    %v124 = vld [vmem:[%s2] sm:$0x1]
    %v126 = vlaneseq
    %v127 = vshrl.u32 %v126, 7
    %v128 = vsub.s32 0, %v127
    %v129 = vrot.slane %v124, %v128
    %vm131 = vcmask 130048
    %v133 = vsel %vm131, %v120, 0
    %v136 = vsel %vm131, %v121, 0
    %138 = vmatprep.subr.mxu0 0.0
    %139 = vmatpush1.msra.mxu0 %v122
    %140 = vmatprep.subr.mxu0 0.0
    %141 = vmatpush1.msra.mxu0 %v123
    %142 = vmatprep.subr.mxu0 0.0
    %143 = vmatpush1.msra.mxu0 0.0
    %144 = vmatprep.subr.mxu0 0.0
    %145 = vmatpush1.msra.mxu0 0.0
    %146 = vmatprep.subr.mxu0 0.0
    %147 = vmatpush1.msra.mxu0 0.0
    %148 = vmatprep.subr.mxu0 0.0
    %149 = vmatpush1.msra.mxu0 0.0
    %150 = vmatprep.subr.mxu0 0.0
    %151 = vmatpush1.msra.mxu0 0.0
    %152 = vmatprep.subr.mxu0 0.0
    %153 = vmatpush1.msra.mxu0 0.0
    %154 = vmatprep.subr.mxu0 0.0
    %155 = vmatpush1.msra.mxu0 0.0
    %156 = vmatprep.subr.mxu0 0.0
    %157 = vmatpush1.msra.mxu0 0.0
    %158 = vmatprep.subr.mxu0 0.0
    %159 = vmatpush1.msra.mxu0 0.0
    %160 = vmatprep.subr.mxu0 0.0
    %161 = vmatpush1.msra.mxu0 0.0
    %162 = vmatprep.subr.mxu0 0.0
    %163 = vmatpush1.msra.mxu0 0.0
    %164 = vmatprep.subr.mxu0 0.0
    %165 = vmatpush1.msra.mxu0 0.0
    %166 = vmatprep.subr.mxu0 0.0
    %167 = vmatpush1.msra.mxu0 0.0
    %168 = vmatprep.subr.mxu0 0.0
    %169 = vmatpush1.msra.mxu0 0.0
    %170 = vmatprep.subr.mxu0 0.0
    %171 = vmatpush1.msra.mxu0 0.0
    %172 = vmatprep.subr.mxu0 0.0
    %173 = vmatpush1.msra.mxu0 0.0
    %174 = vmatprep.subr.mxu0 0.0
    %175 = vmatpush1.msra.mxu0 0.0
    %176 = vmatprep.subr.mxu0 0.0
    %177 = vmatpush1.msra.mxu0 0.0
    %178 = vmatprep.subr.mxu0 0.0
    %179 = vmatpush1.msra.mxu0 0.0
    %180 = vmatprep.subr.mxu0 0.0
    %181 = vmatpush1.msra.mxu0 0.0
    %182 = vmatprep.subr.mxu0 0.0
    %183 = vmatpush1.msra.mxu0 0.0
    %184 = vmatprep.subr.mxu0 0.0
    %185 = vmatpush1.msra.mxu0 0.0
    %186 = vmatprep.subr.mxu0 0.0
    %187 = vmatpush1.msra.mxu0 0.0
    %188 = vmatprep.subr.mxu0 0.0
    %189 = vmatpush1.msra.mxu0 0.0
    %190 = vmatprep.subr.mxu0 0.0
    %191 = vmatpush1.msra.mxu0 0.0
    %192 = vmatprep.subr.mxu0 0.0
    %193 = vmatpush1.msra.mxu0 0.0
    %194 = vmatprep.subr.mxu0 0.0
    %195 = vmatpush1.msra.mxu0 0.0
    %196 = vmatprep.subr.mxu0 0.0
    %197 = vmatpush1.msra.mxu0 0.0
    %198 = vmatprep.subr.mxu0 0.0
    %199 = vmatpush1.msra.mxu0 0.0
    %200 = vmatprep.subr.mxu0 0.0
    %201 = vmatpush1.msra.mxu0 0.0
    %202 = vmatprep.mubr.f32.mxu0 0.0
    %203 = vmatmul.mubr.f32.gmra.mrb[0].mxu0 %v133
    %v204 = vpop.f32.mrb[0].mxu0
    %v205 = vadd.f32 %v129, %v204
    %v206 = vpop.f32.mrb[0].mxu0
    %207 = vmatprep.mubr.f32.mxu0 0.0
    %208 = vmatmul.mubr.f32.gmra.mrb[0].mxu0 %v136
    %v209 = vpop.f32.mrb[0].mxu0
    %v210 = vadd.f32 %v129, %v209
    %v211 = vpop.f32.mrb[0].mxu0
    %212 = vdwg.mxu0
    %v213 = vld [vmem:[%s3] sm:$0xff]
    %v214 = vld [vmem:[%s3 + $0x8] sm:$0xff]
    %v215 = vld [vmem:[%s3 + $0x10] sm:$0xff]
    %v216 = vld [vmem:[%s3 + $0x18] sm:$0xff]
    %221 = vrot.lane.b32.xlu0 %v213, 16
    %v222 = vpop.permute.xlu0 %221
    %223 = vrot.lane.b32.xlu0 %v214, 16
    %v224 = vpop.permute.xlu0 %223
    %225 = vrot.lane.b32.xlu0 %v215, 16
    %v226 = vpop.permute.xlu0 %225
    %227 = vrot.lane.b32.xlu0 %v216, 16
    %v228 = vpop.permute.xlu0 %227
    %v233 = vmul.f32 %v205, %v222
    %v234 = vmul.f32 %v205, %v224
    %v235 = vmul.f32 %v205, %v226
    %v236 = vmul.f32 %v205, %v228
    %v237 = vmul.f32 %v210, %v222
    %v238 = vmul.f32 %v210, %v224
    %v239 = vmul.f32 %v210, %v226
    %v240 = vmul.f32 %v210, %v228
    %241 = vrot.lane.b32.xlu0 %v213, 32
    %v242 = vpop.permute.xlu0 %241
    %243 = vrot.lane.b32.xlu0 %v214, 32
    %v244 = vpop.permute.xlu0 %243
    %245 = vrot.lane.b32.xlu0 %v215, 32
    %v246 = vpop.permute.xlu0 %245
    %247 = vrot.lane.b32.xlu0 %v216, 32
    %v248 = vpop.permute.xlu0 %247
    %v253 = vmul.f32 %v205, %v242
    %v254 = vmul.f32 %v205, %v244
    %v255 = vmul.f32 %v205, %v246
    %v256 = vmul.f32 %v205, %v248
    %v257 = vmul.f32 %v210, %v242
    %v258 = vmul.f32 %v210, %v244
    %v259 = vmul.f32 %v210, %v246
    %v260 = vmul.f32 %v210, %v248
    %265 = vrot.lane.b32.xlu0 %v233, 112
    %v266 = vpop.permute.xlu0 %265
    %267 = vrot.lane.b32.xlu0 %v234, 112
    %v268 = vpop.permute.xlu0 %267
    %269 = vrot.lane.b32.xlu0 %v235, 112
    %v270 = vpop.permute.xlu0 %269
    %271 = vrot.lane.b32.xlu0 %v236, 112
    %v272 = vpop.permute.xlu0 %271
    %v274 = vsel %vm131, %v205, 0
    %v276 = vsel %vm131, %v266, 0
    %v278 = vsel %vm131, %v268, 0
    %v280 = vsel %vm131, %v270, 0
    %v282 = vsel %vm131, %v272, 0
    %284 = vmatprep.subr.mxu0 0.0
    %285 = vmatpush1.xpose.msra.mxu0 %v276
    %286 = vmatprep.subr.mxu0 0.0
    %287 = vmatpush1.xpose.msra.mxu0 %v278
    %288 = vmatprep.subr.mxu0 0.0
    %289 = vmatpush1.xpose.msra.mxu0 %v280
    %290 = vmatprep.subr.mxu0 0.0
    %291 = vmatpush1.xpose.msra.mxu0 %v282
    %292 = vmatprep.subr.mxu0 0.0
    %293 = vmatpush1.xpose.msra.mxu0 0.0
    %294 = vmatprep.subr.mxu0 0.0
    %295 = vmatpush1.xpose.msra.mxu0 0.0
    %296 = vmatprep.subr.mxu0 0.0
    %297 = vmatpush1.xpose.msra.mxu0 0.0
    %298 = vmatprep.subr.mxu0 0.0
    %299 = vmatpush1.xpose.msra.mxu0 0.0
    %300 = vmatprep.subr.mxu0 0.0
    %301 = vmatpush1.xpose.msra.mxu0 0.0
    %302 = vmatprep.subr.mxu0 0.0
    %303 = vmatpush1.xpose.msra.mxu0 0.0
    %304 = vmatprep.subr.mxu0 0.0
    %305 = vmatpush1.xpose.msra.mxu0 0.0
    %306 = vmatprep.subr.mxu0 0.0
    %307 = vmatpush1.xpose.msra.mxu0 0.0
    %308 = vmatprep.subr.mxu0 0.0
    %309 = vmatpush1.xpose.msra.mxu0 0.0
    %310 = vmatprep.subr.mxu0 0.0
    %311 = vmatpush1.xpose.msra.mxu0 0.0
    %312 = vmatprep.subr.mxu0 0.0
    %313 = vmatpush1.xpose.msra.mxu0 0.0
    %314 = vmatprep.subr.mxu0 0.0
    %315 = vmatpush1.xpose.msra.mxu0 0.0
    %316 = vmatprep.subr.mxu0 0.0
    %317 = vmatpush1.xpose.msra.mxu0 0.0
    %318 = vmatprep.subr.mxu0 0.0
    %319 = vmatpush1.xpose.msra.mxu0 0.0
    %320 = vmatprep.subr.mxu0 0.0
    %321 = vmatpush1.xpose.msra.mxu0 0.0
    %322 = vmatprep.subr.mxu0 0.0
    %323 = vmatpush1.xpose.msra.mxu0 0.0
    %324 = vmatprep.subr.mxu0 0.0
    %325 = vmatpush1.xpose.msra.mxu0 0.0
    %326 = vmatprep.subr.mxu0 0.0
    %327 = vmatpush1.xpose.msra.mxu0 0.0
    %328 = vmatprep.subr.mxu0 0.0
    %329 = vmatpush1.xpose.msra.mxu0 0.0
    %330 = vmatprep.subr.mxu0 0.0
    %331 = vmatpush1.xpose.msra.mxu0 0.0
    %332 = vmatprep.subr.mxu0 0.0
    %333 = vmatpush1.xpose.msra.mxu0 0.0
    %334 = vmatprep.subr.mxu0 0.0
    %335 = vmatpush1.xpose.msra.mxu0 0.0
    %336 = vmatprep.subr.mxu0 0.0
    %337 = vmatpush1.xpose.msra.mxu0 0.0
    %338 = vmatprep.subr.mxu0 0.0
    %339 = vmatpush1.xpose.msra.mxu0 0.0
    %340 = vmatprep.subr.mxu0 0.0
    %341 = vmatpush1.xpose.msra.mxu0 0.0
    %342 = vmatprep.subr.mxu0 0.0
    %343 = vmatpush1.xpose.msra.mxu0 0.0
    %344 = vmatprep.subr.mxu0 0.0
    %345 = vmatpush1.xpose.msra.mxu0 0.0
    %346 = vmatprep.subr.mxu0 0.0
    %347 = vmatpush1.xpose.msra.mxu0 0.0
    %348 = vmatprep.mubr.f32.mxu0 0.0
    %349 = vmatmul.mubr.f32.gmra.mrb[0].mxu0 %v274
    %v350 = vpop.f32.mrb[0].mxu0
    %v351 = vadd.f32 0.0, %v350
    %v352 = vpop.f32.mrb[0].mxu0
    %353 = vdwg.mxu0
    %358 = vrot.lane.b32.xlu0 %v237, 112
    %v359 = vpop.permute.xlu0 %358
    %360 = vrot.lane.b32.xlu0 %v238, 112
    %v361 = vpop.permute.xlu0 %360
    %362 = vrot.lane.b32.xlu0 %v239, 112
    %v363 = vpop.permute.xlu0 %362
    %364 = vrot.lane.b32.xlu0 %v240, 112
    %v365 = vpop.permute.xlu0 %364
    %v367 = vsel %vm131, %v210, 0
    %v369 = vsel %vm131, %v359, 0
    %v371 = vsel %vm131, %v361, 0
    %v373 = vsel %vm131, %v363, 0
    %v375 = vsel %vm131, %v365, 0
    %377 = vmatprep.subr.mxu0 0.0
    %378 = vmatpush1.xpose.msra.mxu0 %v369
    %379 = vmatprep.subr.mxu0 0.0
    %380 = vmatpush1.xpose.msra.mxu0 %v371
    %381 = vmatprep.subr.mxu0 0.0
    %382 = vmatpush1.xpose.msra.mxu0 %v373
    %383 = vmatprep.subr.mxu0 0.0
    %384 = vmatpush1.xpose.msra.mxu0 %v375
    %385 = vmatprep.subr.mxu0 0.0
    %386 = vmatpush1.xpose.msra.mxu0 0.0
    %387 = vmatprep.subr.mxu0 0.0
    %388 = vmatpush1.xpose.msra.mxu0 0.0
    %389 = vmatprep.subr.mxu0 0.0
    %390 = vmatpush1.xpose.msra.mxu0 0.0
    %391 = vmatprep.subr.mxu0 0.0
    %392 = vmatpush1.xpose.msra.mxu0 0.0
    %393 = vmatprep.subr.mxu0 0.0
    %394 = vmatpush1.xpose.msra.mxu0 0.0
    %395 = vmatprep.subr.mxu0 0.0
    %396 = vmatpush1.xpose.msra.mxu0 0.0
    %397 = vmatprep.subr.mxu0 0.0
    %398 = vmatpush1.xpose.msra.mxu0 0.0
    %399 = vmatprep.subr.mxu0 0.0
    %400 = vmatpush1.xpose.msra.mxu0 0.0
    %401 = vmatprep.subr.mxu0 0.0
    %402 = vmatpush1.xpose.msra.mxu0 0.0
    %403 = vmatprep.subr.mxu0 0.0
    %404 = vmatpush1.xpose.msra.mxu0 0.0
    %405 = vmatprep.subr.mxu0 0.0
    %406 = vmatpush1.xpose.msra.mxu0 0.0
    %407 = vmatprep.subr.mxu0 0.0
    %408 = vmatpush1.xpose.msra.mxu0 0.0
    %409 = vmatprep.subr.mxu0 0.0
    %410 = vmatpush1.xpose.msra.mxu0 0.0
    %411 = vmatprep.subr.mxu0 0.0
    %412 = vmatpush1.xpose.msra.mxu0 0.0
    %413 = vmatprep.subr.mxu0 0.0
    %414 = vmatpush1.xpose.msra.mxu0 0.0
    %415 = vmatprep.subr.mxu0 0.0
    %416 = vmatpush1.xpose.msra.mxu0 0.0
    %417 = vmatprep.subr.mxu0 0.0
    %418 = vmatpush1.xpose.msra.mxu0 0.0
    %419 = vmatprep.subr.mxu0 0.0
    %420 = vmatpush1.xpose.msra.mxu0 0.0
    %421 = vmatprep.subr.mxu0 0.0
    %422 = vmatpush1.xpose.msra.mxu0 0.0
    %423 = vmatprep.subr.mxu0 0.0
    %424 = vmatpush1.xpose.msra.mxu0 0.0
    %425 = vmatprep.subr.mxu0 0.0
    %426 = vmatpush1.xpose.msra.mxu0 0.0
    %427 = vmatprep.subr.mxu0 0.0
    %428 = vmatpush1.xpose.msra.mxu0 0.0
    %429 = vmatprep.subr.mxu0 0.0
    %430 = vmatpush1.xpose.msra.mxu0 0.0
    %431 = vmatprep.subr.mxu0 0.0
    %432 = vmatpush1.xpose.msra.mxu0 0.0
    %433 = vmatprep.subr.mxu0 0.0
    %434 = vmatpush1.xpose.msra.mxu0 0.0
    %435 = vmatprep.subr.mxu0 0.0
    %436 = vmatpush1.xpose.msra.mxu0 0.0
    %437 = vmatprep.subr.mxu0 0.0
    %438 = vmatpush1.xpose.msra.mxu0 0.0
    %439 = vmatprep.subr.mxu0 0.0
    %440 = vmatpush1.xpose.msra.mxu0 0.0
    %441 = vmatprep.mubr.f32.mxu0 0.0
    %442 = vmatmul.mubr.f32.gmra.mrb[0].mxu0 %v367
    %v443 = vpop.f32.mrb[0].mxu0
    %v444 = vadd.f32 0.0, %v443
    %v445 = vpop.f32.mrb[0].mxu0
    %446 = vdwg.mxu0
    %vm447 = vcmask 261120
    %v448 = vsel %vm447, %v351, -inf
    %449 = vmax.xlane.f32.xlu0 %v448
    %v450 = vpop.xlane.xlu0 %449
    %v451 = vsel %vm447, %v444, -inf
    %452 = vmax.xlane.f32.xlu0 %v451
    %v453 = vpop.xlane.xlu0 %452
    %v454 = vsub.f32 %v351, %v450
    %v455 = vsub.f32 %v444, %v453
    %v456 = vmul.f32 %v454, 1.442695
    %v457 = vpow.pop %v456
    %v458 = vmul.f32 %v455, 1.442695
    %v459 = vpow.pop %v458
    %v460 = vld [vmem:[%s4] sm:$0xff]
    %v461 = vld [vmem:[%s4 + $0x8] sm:$0xff]
    %v462 = vld [vmem:[%s4 + $0x10] sm:$0xff]
    %v463 = vld [vmem:[%s4 + $0x18] sm:$0xff]
    %v465 = vsel %vm447, %v457, 0
    %v468 = vsel %vm447, %v459, 0
    %470 = vmatprep.subr.mxu0 0.0
    %471 = vmatpush1.msra.mxu0 %v460
    %472 = vmatprep.subr.mxu0 0.0
    %473 = vmatpush1.msra.mxu0 %v461
    %474 = vmatprep.subr.mxu0 0.0
    %475 = vmatpush1.msra.mxu0 %v462
    %476 = vmatprep.subr.mxu0 0.0
    %477 = vmatpush1.msra.mxu0 %v463
    %478 = vmatprep.subr.mxu0 0.0
    %479 = vmatpush1.msra.mxu0 0.0
    %480 = vmatprep.subr.mxu0 0.0
    %481 = vmatpush1.msra.mxu0 0.0
    %482 = vmatprep.subr.mxu0 0.0
    %483 = vmatpush1.msra.mxu0 0.0
    %484 = vmatprep.subr.mxu0 0.0
    %485 = vmatpush1.msra.mxu0 0.0
    %486 = vmatprep.subr.mxu0 0.0
    %487 = vmatpush1.msra.mxu0 0.0
    %488 = vmatprep.subr.mxu0 0.0
    %489 = vmatpush1.msra.mxu0 0.0
    %490 = vmatprep.subr.mxu0 0.0
    %491 = vmatpush1.msra.mxu0 0.0
    %492 = vmatprep.subr.mxu0 0.0
    %493 = vmatpush1.msra.mxu0 0.0
    %494 = vmatprep.subr.mxu0 0.0
    %495 = vmatpush1.msra.mxu0 0.0
    %496 = vmatprep.subr.mxu0 0.0
    %497 = vmatpush1.msra.mxu0 0.0
    %498 = vmatprep.subr.mxu0 0.0
    %499 = vmatpush1.msra.mxu0 0.0
    %500 = vmatprep.subr.mxu0 0.0
    %501 = vmatpush1.msra.mxu0 0.0
    %502 = vmatprep.subr.mxu0 0.0
    %503 = vmatpush1.msra.mxu0 0.0
    %504 = vmatprep.subr.mxu0 0.0
    %505 = vmatpush1.msra.mxu0 0.0
    %506 = vmatprep.subr.mxu0 0.0
    %507 = vmatpush1.msra.mxu0 0.0
    %508 = vmatprep.subr.mxu0 0.0
    %509 = vmatpush1.msra.mxu0 0.0
    %510 = vmatprep.subr.mxu0 0.0
    %511 = vmatpush1.msra.mxu0 0.0
    %512 = vmatprep.subr.mxu0 0.0
    %513 = vmatpush1.msra.mxu0 0.0
    %514 = vmatprep.subr.mxu0 0.0
    %515 = vmatpush1.msra.mxu0 0.0
    %516 = vmatprep.subr.mxu0 0.0
    %517 = vmatpush1.msra.mxu0 0.0
    %518 = vmatprep.subr.mxu0 0.0
    %519 = vmatpush1.msra.mxu0 0.0
    %520 = vmatprep.subr.mxu0 0.0
    %521 = vmatpush1.msra.mxu0 0.0
    %522 = vmatprep.subr.mxu0 0.0
    %523 = vmatpush1.msra.mxu0 0.0
    %524 = vmatprep.subr.mxu0 0.0
    %525 = vmatpush1.msra.mxu0 0.0
    %526 = vmatprep.subr.mxu0 0.0
    %527 = vmatpush1.msra.mxu0 0.0
    %528 = vmatprep.subr.mxu0 0.0
    %529 = vmatpush1.msra.mxu0 0.0
    %530 = vmatprep.subr.mxu0 0.0
    %531 = vmatpush1.msra.mxu0 0.0
    %532 = vmatprep.subr.mxu0 0.0
    %533 = vmatpush1.msra.mxu0 0.0
    %534 = vmatprep.mubr.f32.mxu0 0.0
    %535 = vmatmul.mubr.f32.gmra.mrb[0].mxu0 %v465
    %v536 = vpop.f32.mrb[0].mxu0
    %v537 = vadd.f32 0.0, %v536
    %v538 = vpop.f32.mrb[0].mxu0
    %539 = vmatprep.mubr.f32.mxu0 0.0
    %540 = vmatmul.mubr.f32.gmra.mrb[0].mxu0 %v468
    %v541 = vpop.f32.mrb[0].mxu0
    %v542 = vadd.f32 0.0, %v541
    %v543 = vpop.f32.mrb[0].mxu0
    %544 = vdwg.mxu0
    %v545 = vrcp.pop %v537
    %v546 = vrcp.pop %v542
    %v547 = vmul.f32 %v457, %v545
    %v548 = vmul.f32 %v459, %v546
    %553 = vrot.lane.b32.xlu0 %v253, 96
    %v554 = vpop.permute.xlu0 %553
    %555 = vrot.lane.b32.xlu0 %v254, 96
    %v556 = vpop.permute.xlu0 %555
    %557 = vrot.lane.b32.xlu0 %v255, 96
    %v558 = vpop.permute.xlu0 %557
    %559 = vrot.lane.b32.xlu0 %v256, 96
    %v560 = vpop.permute.xlu0 %559
    %v566 = vsel %vm447, %v547, 0
    %568 = vmatprep.subr.mxu0 0.0
    %569 = vmatpush1.msra.mxu0 %v554
    %570 = vmatprep.subr.mxu0 0.0
    %571 = vmatpush1.msra.mxu0 %v556
    %572 = vmatprep.subr.mxu0 0.0
    %573 = vmatpush1.msra.mxu0 %v558
    %574 = vmatprep.subr.mxu0 0.0
    %575 = vmatpush1.msra.mxu0 %v560
    %576 = vmatprep.subr.mxu0 0.0
    %577 = vmatpush1.msra.mxu0 0.0
    %578 = vmatprep.subr.mxu0 0.0
    %579 = vmatpush1.msra.mxu0 0.0
    %580 = vmatprep.subr.mxu0 0.0
    %581 = vmatpush1.msra.mxu0 0.0
    %582 = vmatprep.subr.mxu0 0.0
    %583 = vmatpush1.msra.mxu0 0.0
    %584 = vmatprep.subr.mxu0 0.0
    %585 = vmatpush1.msra.mxu0 0.0
    %586 = vmatprep.subr.mxu0 0.0
    %587 = vmatpush1.msra.mxu0 0.0
    %588 = vmatprep.subr.mxu0 0.0
    %589 = vmatpush1.msra.mxu0 0.0
    %590 = vmatprep.subr.mxu0 0.0
    %591 = vmatpush1.msra.mxu0 0.0
    %592 = vmatprep.subr.mxu0 0.0
    %593 = vmatpush1.msra.mxu0 0.0
    %594 = vmatprep.subr.mxu0 0.0
    %595 = vmatpush1.msra.mxu0 0.0
    %596 = vmatprep.subr.mxu0 0.0
    %597 = vmatpush1.msra.mxu0 0.0
    %598 = vmatprep.subr.mxu0 0.0
    %599 = vmatpush1.msra.mxu0 0.0
    %600 = vmatprep.subr.mxu0 0.0
    %601 = vmatpush1.msra.mxu0 0.0
    %602 = vmatprep.subr.mxu0 0.0
    %603 = vmatpush1.msra.mxu0 0.0
    %604 = vmatprep.subr.mxu0 0.0
    %605 = vmatpush1.msra.mxu0 0.0
    %606 = vmatprep.subr.mxu0 0.0
    %607 = vmatpush1.msra.mxu0 0.0
    %608 = vmatprep.subr.mxu0 0.0
    %609 = vmatpush1.msra.mxu0 0.0
    %610 = vmatprep.subr.mxu0 0.0
    %611 = vmatpush1.msra.mxu0 0.0
    %612 = vmatprep.subr.mxu0 0.0
    %613 = vmatpush1.msra.mxu0 0.0
    %614 = vmatprep.subr.mxu0 0.0
    %615 = vmatpush1.msra.mxu0 0.0
    %616 = vmatprep.subr.mxu0 0.0
    %617 = vmatpush1.msra.mxu0 0.0
    %618 = vmatprep.subr.mxu0 0.0
    %619 = vmatpush1.msra.mxu0 0.0
    %620 = vmatprep.subr.mxu0 0.0
    %621 = vmatpush1.msra.mxu0 0.0
    %622 = vmatprep.subr.mxu0 0.0
    %623 = vmatpush1.msra.mxu0 0.0
    %624 = vmatprep.subr.mxu0 0.0
    %625 = vmatpush1.msra.mxu0 0.0
    %626 = vmatprep.subr.mxu0 0.0
    %627 = vmatpush1.msra.mxu0 0.0
    %628 = vmatprep.subr.mxu0 0.0
    %629 = vmatpush1.msra.mxu0 0.0
    %630 = vmatprep.subr.mxu0 0.0
    %631 = vmatpush1.msra.mxu0 0.0
    %632 = vmatprep.mubr.f32.mxu0 0.0
    %633 = vmatmul.mubr.f32.gmra.mrb[0].mxu0 %v566
    %v634 = vpop.f32.mrb[0].mxu0
    %v635 = vadd.f32 0.0, %v634
    %v636 = vpop.f32.mrb[0].mxu0
    %637 = vdwg.mxu0
    %642 = vrot.lane.b32.xlu0 %v257, 96
    %v643 = vpop.permute.xlu0 %642
    %644 = vrot.lane.b32.xlu0 %v258, 96
    %v645 = vpop.permute.xlu0 %644
    %646 = vrot.lane.b32.xlu0 %v259, 96
    %v647 = vpop.permute.xlu0 %646
    %648 = vrot.lane.b32.xlu0 %v260, 96
    %v649 = vpop.permute.xlu0 %648
    %v655 = vsel %vm447, %v548, 0
    %657 = vmatprep.subr.mxu0 0.0
    %658 = vmatpush1.msra.mxu0 %v643
    %659 = vmatprep.subr.mxu0 0.0
    %660 = vmatpush1.msra.mxu0 %v645
    %661 = vmatprep.subr.mxu0 0.0
    %662 = vmatpush1.msra.mxu0 %v647
    %663 = vmatprep.subr.mxu0 0.0
    %664 = vmatpush1.msra.mxu0 %v649
    %665 = vmatprep.subr.mxu0 0.0
    %666 = vmatpush1.msra.mxu0 0.0
    %667 = vmatprep.subr.mxu0 0.0
    %668 = vmatpush1.msra.mxu0 0.0
    %669 = vmatprep.subr.mxu0 0.0
    %670 = vmatpush1.msra.mxu0 0.0
    %671 = vmatprep.subr.mxu0 0.0
    %672 = vmatpush1.msra.mxu0 0.0
    %673 = vmatprep.subr.mxu0 0.0
    %674 = vmatpush1.msra.mxu0 0.0
    %675 = vmatprep.subr.mxu0 0.0
    %676 = vmatpush1.msra.mxu0 0.0
    %677 = vmatprep.subr.mxu0 0.0
    %678 = vmatpush1.msra.mxu0 0.0
    %679 = vmatprep.subr.mxu0 0.0
    %680 = vmatpush1.msra.mxu0 0.0
    %681 = vmatprep.subr.mxu0 0.0
    %682 = vmatpush1.msra.mxu0 0.0
    %683 = vmatprep.subr.mxu0 0.0
    %684 = vmatpush1.msra.mxu0 0.0
    %685 = vmatprep.subr.mxu0 0.0
    %686 = vmatpush1.msra.mxu0 0.0
    %687 = vmatprep.subr.mxu0 0.0
    %688 = vmatpush1.msra.mxu0 0.0
    %689 = vmatprep.subr.mxu0 0.0
    %690 = vmatpush1.msra.mxu0 0.0
    %691 = vmatprep.subr.mxu0 0.0
    %692 = vmatpush1.msra.mxu0 0.0
    %693 = vmatprep.subr.mxu0 0.0
    %694 = vmatpush1.msra.mxu0 0.0
    %695 = vmatprep.subr.mxu0 0.0
    %696 = vmatpush1.msra.mxu0 0.0
    %697 = vmatprep.subr.mxu0 0.0
    %698 = vmatpush1.msra.mxu0 0.0
    %699 = vmatprep.subr.mxu0 0.0
    %700 = vmatpush1.msra.mxu0 0.0
    %701 = vmatprep.subr.mxu0 0.0
    %702 = vmatpush1.msra.mxu0 0.0
    %703 = vmatprep.subr.mxu0 0.0
    %704 = vmatpush1.msra.mxu0 0.0
    %705 = vmatprep.subr.mxu0 0.0
    %706 = vmatpush1.msra.mxu0 0.0
    %707 = vmatprep.subr.mxu0 0.0
    %708 = vmatpush1.msra.mxu0 0.0
    %709 = vmatprep.subr.mxu0 0.0
    %710 = vmatpush1.msra.mxu0 0.0
    %711 = vmatprep.subr.mxu0 0.0
    %712 = vmatpush1.msra.mxu0 0.0
    %713 = vmatprep.subr.mxu0 0.0
    %714 = vmatpush1.msra.mxu0 0.0
    %715 = vmatprep.subr.mxu0 0.0
    %716 = vmatpush1.msra.mxu0 0.0
    %717 = vmatprep.subr.mxu0 0.0
    %718 = vmatpush1.msra.mxu0 0.0
    %719 = vmatprep.subr.mxu0 0.0
    %720 = vmatpush1.msra.mxu0 0.0
    %721 = vmatprep.mubr.f32.mxu0 0.0
    %722 = vmatmul.mubr.f32.gmra.mrb[0].mxu0 %v655
    %v723 = vpop.f32.mrb[0].mxu0
    %v724 = vadd.f32 0.0, %v723
    %v725 = vpop.f32.mrb[0].mxu0
    %726 = vdwg.mxu0
    %v727 = vld [vmem:[#allocation8] sm:$0xff]
    %v728 = vld [vmem:[#allocation8 + $0x8] sm:$0xff]
    %v729 = vld [vmem:[%s6] sm:$0x1]
    %v731 = vlaneseq
    %v732 = vshrl.u32 %v731, 7
    %v733 = vsub.s32 0, %v732
    %v734 = vrot.slane %v729, %v733
    %v737 = vsel %vm131, %v635, 0
    %v740 = vsel %vm131, %v724, 0
    %742 = vmatprep.subr.mxu0 0.0
    %743 = vmatpush1.msra.mxu0 %v727
    %744 = vmatprep.subr.mxu0 0.0
    %745 = vmatpush1.msra.mxu0 %v728
    %746 = vmatprep.subr.mxu0 0.0
    %747 = vmatpush1.msra.mxu0 0.0
    %748 = vmatprep.subr.mxu0 0.0
    %749 = vmatpush1.msra.mxu0 0.0
    %750 = vmatprep.subr.mxu0 0.0
    %751 = vmatpush1.msra.mxu0 0.0
    %752 = vmatprep.subr.mxu0 0.0
    %753 = vmatpush1.msra.mxu0 0.0
    %754 = vmatprep.subr.mxu0 0.0
    %755 = vmatpush1.msra.mxu0 0.0
    %756 = vmatprep.subr.mxu0 0.0
    %757 = vmatpush1.msra.mxu0 0.0
    %758 = vmatprep.subr.mxu0 0.0
    %759 = vmatpush1.msra.mxu0 0.0
    %760 = vmatprep.subr.mxu0 0.0
    %761 = vmatpush1.msra.mxu0 0.0
    %762 = vmatprep.subr.mxu0 0.0
    %763 = vmatpush1.msra.mxu0 0.0
    %764 = vmatprep.subr.mxu0 0.0
    %765 = vmatpush1.msra.mxu0 0.0
    %766 = vmatprep.subr.mxu0 0.0
    %767 = vmatpush1.msra.mxu0 0.0
    %768 = vmatprep.subr.mxu0 0.0
    %769 = vmatpush1.msra.mxu0 0.0
    %770 = vmatprep.subr.mxu0 0.0
    %771 = vmatpush1.msra.mxu0 0.0
    %772 = vmatprep.subr.mxu0 0.0
    %773 = vmatpush1.msra.mxu0 0.0
    %774 = vmatprep.subr.mxu0 0.0
    %775 = vmatpush1.msra.mxu0 0.0
    %776 = vmatprep.subr.mxu0 0.0
    %777 = vmatpush1.msra.mxu0 0.0
    %778 = vmatprep.subr.mxu0 0.0
    %779 = vmatpush1.msra.mxu0 0.0
    %780 = vmatprep.subr.mxu0 0.0
    %781 = vmatpush1.msra.mxu0 0.0
    %782 = vmatprep.subr.mxu0 0.0
    %783 = vmatpush1.msra.mxu0 0.0
    %784 = vmatprep.subr.mxu0 0.0
    %785 = vmatpush1.msra.mxu0 0.0
    %786 = vmatprep.subr.mxu0 0.0
    %787 = vmatpush1.msra.mxu0 0.0
    %788 = vmatprep.subr.mxu0 0.0
    %789 = vmatpush1.msra.mxu0 0.0
    %790 = vmatprep.subr.mxu0 0.0
    %791 = vmatpush1.msra.mxu0 0.0
    %792 = vmatprep.subr.mxu0 0.0
    %793 = vmatpush1.msra.mxu0 0.0
    %794 = vmatprep.subr.mxu0 0.0
    %795 = vmatpush1.msra.mxu0 0.0
    %796 = vmatprep.subr.mxu0 0.0
    %797 = vmatpush1.msra.mxu0 0.0
    %798 = vmatprep.subr.mxu0 0.0
    %799 = vmatpush1.msra.mxu0 0.0
    %800 = vmatprep.subr.mxu0 0.0
    %801 = vmatpush1.msra.mxu0 0.0
    %802 = vmatprep.subr.mxu0 0.0
    %803 = vmatpush1.msra.mxu0 0.0
    %804 = vmatprep.subr.mxu0 0.0
    %805 = vmatpush1.msra.mxu0 0.0
    %806 = vmatprep.mubr.f32.mxu0 0.0
    %807 = vmatmul.mubr.f32.gmra.mrb[0].mxu0 %v737
    %v808 = vpop.f32.mrb[0].mxu0
    %v809 = vadd.f32 %v734, %v808
    %v810 = vpop.f32.mrb[0].mxu0
    %811 = vmatprep.mubr.f32.mxu0 0.0
    %812 = vmatmul.mubr.f32.gmra.mrb[0].mxu0 %v740
    %v813 = vpop.f32.mrb[0].mxu0
    %v814 = vadd.f32 %v734, %v813
    %v815 = vpop.f32.mrb[0].mxu0
    %816 = vdwg.mxu0
    %v817 = vadd.f32 %v120, %v809
    %v818 = vadd.f32 %v121, %v814
    %v819 = vld [vmem:[%s7] sm:$0x1]
    %v820 = vld [vmem:[#allocation9] sm:$0x1]
    %v821 = vsel %vm131, %v817, 0.0
    %822 = vadd.xlane.f32.xlu0 %v821
    %v823 = vpop.xlane.xlu0 %822
    %v824 = vsel %vm131, %v818, 0.0
    %825 = vadd.xlane.f32.xlu0 %v824
    %v826 = vpop.xlane.xlu0 %825
    %v827 = vrcp.pop 16.0
    %v828 = vmul.f32 %v823, %v827
    %v829 = vmul.f32 %v826, %v827
    %v830 = vsub.f32 %v817, %v828
    %v831 = vsub.f32 %v818, %v829
    %v832 = vmul.f32 %v830, %v830
    %v833 = vmul.f32 %v831, %v831
    %v834 = vsel %vm131, %v832, 0.0
    %835 = vadd.xlane.f32.xlu0 %v834
    %v836 = vpop.xlane.xlu0 %835
    %v837 = vsel %vm131, %v833, 0.0
    %838 = vadd.xlane.f32.xlu0 %v837
    %v839 = vpop.xlane.xlu0 %838
    %v840 = vmul.f32 %v836, %v827
    %v841 = vmul.f32 %v839, %v827
    %v842 = vadd.f32 %v840, 1e-05
    %v843 = vadd.f32 %v841, 1e-05
    %v844 = vrsqrt.pop %v842
    %v845 = vrsqrt.pop %v843
    %v846 = vmul.f32 %v830, %v844
    %v847 = vmul.f32 %v831, %v845
    %v849 = vlaneseq
    %v850 = vshrl.u32 %v849, 7
    %v851 = vsub.s32 0, %v850
    %v852 = vrot.slane %v819, %v851
    %v854 = vmul.f32 %v846, %v852
    %v855 = vmul.f32 %v847, %v852
    %v857 = vlaneseq
    %v858 = vshrl.u32 %v857, 7
    %v859 = vsub.s32 0, %v858
    %v860 = vrot.slane %v820, %v859
    %v862 = vadd.f32 %v854, %v860
    %v863 = vadd.f32 %v855, %v860
    %v864 = vld [vmem:[#allocation11] sm:$0xff]
    %v865 = vld [vmem:[#allocation11 + $0x8] sm:$0xff]
    %v866 = vld [vmem:[#allocation11 + $0x10] sm:$0xff]
    %v867 = vld [vmem:[#allocation11 + $0x18] sm:$0xff]
    %v868 = vld [vmem:[%s11] sm:$0x3]
    %v870 = vlaneseq
    %v871 = vshrl.u32 %v870, 7
    %v872 = vsub.s32 0, %v871
    %v873 = vrot.slane %v868, %v872
    %v874 = vlaneseq
    %v875 = vshrl.u32 %v874, 7
    %v876 = vsub.s32 1, %v875
    %v877 = vrot.slane %v868, %v876
    %v881 = vsel %vm131, %v862, 0
    %v884 = vsel %vm131, %v863, 0
    %886 = vmatprep.subr.mxu0 %v865
    %887 = vmatpush1.msra.mxu0 %v864
    %888 = vmatprep.subr.mxu0 %v867
    %889 = vmatpush1.msra.mxu0 %v866
    %890 = vmatprep.subr.mxu0 0.0
    %891 = vmatpush1.msra.mxu0 0.0
    %892 = vmatprep.subr.mxu0 0.0
    %893 = vmatpush1.msra.mxu0 0.0
    %894 = vmatprep.subr.mxu0 0.0
    %895 = vmatpush1.msra.mxu0 0.0
    %896 = vmatprep.subr.mxu0 0.0
    %897 = vmatpush1.msra.mxu0 0.0
    %898 = vmatprep.subr.mxu0 0.0
    %899 = vmatpush1.msra.mxu0 0.0
    %900 = vmatprep.subr.mxu0 0.0
    %901 = vmatpush1.msra.mxu0 0.0
    %902 = vmatprep.subr.mxu0 0.0
    %903 = vmatpush1.msra.mxu0 0.0
    %904 = vmatprep.subr.mxu0 0.0
    %905 = vmatpush1.msra.mxu0 0.0
    %906 = vmatprep.subr.mxu0 0.0
    %907 = vmatpush1.msra.mxu0 0.0
    %908 = vmatprep.subr.mxu0 0.0
    %909 = vmatpush1.msra.mxu0 0.0
    %910 = vmatprep.subr.mxu0 0.0
    %911 = vmatpush1.msra.mxu0 0.0
    %912 = vmatprep.subr.mxu0 0.0
    %913 = vmatpush1.msra.mxu0 0.0
    %914 = vmatprep.subr.mxu0 0.0
    %915 = vmatpush1.msra.mxu0 0.0
    %916 = vmatprep.subr.mxu0 0.0
    %917 = vmatpush1.msra.mxu0 0.0
    %918 = vmatprep.subr.mxu0 0.0
    %919 = vmatpush1.msra.mxu0 0.0
    %920 = vmatprep.subr.mxu0 0.0
    %921 = vmatpush1.msra.mxu0 0.0
    %922 = vmatprep.subr.mxu0 0.0
    %923 = vmatpush1.msra.mxu0 0.0
    %924 = vmatprep.subr.mxu0 0.0
    %925 = vmatpush1.msra.mxu0 0.0
    %926 = vmatprep.subr.mxu0 0.0
    %927 = vmatpush1.msra.mxu0 0.0
    %928 = vmatprep.subr.mxu0 0.0
    %929 = vmatpush1.msra.mxu0 0.0
    %930 = vmatprep.subr.mxu0 0.0
    %931 = vmatpush1.msra.mxu0 0.0
    %932 = vmatprep.subr.mxu0 0.0
    %933 = vmatpush1.msra.mxu0 0.0
    %934 = vmatprep.subr.mxu0 0.0
    %935 = vmatpush1.msra.mxu0 0.0
    %936 = vmatprep.subr.mxu0 0.0
    %937 = vmatpush1.msra.mxu0 0.0
    %938 = vmatprep.subr.mxu0 0.0
    %939 = vmatpush1.msra.mxu0 0.0
    %940 = vmatprep.subr.mxu0 0.0
    %941 = vmatpush1.msra.mxu0 0.0
    %942 = vmatprep.subr.mxu0 0.0
    %943 = vmatpush1.msra.mxu0 0.0
    %944 = vmatprep.subr.mxu0 0.0
    %945 = vmatpush1.msra.mxu0 0.0
    %946 = vmatprep.subr.mxu0 0.0
    %947 = vmatpush1.msra.mxu0 0.0
    %948 = vmatprep.subr.mxu0 0.0
    %949 = vmatpush1.msra.mxu0 0.0
    %950 = vmatprep.mubr.f32.mxu0 0.0
    %951 = vmatmul.mubr.f32.gmra.mrb[0].mxu0 %v881
    %v952 = vpop.f32.mrb[0].mxu0
    %v953 = vadd.f32 %v873, %v952
    %v954 = vpop.f32.mrb[0].mxu0
    %v955 = vadd.f32 %v877, %v954
    %956 = vmatprep.mubr.f32.mxu0 0.0
    %957 = vmatmul.mubr.f32.gmra.mrb[0].mxu0 %v884
    %v958 = vpop.f32.mrb[0].mxu0
    %v959 = vadd.f32 %v873, %v958
    %v960 = vpop.f32.mrb[0].mxu0
    %v961 = vadd.f32 %v877, %v960
    %962 = vdwg.mxu0
    %v963 = vld [vmem:[%s10] sm:$0xff]
    %v964 = vld [vmem:[%s10 + $0x8] sm:$0xff]
    %v965 = vld [vmem:[%s10 + $0x10] sm:$0xff]
    %v966 = vld [vmem:[%s10 + $0x18] sm:$0xff]
    %v967 = vld [vmem:[%s10 + $0x20] sm:$0xff]
    %v968 = vld [vmem:[%s10 + $0x28] sm:$0xff]
    %v969 = vld [vmem:[%s10 + $0x30] sm:$0xff]
    %v970 = vld [vmem:[%s10 + $0x38] sm:$0xff]
    %v971 = vld [vmem:[%s10 + $0x40] sm:$0xff]
    %v972 = vld [vmem:[%s10 + $0x48] sm:$0xff]
    %v973 = vld [vmem:[%s10 + $0x50] sm:$0xff]
    %v974 = vld [vmem:[%s10 + $0x58] sm:$0xff]
    %v975 = vld [vmem:[%s10 + $0x60] sm:$0xff]
    %v976 = vld [vmem:[%s10 + $0x68] sm:$0xff]
    %v977 = vld [vmem:[%s10 + $0x70] sm:$0xff]
    %v978 = vld [vmem:[%s10 + $0x78] sm:$0xff]
    %v979 = vlaneseq
    %v980 = vand.u32 %v979, 127
    %v981 = vadd.s32 %v980, 128
    %vm982 = vcmp.lt.s32.totalorder %v980, 0
    %v983 = vsub.s32 0, %v980
    %v984 = vsel %vm982, %v983, %v980
    %v985 = vshrl.u32 %v984, 6
    %v986 = vand.u32 %v984, 63
    %v987 = vsub.s32 0, %v986
    %v988 = vsel %vm982, %v987, %v986
    %vm989 = vcmp.lt.s32.totalorder %v981, 0
    %v990 = vsub.s32 0, %v981
    %v991 = vsel %vm989, %v990, %v981
    %v992 = vshrl.u32 %v991, 6
    %v993 = vand.u32 %v991, 63
    %v994 = vsub.s32 0, %v993
    %v995 = vsel %vm989, %v994, %v993
    %vm996 = vcmp.ne.s32.totalorder %v988, 0
    %vm997 = vcmp.ne.s32.totalorder %v995, 0
    %vm998 = vcmp.lt.s32.totalorder %v988, 0
    %vm999 = vcmp.lt.s32.totalorder %v995, 0
    %vm1000 = vmand %vm998, %vm996
    %vm1001 = vmand %vm999, %vm997
    %v1002 = vadd.s32 %v988, 64
    %v1003 = vadd.s32 %v995, 64
    %v1004 = vsel %vm1000, %v1002, %v988
    %v1005 = vsel %vm1001, %v1003, %v995
    %vm1006 = vcmp.lt.s32.totalorder %v1004, 32
    %vm1007 = vcmp.lt.s32.totalorder %v1005, 32
    %v1008 = vsel %vm1006, 1, 0
    %v1009 = vsel %vm1007, 1, 0
    %vm1010 = vcmp.eq.s32.totalorder %v1008, 1
    %vm1011 = vcmp.eq.s32.totalorder %v1009, 1
    %v1016 = vrot.slane %v959, 7
    %vm1017 = vcmask 1041409
    %v1018 = vsel %vm1017, %v1016, %v953
    %v1019 = vrot.slane %v961, 7
    %v1020 = vsel %vm1017, %v1019, %v955
    %v1023 = vrot.slane %v953, 7
    %v1024 = vrot.slane %v959, 6
    %v1025 = vsel %vm1017, %v1024, %v1023
    %v1026 = vrot.slane %v955, 7
    %v1027 = vrot.slane %v961, 6
    %v1028 = vsel %vm1017, %v1027, %v1026
    %v1031 = vsel %vm1010, %v1018, %v1025
    %v1032 = vsel %vm1011, %v1020, %v1028
    %vm1033 = vcmask 523264
    %v1035 = vsel %vm1033, 0.0, 0
    %1037 = vmatprep.subr.mxu0 %v964
    %1038 = vmatpush1.msra.mxu0 %v963
    %1039 = vmatprep.subr.mxu0 %v966
    %1040 = vmatpush1.msra.mxu0 %v965
    %1041 = vmatprep.subr.mxu0 %v968
    %1042 = vmatpush1.msra.mxu0 %v967
    %1043 = vmatprep.subr.mxu0 %v970
    %1044 = vmatpush1.msra.mxu0 %v969
    %1045 = vmatprep.subr.mxu0 %v972
    %1046 = vmatpush1.msra.mxu0 %v971
    %1047 = vmatprep.subr.mxu0 %v974
    %1048 = vmatpush1.msra.mxu0 %v973
    %1049 = vmatprep.subr.mxu0 %v976
    %1050 = vmatpush1.msra.mxu0 %v975
    %1051 = vmatprep.subr.mxu0 %v978
    %1052 = vmatpush1.msra.mxu0 %v977
    %1053 = vmatprep.subr.mxu0 0.0
    %1054 = vmatpush1.msra.mxu0 0.0
    %1055 = vmatprep.subr.mxu0 0.0
    %1056 = vmatpush1.msra.mxu0 0.0
    %1057 = vmatprep.subr.mxu0 0.0
    %1058 = vmatpush1.msra.mxu0 0.0
    %1059 = vmatprep.subr.mxu0 0.0
    %1060 = vmatpush1.msra.mxu0 0.0
    %1061 = vmatprep.subr.mxu0 0.0
    %1062 = vmatpush1.msra.mxu0 0.0
    %1063 = vmatprep.subr.mxu0 0.0
    %1064 = vmatpush1.msra.mxu0 0.0
    %1065 = vmatprep.subr.mxu0 0.0
    %1066 = vmatpush1.msra.mxu0 0.0
    %1067 = vmatprep.subr.mxu0 0.0
    %1068 = vmatpush1.msra.mxu0 0.0
    %1069 = vmatprep.subr.mxu0 0.0
    %1070 = vmatpush1.msra.mxu0 0.0
    %1071 = vmatprep.subr.mxu0 0.0
    %1072 = vmatpush1.msra.mxu0 0.0
    %1073 = vmatprep.subr.mxu0 0.0
    %1074 = vmatpush1.msra.mxu0 0.0
    %1075 = vmatprep.subr.mxu0 0.0
    %1076 = vmatpush1.msra.mxu0 0.0
    %1077 = vmatprep.subr.mxu0 0.0
    %1078 = vmatpush1.msra.mxu0 0.0
    %1079 = vmatprep.subr.mxu0 0.0
    %1080 = vmatpush1.msra.mxu0 0.0
    %1081 = vmatprep.subr.mxu0 0.0
    %1082 = vmatpush1.msra.mxu0 0.0
    %1083 = vmatprep.subr.mxu0 0.0
    %1084 = vmatpush1.msra.mxu0 0.0
    %1085 = vmatprep.subr.mxu0 0.0
    %1086 = vmatpush1.msra.mxu0 0.0
    %1087 = vmatprep.subr.mxu0 0.0
    %1088 = vmatpush1.msra.mxu0 0.0
    %1089 = vmatprep.subr.mxu0 0.0
    %1090 = vmatpush1.msra.mxu0 0.0
    %1091 = vmatprep.subr.mxu0 0.0
    %1092 = vmatpush1.msra.mxu0 0.0
    %1093 = vmatprep.subr.mxu0 0.0
    %1094 = vmatpush1.msra.mxu0 0.0
    %1095 = vmatprep.subr.mxu0 0.0
    %1096 = vmatpush1.msra.mxu0 0.0
    %1097 = vmatprep.subr.mxu0 0.0
    %1098 = vmatpush1.msra.mxu0 0.0
    %1099 = vmatprep.subr.mxu0 0.0
    %1100 = vmatpush1.msra.mxu0 0.0
    %1101 = vmatprep.mubr.f32.mxu0 0.0
    %1102 = vmatmul.mubr.f32.gmra.mrb[0].mxu0 %v1035
    %v1103 = vpop.f32.mrb[0].mxu0
    %v1104 = vadd.f32 0.0, %v1103
    %v1105 = vpop.f32.mrb[0].mxu0
    %v1106 = vadd.f32 0.0, %v1105
    %1107 = vdwg.mxu0
    %v1108 = vadd.f32 %v1031, %v1104
    %v1109 = vadd.f32 %v1032, %v1106
    %v1110 = vxor.u32 %v1108, 2147483648
    %v1111 = vxor.u32 %v1109, 2147483648
    %v1112 = vmul.f32 %v1110, 1.442695
    %v1113 = vpow.pop %v1112
    %v1114 = vmul.f32 %v1111, 1.442695
    %v1115 = vpow.pop %v1114
    %v1116 = vadd.f32 %v1113, 1.0
    %v1117 = vadd.f32 %v1115, 1.0
    %v1118 = vrcp.pop %v1116
    %v1119 = vmul.f32 1.0, %v1118
    %v1120 = vrcp.pop %v1117
    %v1121 = vmul.f32 1.0, %v1120
    %v1122 = vtanh.pop %v1109
    %v1123 = vmul.f32 %v1119, 0.0
    %1125 = vrot.lane.b32.xlu0 %v1122, 64
    %v1126 = vpop.permute.xlu0 %1125
    %v1128 = vmul.f32 %v1119, %v1126
    %1130 = vrot.lane.b32.xlu0 %v1128, 64
    %v1131 = vpop.permute.xlu0 %1130
    %v1133 = vadd.f32 %v1123, %v1131
    %v1134 = vtanh.pop %v1133
    %1136 = vrot.lane.b32.xlu0 %v1134, 64
    %v1137 = vpop.permute.xlu0 %1136
    %v1139 = vmul.f32 %v1121, %v1137
    %v1142 = vunpack.c.l.s4 1966171168
    %v1143 = vunpack.c.0.s8 %v1142
    %v1144 = vlaneseq
    %v1145 = vshrl.u32 %v1144, 7
    %v1146 = vsub.s32 %v1143, %v1145
    %v1147 = vrot.slane %v1139, %v1146
    %v1148 = vcombine.high %v1147, %v1147
    %v1150 = vunpack.c.l.s4 1966171168
    %v1151 = vunpack.c.0.s8 %v1150
    %v1152 = vlaneseq
    %v1153 = vshrl.u32 %v1152, 7
    %v1154 = vsub.s32 %v1151, %v1153
    %v1155 = vrot.slane %v1147, %v1154
    %v1157 = vunpack.c.l.s4 1966171168
    %v1158 = vunpack.c.0.s8 %v1157
    %v1159 = vlaneseq
    %v1160 = vshrl.u32 %v1159, 7
    %v1161 = vsub.s32 %v1158, %v1160
    %v1162 = vrot.slane %v1148, %v1161
    %vm1165 = vcmask 253952
    %1166 = vst.msk [vmem:[#allocation2] sm:$0x1] %vm1165, %v1155
    %1167 = vst.msk [vmem:[#allocation2 + $0x8] sm:$0x1] %vm1165, %v1162
    %vm1168 = vcmask 516352
    %1169 = vst.msk [vmem:[#allocation2 + $0x7] sm:$0x1] %vm1168, %v1155
    %1170 = vst.msk [vmem:[#allocation2 + $0xf] sm:$0x1] %vm1168, %v1162
    %v1171 = vrot.slane %v953, 1
    %v1172 = vsel %vm1017, %v959, %v1171
    %v1173 = vrot.slane %v955, 1
    %v1174 = vsel %vm1017, %v961, %v1173
    %v1177 = vrot.slane %v953, 6
    %v1178 = vrot.slane %v959, 5
    %v1179 = vsel %vm1017, %v1178, %v1177
    %v1180 = vrot.slane %v955, 6
    %v1181 = vrot.slane %v961, 5
    %v1182 = vsel %vm1017, %v1181, %v1180
    %v1185 = vsel %vm1010, %v1172, %v1179
    %v1186 = vsel %vm1011, %v1174, %v1182
    %v1187 = vsel %vm1033, %v1139, 0
    %1189 = vmatprep.subr.mxu0 %v964
    %1190 = vmatpush1.msra.mxu0 %v963
    %1191 = vmatprep.subr.mxu0 %v966
    %1192 = vmatpush1.msra.mxu0 %v965
    %1193 = vmatprep.subr.mxu0 %v968
    %1194 = vmatpush1.msra.mxu0 %v967
    %1195 = vmatprep.subr.mxu0 %v970
    %1196 = vmatpush1.msra.mxu0 %v969
    %1197 = vmatprep.subr.mxu0 %v972
    %1198 = vmatpush1.msra.mxu0 %v971
    %1199 = vmatprep.subr.mxu0 %v974
    %1200 = vmatpush1.msra.mxu0 %v973
    %1201 = vmatprep.subr.mxu0 %v976
    %1202 = vmatpush1.msra.mxu0 %v975
    %1203 = vmatprep.subr.mxu0 %v978
    %1204 = vmatpush1.msra.mxu0 %v977
    %1205 = vmatprep.subr.mxu0 0.0
    %1206 = vmatpush1.msra.mxu0 0.0
    %1207 = vmatprep.subr.mxu0 0.0
    %1208 = vmatpush1.msra.mxu0 0.0
    %1209 = vmatprep.subr.mxu0 0.0
    %1210 = vmatpush1.msra.mxu0 0.0
    %1211 = vmatprep.subr.mxu0 0.0
    %1212 = vmatpush1.msra.mxu0 0.0
    %1213 = vmatprep.subr.mxu0 0.0
    %1214 = vmatpush1.msra.mxu0 0.0
    %1215 = vmatprep.subr.mxu0 0.0
    %1216 = vmatpush1.msra.mxu0 0.0
    %1217 = vmatprep.subr.mxu0 0.0
    %1218 = vmatpush1.msra.mxu0 0.0
    %1219 = vmatprep.subr.mxu0 0.0
    %1220 = vmatpush1.msra.mxu0 0.0
    %1221 = vmatprep.subr.mxu0 0.0
    %1222 = vmatpush1.msra.mxu0 0.0
    %1223 = vmatprep.subr.mxu0 0.0
    %1224 = vmatpush1.msra.mxu0 0.0
    %1225 = vmatprep.subr.mxu0 0.0
    %1226 = vmatpush1.msra.mxu0 0.0
    %1227 = vmatprep.subr.mxu0 0.0
    %1228 = vmatpush1.msra.mxu0 0.0
    %1229 = vmatprep.subr.mxu0 0.0
    %1230 = vmatpush1.msra.mxu0 0.0
    %1231 = vmatprep.subr.mxu0 0.0
    %1232 = vmatpush1.msra.mxu0 0.0
    %1233 = vmatprep.subr.mxu0 0.0
    %1234 = vmatpush1.msra.mxu0 0.0
    %1235 = vmatprep.subr.mxu0 0.0
    %1236 = vmatpush1.msra.mxu0 0.0
    %1237 = vmatprep.subr.mxu0 0.0
    %1238 = vmatpush1.msra.mxu0 0.0
    %1239 = vmatprep.subr.mxu0 0.0
    %1240 = vmatpush1.msra.mxu0 0.0
    %1241 = vmatprep.subr.mxu0 0.0
    %1242 = vmatpush1.msra.mxu0 0.0
    %1243 = vmatprep.subr.mxu0 0.0
    %1244 = vmatpush1.msra.mxu0 0.0
    %1245 = vmatprep.subr.mxu0 0.0
    %1246 = vmatpush1.msra.mxu0 0.0
    %1247 = vmatprep.subr.mxu0 0.0
    %1248 = vmatpush1.msra.mxu0 0.0
    %1249 = vmatprep.subr.mxu0 0.0
    %1250 = vmatpush1.msra.mxu0 0.0
    %1251 = vmatprep.subr.mxu0 0.0
    %1252 = vmatpush1.msra.mxu0 0.0
    %1253 = vmatprep.mubr.f32.mxu0 0.0
    %1254 = vmatmul.mubr.f32.gmra.mrb[0].mxu0 %v1187
    %v1255 = vpop.f32.mrb[0].mxu0
    %v1256 = vadd.f32 0.0, %v1255
    %v1257 = vpop.f32.mrb[0].mxu0
    %v1258 = vadd.f32 0.0, %v1257
    %1259 = vdwg.mxu0
    %v1260 = vadd.f32 %v1185, %v1256
    %v1261 = vadd.f32 %v1186, %v1258
    %v1262 = vxor.u32 %v1260, 2147483648
    %v1263 = vxor.u32 %v1261, 2147483648
    %v1264 = vmul.f32 %v1262, 1.442695
    %v1265 = vpow.pop %v1264
    %v1266 = vmul.f32 %v1263, 1.442695
    %v1267 = vpow.pop %v1266
    %v1268 = vadd.f32 %v1265, 1.0
    %v1269 = vadd.f32 %v1267, 1.0
    %v1270 = vrcp.pop %v1268
    %v1271 = vmul.f32 1.0, %v1270
    %v1272 = vrcp.pop %v1269
    %v1273 = vmul.f32 1.0, %v1272
    %v1274 = vtanh.pop %v1261
    %v1275 = vmul.f32 %v1271, %v1133
    %1277 = vrot.lane.b32.xlu0 %v1274, 64
    %v1278 = vpop.permute.xlu0 %1277
    %v1280 = vmul.f32 %v1271, %v1278
    %1282 = vrot.lane.b32.xlu0 %v1280, 64
    %v1283 = vpop.permute.xlu0 %1282
    %v1285 = vadd.f32 %v1275, %v1283
    %v1286 = vtanh.pop %v1285
    %1288 = vrot.lane.b32.xlu0 %v1286, 64
    %v1289 = vpop.permute.xlu0 %1288
    %v1291 = vmul.f32 %v1273, %v1289
    %v1294 = vunpack.c.l.s4 1966171168
    %v1295 = vunpack.c.0.s8 %v1294
    %v1296 = vlaneseq
    %v1297 = vshrl.u32 %v1296, 7
    %v1298 = vsub.s32 %v1295, %v1297
    %v1299 = vrot.slane %v1291, %v1298
    %v1300 = vcombine.high %v1299, %v1299
    %v1302 = vunpack.c.l.s4 1966171168
    %v1303 = vunpack.c.0.s8 %v1302
    %v1304 = vlaneseq
    %v1305 = vshrl.u32 %v1304, 7
    %v1306 = vsub.s32 %v1303, %v1305
    %v1307 = vrot.slane %v1299, %v1306
    %v1309 = vunpack.c.l.s4 1966171168
    %v1310 = vunpack.c.0.s8 %v1309
    %v1311 = vlaneseq
    %v1312 = vshrl.u32 %v1311, 7
    %v1313 = vsub.s32 %v1310, %v1312
    %v1314 = vrot.slane %v1300, %v1313
    %1317 = vst.msk [vmem:[#allocation2 + $0x1] sm:$0x1] %vm1165, %v1307
    %1318 = vst.msk [vmem:[#allocation2 + $0x9] sm:$0x1] %vm1165, %v1314
    %1319 = vst.msk [vmem:[#allocation2 + $0x6] sm:$0x1] %vm1168, %v1307
    %1320 = vst.msk [vmem:[#allocation2 + $0xe] sm:$0x1] %vm1168, %v1314
    %v1321 = vrot.slane %v953, 2
    %v1322 = vrot.slane %v959, 1
    %v1323 = vsel %vm1017, %v1322, %v1321
    %v1324 = vrot.slane %v955, 2
    %v1325 = vrot.slane %v961, 1
    %v1326 = vsel %vm1017, %v1325, %v1324
    %v1329 = vrot.slane %v953, 5
    %v1330 = vrot.slane %v959, 4
    %v1331 = vsel %vm1017, %v1330, %v1329
    %v1332 = vrot.slane %v955, 5
    %v1333 = vrot.slane %v961, 4
    %v1334 = vsel %vm1017, %v1333, %v1332
    %v1337 = vsel %vm1010, %v1323, %v1331
    %v1338 = vsel %vm1011, %v1326, %v1334
    %v1339 = vsel %vm1033, %v1291, 0
    %1341 = vmatprep.subr.mxu0 %v964
    %1342 = vmatpush1.msra.mxu0 %v963
    %1343 = vmatprep.subr.mxu0 %v966
    %1344 = vmatpush1.msra.mxu0 %v965
    %1345 = vmatprep.subr.mxu0 %v968
    %1346 = vmatpush1.msra.mxu0 %v967
    %1347 = vmatprep.subr.mxu0 %v970
    %1348 = vmatpush1.msra.mxu0 %v969
    %1349 = vmatprep.subr.mxu0 %v972
    %1350 = vmatpush1.msra.mxu0 %v971
    %1351 = vmatprep.subr.mxu0 %v974
    %1352 = vmatpush1.msra.mxu0 %v973
    %1353 = vmatprep.subr.mxu0 %v976
    %1354 = vmatpush1.msra.mxu0 %v975
    %1355 = vmatprep.subr.mxu0 %v978
    %1356 = vmatpush1.msra.mxu0 %v977
    %1357 = vmatprep.subr.mxu0 0.0
    %1358 = vmatpush1.msra.mxu0 0.0
    %1359 = vmatprep.subr.mxu0 0.0
    %1360 = vmatpush1.msra.mxu0 0.0
    %1361 = vmatprep.subr.mxu0 0.0
    %1362 = vmatpush1.msra.mxu0 0.0
    %1363 = vmatprep.subr.mxu0 0.0
    %1364 = vmatpush1.msra.mxu0 0.0
    %1365 = vmatprep.subr.mxu0 0.0
    %1366 = vmatpush1.msra.mxu0 0.0
    %1367 = vmatprep.subr.mxu0 0.0
    %1368 = vmatpush1.msra.mxu0 0.0
    %1369 = vmatprep.subr.mxu0 0.0
    %1370 = vmatpush1.msra.mxu0 0.0
    %1371 = vmatprep.subr.mxu0 0.0
    %1372 = vmatpush1.msra.mxu0 0.0
    %1373 = vmatprep.subr.mxu0 0.0
    %1374 = vmatpush1.msra.mxu0 0.0
    %1375 = vmatprep.subr.mxu0 0.0
    %1376 = vmatpush1.msra.mxu0 0.0
    %1377 = vmatprep.subr.mxu0 0.0
    %1378 = vmatpush1.msra.mxu0 0.0
    %1379 = vmatprep.subr.mxu0 0.0
    %1380 = vmatpush1.msra.mxu0 0.0
    %1381 = vmatprep.subr.mxu0 0.0
    %1382 = vmatpush1.msra.mxu0 0.0
    %1383 = vmatprep.subr.mxu0 0.0
    %1384 = vmatpush1.msra.mxu0 0.0
    %1385 = vmatprep.subr.mxu0 0.0
    %1386 = vmatpush1.msra.mxu0 0.0
    %1387 = vmatprep.subr.mxu0 0.0
    %1388 = vmatpush1.msra.mxu0 0.0
    %1389 = vmatprep.subr.mxu0 0.0
    %1390 = vmatpush1.msra.mxu0 0.0
    %1391 = vmatprep.subr.mxu0 0.0
    %1392 = vmatpush1.msra.mxu0 0.0
    %1393 = vmatprep.subr.mxu0 0.0
    %1394 = vmatpush1.msra.mxu0 0.0
    %1395 = vmatprep.subr.mxu0 0.0
    %1396 = vmatpush1.msra.mxu0 0.0
    %1397 = vmatprep.subr.mxu0 0.0
    %1398 = vmatpush1.msra.mxu0 0.0
    %1399 = vmatprep.subr.mxu0 0.0
    %1400 = vmatpush1.msra.mxu0 0.0
    %1401 = vmatprep.subr.mxu0 0.0
    %1402 = vmatpush1.msra.mxu0 0.0
    %1403 = vmatprep.subr.mxu0 0.0
    %1404 = vmatpush1.msra.mxu0 0.0
    %1405 = vmatprep.mubr.f32.mxu0 0.0
    %1406 = vmatmul.mubr.f32.gmra.mrb[0].mxu0 %v1339
    %v1407 = vpop.f32.mrb[0].mxu0
    %v1408 = vadd.f32 0.0, %v1407
    %v1409 = vpop.f32.mrb[0].mxu0
    %v1410 = vadd.f32 0.0, %v1409
    %1411 = vdwg.mxu0
    %v1412 = vadd.f32 %v1337, %v1408
    %v1413 = vadd.f32 %v1338, %v1410
    %v1414 = vxor.u32 %v1412, 2147483648
    %v1415 = vxor.u32 %v1413, 2147483648
    %v1416 = vmul.f32 %v1414, 1.442695
    %v1417 = vpow.pop %v1416
    %v1418 = vmul.f32 %v1415, 1.442695
    %v1419 = vpow.pop %v1418
    %v1420 = vadd.f32 %v1417, 1.0
    %v1421 = vadd.f32 %v1419, 1.0
    %v1422 = vrcp.pop %v1420
    %v1423 = vmul.f32 1.0, %v1422
    %v1424 = vrcp.pop %v1421
    %v1425 = vmul.f32 1.0, %v1424
    %v1426 = vtanh.pop %v1413
    %v1427 = vmul.f32 %v1423, %v1285
    %1429 = vrot.lane.b32.xlu0 %v1426, 64
    %v1430 = vpop.permute.xlu0 %1429
    %v1432 = vmul.f32 %v1423, %v1430
    %1434 = vrot.lane.b32.xlu0 %v1432, 64
    %v1435 = vpop.permute.xlu0 %1434
    %v1437 = vadd.f32 %v1427, %v1435
    %v1438 = vtanh.pop %v1437
    %1440 = vrot.lane.b32.xlu0 %v1438, 64
    %v1441 = vpop.permute.xlu0 %1440
    %v1443 = vmul.f32 %v1425, %v1441
    %v1446 = vunpack.c.l.s4 1966171168
    %v1447 = vunpack.c.0.s8 %v1446
    %v1448 = vlaneseq
    %v1449 = vshrl.u32 %v1448, 7
    %v1450 = vsub.s32 %v1447, %v1449
    %v1451 = vrot.slane %v1443, %v1450
    %v1452 = vcombine.high %v1451, %v1451
    %v1454 = vunpack.c.l.s4 1966171168
    %v1455 = vunpack.c.0.s8 %v1454
    %v1456 = vlaneseq
    %v1457 = vshrl.u32 %v1456, 7
    %v1458 = vsub.s32 %v1455, %v1457
    %v1459 = vrot.slane %v1451, %v1458
    %v1461 = vunpack.c.l.s4 1966171168
    %v1462 = vunpack.c.0.s8 %v1461
    %v1463 = vlaneseq
    %v1464 = vshrl.u32 %v1463, 7
    %v1465 = vsub.s32 %v1462, %v1464
    %v1466 = vrot.slane %v1452, %v1465
    %1469 = vst.msk [vmem:[#allocation2 + $0x2] sm:$0x1] %vm1165, %v1459
    %1470 = vst.msk [vmem:[#allocation2 + $0xa] sm:$0x1] %vm1165, %v1466
    %1471 = vst.msk [vmem:[#allocation2 + $0x5] sm:$0x1] %vm1168, %v1459
    %1472 = vst.msk [vmem:[#allocation2 + $0xd] sm:$0x1] %vm1168, %v1466
    %v1473 = vrot.slane %v953, 3
    %v1474 = vrot.slane %v959, 2
    %v1475 = vsel %vm1017, %v1474, %v1473
    %v1476 = vrot.slane %v955, 3
    %v1477 = vrot.slane %v961, 2
    %v1478 = vsel %vm1017, %v1477, %v1476
    %v1481 = vrot.slane %v953, 4
    %v1482 = vrot.slane %v959, 3
    %v1483 = vsel %vm1017, %v1482, %v1481
    %v1484 = vrot.slane %v955, 4
    %v1485 = vrot.slane %v961, 3
    %v1486 = vsel %vm1017, %v1485, %v1484
    %v1489 = vsel %vm1010, %v1475, %v1483
    %v1490 = vsel %vm1011, %v1478, %v1486
    %v1491 = vsel %vm1033, %v1443, 0
    %1493 = vmatprep.subr.mxu0 %v964
    %1494 = vmatpush1.msra.mxu0 %v963
    %1495 = vmatprep.subr.mxu0 %v966
    %1496 = vmatpush1.msra.mxu0 %v965
    %1497 = vmatprep.subr.mxu0 %v968
    %1498 = vmatpush1.msra.mxu0 %v967
    %1499 = vmatprep.subr.mxu0 %v970
    %1500 = vmatpush1.msra.mxu0 %v969
    %1501 = vmatprep.subr.mxu0 %v972
    %1502 = vmatpush1.msra.mxu0 %v971
    %1503 = vmatprep.subr.mxu0 %v974
    %1504 = vmatpush1.msra.mxu0 %v973
    %1505 = vmatprep.subr.mxu0 %v976
    %1506 = vmatpush1.msra.mxu0 %v975
    %1507 = vmatprep.subr.mxu0 %v978
    %1508 = vmatpush1.msra.mxu0 %v977
    %1509 = vmatprep.subr.mxu0 0.0
    %1510 = vmatpush1.msra.mxu0 0.0
    %1511 = vmatprep.subr.mxu0 0.0
    %1512 = vmatpush1.msra.mxu0 0.0
    %1513 = vmatprep.subr.mxu0 0.0
    %1514 = vmatpush1.msra.mxu0 0.0
    %1515 = vmatprep.subr.mxu0 0.0
    %1516 = vmatpush1.msra.mxu0 0.0
    %1517 = vmatprep.subr.mxu0 0.0
    %1518 = vmatpush1.msra.mxu0 0.0
    %1519 = vmatprep.subr.mxu0 0.0
    %1520 = vmatpush1.msra.mxu0 0.0
    %1521 = vmatprep.subr.mxu0 0.0
    %1522 = vmatpush1.msra.mxu0 0.0
    %1523 = vmatprep.subr.mxu0 0.0
    %1524 = vmatpush1.msra.mxu0 0.0
    %1525 = vmatprep.subr.mxu0 0.0
    %1526 = vmatpush1.msra.mxu0 0.0
    %1527 = vmatprep.subr.mxu0 0.0
    %1528 = vmatpush1.msra.mxu0 0.0
    %1529 = vmatprep.subr.mxu0 0.0
    %1530 = vmatpush1.msra.mxu0 0.0
    %1531 = vmatprep.subr.mxu0 0.0
    %1532 = vmatpush1.msra.mxu0 0.0
    %1533 = vmatprep.subr.mxu0 0.0
    %1534 = vmatpush1.msra.mxu0 0.0
    %1535 = vmatprep.subr.mxu0 0.0
    %1536 = vmatpush1.msra.mxu0 0.0
    %1537 = vmatprep.subr.mxu0 0.0
    %1538 = vmatpush1.msra.mxu0 0.0
    %1539 = vmatprep.subr.mxu0 0.0
    %1540 = vmatpush1.msra.mxu0 0.0
    %1541 = vmatprep.subr.mxu0 0.0
    %1542 = vmatpush1.msra.mxu0 0.0
    %1543 = vmatprep.subr.mxu0 0.0
    %1544 = vmatpush1.msra.mxu0 0.0
    %1545 = vmatprep.subr.mxu0 0.0
    %1546 = vmatpush1.msra.mxu0 0.0
    %1547 = vmatprep.subr.mxu0 0.0
    %1548 = vmatpush1.msra.mxu0 0.0
    %1549 = vmatprep.subr.mxu0 0.0
    %1550 = vmatpush1.msra.mxu0 0.0
    %1551 = vmatprep.subr.mxu0 0.0
    %1552 = vmatpush1.msra.mxu0 0.0
    %1553 = vmatprep.subr.mxu0 0.0
    %1554 = vmatpush1.msra.mxu0 0.0
    %1555 = vmatprep.subr.mxu0 0.0
    %1556 = vmatpush1.msra.mxu0 0.0
    %1557 = vmatprep.mubr.f32.mxu0 0.0
    %1558 = vmatmul.mubr.f32.gmra.mrb[0].mxu0 %v1491
    %v1559 = vpop.f32.mrb[0].mxu0
    %v1560 = vadd.f32 0.0, %v1559
    %v1561 = vpop.f32.mrb[0].mxu0
    %v1562 = vadd.f32 0.0, %v1561
    %1563 = vdwg.mxu0
    %v1564 = vadd.f32 %v1489, %v1560
    %v1565 = vadd.f32 %v1490, %v1562
    %v1566 = vxor.u32 %v1564, 2147483648
    %v1567 = vxor.u32 %v1565, 2147483648
    %v1568 = vmul.f32 %v1566, 1.442695
    %v1569 = vpow.pop %v1568
    %v1570 = vmul.f32 %v1567, 1.442695
    %v1571 = vpow.pop %v1570
    %v1572 = vadd.f32 %v1569, 1.0
    %v1573 = vadd.f32 %v1571, 1.0
    %v1574 = vrcp.pop %v1572
    %v1575 = vmul.f32 1.0, %v1574
    %v1576 = vrcp.pop %v1573
    %v1577 = vmul.f32 1.0, %v1576
    %v1578 = vtanh.pop %v1565
    %v1579 = vmul.f32 %v1575, %v1437
    %1581 = vrot.lane.b32.xlu0 %v1578, 64
    %v1582 = vpop.permute.xlu0 %1581
    %v1584 = vmul.f32 %v1575, %v1582
    %1586 = vrot.lane.b32.xlu0 %v1584, 64
    %v1587 = vpop.permute.xlu0 %1586
    %v1589 = vadd.f32 %v1579, %v1587
    %v1590 = vtanh.pop %v1589
    %1592 = vrot.lane.b32.xlu0 %v1590, 64
    %v1593 = vpop.permute.xlu0 %1592
    %v1595 = vmul.f32 %v1577, %v1593
    %v1598 = vunpack.c.l.s4 1966171168
    %v1599 = vunpack.c.0.s8 %v1598
    %v1600 = vlaneseq
    %v1601 = vshrl.u32 %v1600, 7
    %v1602 = vsub.s32 %v1599, %v1601
    %v1603 = vrot.slane %v1595, %v1602
    %v1604 = vcombine.high %v1603, %v1603
    %v1606 = vunpack.c.l.s4 1966171168
    %v1607 = vunpack.c.0.s8 %v1606
    %v1608 = vlaneseq
    %v1609 = vshrl.u32 %v1608, 7
    %v1610 = vsub.s32 %v1607, %v1609
    %v1611 = vrot.slane %v1603, %v1610
    %v1613 = vunpack.c.l.s4 1966171168
    %v1614 = vunpack.c.0.s8 %v1613
    %v1615 = vlaneseq
    %v1616 = vshrl.u32 %v1615, 7
    %v1617 = vsub.s32 %v1614, %v1616
    %v1618 = vrot.slane %v1604, %v1617
    %1621 = vst.msk [vmem:[#allocation2 + $0x3] sm:$0x1] %vm1165, %v1611
    %1622 = vst.msk [vmem:[#allocation2 + $0xb] sm:$0x1] %vm1165, %v1618
    %1623 = vst.msk [vmem:[#allocation2 + $0x4] sm:$0x1] %vm1168, %v1611
    %1624 = vst.msk [vmem:[#allocation2 + $0xc] sm:$0x1] %vm1168, %v1618
    %v1625 = vsel %vm1010, %v1483, %v1475
    %v1626 = vsel %vm1011, %v1486, %v1478
    %v1627 = vsel %vm1033, %v1595, 0
    %1629 = vmatprep.subr.mxu0 %v964
    %1630 = vmatpush1.msra.mxu0 %v963
    %1631 = vmatprep.subr.mxu0 %v966
    %1632 = vmatpush1.msra.mxu0 %v965
    %1633 = vmatprep.subr.mxu0 %v968
    %1634 = vmatpush1.msra.mxu0 %v967
    %1635 = vmatprep.subr.mxu0 %v970
    %1636 = vmatpush1.msra.mxu0 %v969
    %1637 = vmatprep.subr.mxu0 %v972
    %1638 = vmatpush1.msra.mxu0 %v971
    %1639 = vmatprep.subr.mxu0 %v974
    %1640 = vmatpush1.msra.mxu0 %v973
    %1641 = vmatprep.subr.mxu0 %v976
    %1642 = vmatpush1.msra.mxu0 %v975
    %1643 = vmatprep.subr.mxu0 %v978
    %1644 = vmatpush1.msra.mxu0 %v977
    %1645 = vmatprep.subr.mxu0 0.0
    %1646 = vmatpush1.msra.mxu0 0.0
    %1647 = vmatprep.subr.mxu0 0.0
    %1648 = vmatpush1.msra.mxu0 0.0
    %1649 = vmatprep.subr.mxu0 0.0
    %1650 = vmatpush1.msra.mxu0 0.0
    %1651 = vmatprep.subr.mxu0 0.0
    %1652 = vmatpush1.msra.mxu0 0.0
    %1653 = vmatprep.subr.mxu0 0.0
    %1654 = vmatpush1.msra.mxu0 0.0
    %1655 = vmatprep.subr.mxu0 0.0
    %1656 = vmatpush1.msra.mxu0 0.0
    %1657 = vmatprep.subr.mxu0 0.0
    %1658 = vmatpush1.msra.mxu0 0.0
    %1659 = vmatprep.subr.mxu0 0.0
    %1660 = vmatpush1.msra.mxu0 0.0
    %1661 = vmatprep.subr.mxu0 0.0
    %1662 = vmatpush1.msra.mxu0 0.0
    %1663 = vmatprep.subr.mxu0 0.0
    %1664 = vmatpush1.msra.mxu0 0.0
    %1665 = vmatprep.subr.mxu0 0.0
    %1666 = vmatpush1.msra.mxu0 0.0
    %1667 = vmatprep.subr.mxu0 0.0
    %1668 = vmatpush1.msra.mxu0 0.0
    %1669 = vmatprep.subr.mxu0 0.0
    %1670 = vmatpush1.msra.mxu0 0.0
    %1671 = vmatprep.subr.mxu0 0.0
    %1672 = vmatpush1.msra.mxu0 0.0
    %1673 = vmatprep.subr.mxu0 0.0
    %1674 = vmatpush1.msra.mxu0 0.0
    %1675 = vmatprep.subr.mxu0 0.0
    %1676 = vmatpush1.msra.mxu0 0.0
    %1677 = vmatprep.subr.mxu0 0.0
    %1678 = vmatpush1.msra.mxu0 0.0
    %1679 = vmatprep.subr.mxu0 0.0
    %1680 = vmatpush1.msra.mxu0 0.0
    %1681 = vmatprep.subr.mxu0 0.0
    %1682 = vmatpush1.msra.mxu0 0.0
    %1683 = vmatprep.subr.mxu0 0.0
    %1684 = vmatpush1.msra.mxu0 0.0
    %1685 = vmatprep.subr.mxu0 0.0
    %1686 = vmatpush1.msra.mxu0 0.0
    %1687 = vmatprep.subr.mxu0 0.0
    %1688 = vmatpush1.msra.mxu0 0.0
    %1689 = vmatprep.subr.mxu0 0.0
    %1690 = vmatpush1.msra.mxu0 0.0
    %1691 = vmatprep.subr.mxu0 0.0
    %1692 = vmatpush1.msra.mxu0 0.0
    %1693 = vmatprep.mubr.f32.mxu0 0.0
    %1694 = vmatmul.mubr.f32.gmra.mrb[0].mxu0 %v1627
    %v1695 = vpop.f32.mrb[0].mxu0
    %v1696 = vadd.f32 0.0, %v1695
    %v1697 = vpop.f32.mrb[0].mxu0
    %v1698 = vadd.f32 0.0, %v1697
    %1699 = vdwg.mxu0
    %v1700 = vadd.f32 %v1625, %v1696
    %v1701 = vadd.f32 %v1626, %v1698
    %v1702 = vxor.u32 %v1700, 2147483648
    %v1703 = vxor.u32 %v1701, 2147483648
    %v1704 = vmul.f32 %v1702, 1.442695
    %v1705 = vpow.pop %v1704
    %v1706 = vmul.f32 %v1703, 1.442695
    %v1707 = vpow.pop %v1706
    %v1708 = vadd.f32 %v1705, 1.0
    %v1709 = vadd.f32 %v1707, 1.0
    %v1710 = vrcp.pop %v1708
    %v1711 = vmul.f32 1.0, %v1710
    %v1712 = vrcp.pop %v1709
    %v1713 = vmul.f32 1.0, %v1712
    %v1714 = vtanh.pop %v1701
    %v1715 = vmul.f32 %v1711, %v1589
    %1717 = vrot.lane.b32.xlu0 %v1714, 64
    %v1718 = vpop.permute.xlu0 %1717
    %v1720 = vmul.f32 %v1711, %v1718
    %1722 = vrot.lane.b32.xlu0 %v1720, 64
    %v1723 = vpop.permute.xlu0 %1722
    %v1725 = vadd.f32 %v1715, %v1723
    %v1726 = vtanh.pop %v1725
    %1728 = vrot.lane.b32.xlu0 %v1726, 64
    %v1729 = vpop.permute.xlu0 %1728
    %v1731 = vmul.f32 %v1713, %v1729
    %v1734 = vunpack.c.l.s4 1966171168
    %v1735 = vunpack.c.0.s8 %v1734
    %v1736 = vlaneseq
    %v1737 = vshrl.u32 %v1736, 7
    %v1738 = vsub.s32 %v1735, %v1737
    %v1739 = vrot.slane %v1731, %v1738
    %v1740 = vcombine.high %v1739, %v1739
    %v1742 = vunpack.c.l.s4 1966171168
    %v1743 = vunpack.c.0.s8 %v1742
    %v1744 = vlaneseq
    %v1745 = vshrl.u32 %v1744, 7
    %v1746 = vsub.s32 %v1743, %v1745
    %v1747 = vrot.slane %v1739, %v1746
    %v1749 = vunpack.c.l.s4 1966171168
    %v1750 = vunpack.c.0.s8 %v1749
    %v1751 = vlaneseq
    %v1752 = vshrl.u32 %v1751, 7
    %v1753 = vsub.s32 %v1750, %v1752
    %v1754 = vrot.slane %v1740, %v1753
    %1757 = vst.msk [vmem:[#allocation2 + $0x4] sm:$0x1] %vm1165, %v1747
    %1758 = vst.msk [vmem:[#allocation2 + $0xc] sm:$0x1] %vm1165, %v1754
    %1759 = vst.msk [vmem:[#allocation2 + $0x3] sm:$0x1] %vm1168, %v1747
    %1760 = vst.msk [vmem:[#allocation2 + $0xb] sm:$0x1] %vm1168, %v1754
    %v1761 = vsel %vm1010, %v1331, %v1323
    %v1762 = vsel %vm1011, %v1334, %v1326
    %v1763 = vsel %vm1033, %v1731, 0
    %1765 = vmatprep.subr.mxu0 %v964
    %1766 = vmatpush1.msra.mxu0 %v963
    %1767 = vmatprep.subr.mxu0 %v966
    %1768 = vmatpush1.msra.mxu0 %v965
    %1769 = vmatprep.subr.mxu0 %v968
    %1770 = vmatpush1.msra.mxu0 %v967
    %1771 = vmatprep.subr.mxu0 %v970
    %1772 = vmatpush1.msra.mxu0 %v969
    %1773 = vmatprep.subr.mxu0 %v972
    %1774 = vmatpush1.msra.mxu0 %v971
    %1775 = vmatprep.subr.mxu0 %v974
    %1776 = vmatpush1.msra.mxu0 %v973
    %1777 = vmatprep.subr.mxu0 %v976
    %1778 = vmatpush1.msra.mxu0 %v975
    %1779 = vmatprep.subr.mxu0 %v978
    %1780 = vmatpush1.msra.mxu0 %v977
    %1781 = vmatprep.subr.mxu0 0.0
    %1782 = vmatpush1.msra.mxu0 0.0
    %1783 = vmatprep.subr.mxu0 0.0
    %1784 = vmatpush1.msra.mxu0 0.0
    %1785 = vmatprep.subr.mxu0 0.0
    %1786 = vmatpush1.msra.mxu0 0.0
    %1787 = vmatprep.subr.mxu0 0.0
    %1788 = vmatpush1.msra.mxu0 0.0
    %1789 = vmatprep.subr.mxu0 0.0
    %1790 = vmatpush1.msra.mxu0 0.0
    %1791 = vmatprep.subr.mxu0 0.0
    %1792 = vmatpush1.msra.mxu0 0.0
    %1793 = vmatprep.subr.mxu0 0.0
    %1794 = vmatpush1.msra.mxu0 0.0
    %1795 = vmatprep.subr.mxu0 0.0
    %1796 = vmatpush1.msra.mxu0 0.0
    %1797 = vmatprep.subr.mxu0 0.0
    %1798 = vmatpush1.msra.mxu0 0.0
    %1799 = vmatprep.subr.mxu0 0.0
    %1800 = vmatpush1.msra.mxu0 0.0
    %1801 = vmatprep.subr.mxu0 0.0
    %1802 = vmatpush1.msra.mxu0 0.0
    %1803 = vmatprep.subr.mxu0 0.0
    %1804 = vmatpush1.msra.mxu0 0.0
    %1805 = vmatprep.subr.mxu0 0.0
    %1806 = vmatpush1.msra.mxu0 0.0
    %1807 = vmatprep.subr.mxu0 0.0
    %1808 = vmatpush1.msra.mxu0 0.0
    %1809 = vmatprep.subr.mxu0 0.0
    %1810 = vmatpush1.msra.mxu0 0.0
    %1811 = vmatprep.subr.mxu0 0.0
    %1812 = vmatpush1.msra.mxu0 0.0
    %1813 = vmatprep.subr.mxu0 0.0
    %1814 = vmatpush1.msra.mxu0 0.0
    %1815 = vmatprep.subr.mxu0 0.0
    %1816 = vmatpush1.msra.mxu0 0.0
    %1817 = vmatprep.subr.mxu0 0.0
    %1818 = vmatpush1.msra.mxu0 0.0
    %1819 = vmatprep.subr.mxu0 0.0
    %1820 = vmatpush1.msra.mxu0 0.0
    %1821 = vmatprep.subr.mxu0 0.0
    %1822 = vmatpush1.msra.mxu0 0.0
    %1823 = vmatprep.subr.mxu0 0.0
    %1824 = vmatpush1.msra.mxu0 0.0
    %1825 = vmatprep.subr.mxu0 0.0
    %1826 = vmatpush1.msra.mxu0 0.0
    %1827 = vmatprep.subr.mxu0 0.0
    %1828 = vmatpush1.msra.mxu0 0.0
    %1829 = vmatprep.mubr.f32.mxu0 0.0
    %1830 = vmatmul.mubr.f32.gmra.mrb[0].mxu0 %v1763
    %v1831 = vpop.f32.mrb[0].mxu0
    %v1832 = vadd.f32 0.0, %v1831
    %v1833 = vpop.f32.mrb[0].mxu0
    %v1834 = vadd.f32 0.0, %v1833
    %1835 = vdwg.mxu0
    %v1836 = vadd.f32 %v1761, %v1832
    %v1837 = vadd.f32 %v1762, %v1834
    %v1838 = vxor.u32 %v1836, 2147483648
    %v1839 = vxor.u32 %v1837, 2147483648
    %v1840 = vmul.f32 %v1838, 1.442695
    %v1841 = vpow.pop %v1840
    %v1842 = vmul.f32 %v1839, 1.442695
    %v1843 = vpow.pop %v1842
    %v1844 = vadd.f32 %v1841, 1.0
    %v1845 = vadd.f32 %v1843, 1.0
    %v1846 = vrcp.pop %v1844
    %v1847 = vmul.f32 1.0, %v1846
    %v1848 = vrcp.pop %v1845
    %v1849 = vmul.f32 1.0, %v1848
    %v1850 = vtanh.pop %v1837
    %v1851 = vmul.f32 %v1847, %v1725
    %1853 = vrot.lane.b32.xlu0 %v1850, 64
    %v1854 = vpop.permute.xlu0 %1853
    %v1856 = vmul.f32 %v1847, %v1854
    %1858 = vrot.lane.b32.xlu0 %v1856, 64
    %v1859 = vpop.permute.xlu0 %1858
    %v1861 = vadd.f32 %v1851, %v1859
    %v1862 = vtanh.pop %v1861
    %1864 = vrot.lane.b32.xlu0 %v1862, 64
    %v1865 = vpop.permute.xlu0 %1864
    %v1867 = vmul.f32 %v1849, %v1865
    %v1870 = vunpack.c.l.s4 1966171168
    %v1871 = vunpack.c.0.s8 %v1870
    %v1872 = vlaneseq
    %v1873 = vshrl.u32 %v1872, 7
    %v1874 = vsub.s32 %v1871, %v1873
    %v1875 = vrot.slane %v1867, %v1874
    %v1876 = vcombine.high %v1875, %v1875
    %v1878 = vunpack.c.l.s4 1966171168
    %v1879 = vunpack.c.0.s8 %v1878
    %v1880 = vlaneseq
    %v1881 = vshrl.u32 %v1880, 7
    %v1882 = vsub.s32 %v1879, %v1881
    %v1883 = vrot.slane %v1875, %v1882
    %v1885 = vunpack.c.l.s4 1966171168
    %v1886 = vunpack.c.0.s8 %v1885
    %v1887 = vlaneseq
    %v1888 = vshrl.u32 %v1887, 7
    %v1889 = vsub.s32 %v1886, %v1888
    %v1890 = vrot.slane %v1876, %v1889
    %1893 = vst.msk [vmem:[#allocation2 + $0x5] sm:$0x1] %vm1165, %v1883
    %1894 = vst.msk [vmem:[#allocation2 + $0xd] sm:$0x1] %vm1165, %v1890
    %1895 = vst.msk [vmem:[#allocation2 + $0x2] sm:$0x1] %vm1168, %v1883
    %1896 = vst.msk [vmem:[#allocation2 + $0xa] sm:$0x1] %vm1168, %v1890
    %v1897 = vsel %vm1010, %v1179, %v1172
    %v1898 = vsel %vm1011, %v1182, %v1174
    %v1899 = vsel %vm1033, %v1867, 0
    %1901 = vmatprep.subr.mxu0 %v964
    %1902 = vmatpush1.msra.mxu0 %v963
    %1903 = vmatprep.subr.mxu0 %v966
    %1904 = vmatpush1.msra.mxu0 %v965
    %1905 = vmatprep.subr.mxu0 %v968
    %1906 = vmatpush1.msra.mxu0 %v967
    %1907 = vmatprep.subr.mxu0 %v970
    %1908 = vmatpush1.msra.mxu0 %v969
    %1909 = vmatprep.subr.mxu0 %v972
    %1910 = vmatpush1.msra.mxu0 %v971
    %1911 = vmatprep.subr.mxu0 %v974
    %1912 = vmatpush1.msra.mxu0 %v973
    %1913 = vmatprep.subr.mxu0 %v976
    %1914 = vmatpush1.msra.mxu0 %v975
    %1915 = vmatprep.subr.mxu0 %v978
    %1916 = vmatpush1.msra.mxu0 %v977
    %1917 = vmatprep.subr.mxu0 0.0
    %1918 = vmatpush1.msra.mxu0 0.0
    %1919 = vmatprep.subr.mxu0 0.0
    %1920 = vmatpush1.msra.mxu0 0.0
    %1921 = vmatprep.subr.mxu0 0.0
    %1922 = vmatpush1.msra.mxu0 0.0
    %1923 = vmatprep.subr.mxu0 0.0
    %1924 = vmatpush1.msra.mxu0 0.0
    %1925 = vmatprep.subr.mxu0 0.0
    %1926 = vmatpush1.msra.mxu0 0.0
    %1927 = vmatprep.subr.mxu0 0.0
    %1928 = vmatpush1.msra.mxu0 0.0
    %1929 = vmatprep.subr.mxu0 0.0
    %1930 = vmatpush1.msra.mxu0 0.0
    %1931 = vmatprep.subr.mxu0 0.0
    %1932 = vmatpush1.msra.mxu0 0.0
    %1933 = vmatprep.subr.mxu0 0.0
    %1934 = vmatpush1.msra.mxu0 0.0
    %1935 = vmatprep.subr.mxu0 0.0
    %1936 = vmatpush1.msra.mxu0 0.0
    %1937 = vmatprep.subr.mxu0 0.0
    %1938 = vmatpush1.msra.mxu0 0.0
    %1939 = vmatprep.subr.mxu0 0.0
    %1940 = vmatpush1.msra.mxu0 0.0
    %1941 = vmatprep.subr.mxu0 0.0
    %1942 = vmatpush1.msra.mxu0 0.0
    %1943 = vmatprep.subr.mxu0 0.0
    %1944 = vmatpush1.msra.mxu0 0.0
    %1945 = vmatprep.subr.mxu0 0.0
    %1946 = vmatpush1.msra.mxu0 0.0
    %1947 = vmatprep.subr.mxu0 0.0
    %1948 = vmatpush1.msra.mxu0 0.0
    %1949 = vmatprep.subr.mxu0 0.0
    %1950 = vmatpush1.msra.mxu0 0.0
    %1951 = vmatprep.subr.mxu0 0.0
    %1952 = vmatpush1.msra.mxu0 0.0
    %1953 = vmatprep.subr.mxu0 0.0
    %1954 = vmatpush1.msra.mxu0 0.0
    %1955 = vmatprep.subr.mxu0 0.0
    %1956 = vmatpush1.msra.mxu0 0.0
    %1957 = vmatprep.subr.mxu0 0.0
    %1958 = vmatpush1.msra.mxu0 0.0
    %1959 = vmatprep.subr.mxu0 0.0
    %1960 = vmatpush1.msra.mxu0 0.0
    %1961 = vmatprep.subr.mxu0 0.0
    %1962 = vmatpush1.msra.mxu0 0.0
    %1963 = vmatprep.subr.mxu0 0.0
    %1964 = vmatpush1.msra.mxu0 0.0
    %1965 = vmatprep.mubr.f32.mxu0 0.0
    %1966 = vmatmul.mubr.f32.gmra.mrb[0].mxu0 %v1899
    %v1967 = vpop.f32.mrb[0].mxu0
    %v1968 = vadd.f32 0.0, %v1967
    %v1969 = vpop.f32.mrb[0].mxu0
    %v1970 = vadd.f32 0.0, %v1969
    %1971 = vdwg.mxu0
    %v1972 = vadd.f32 %v1897, %v1968
    %v1973 = vadd.f32 %v1898, %v1970
    %v1974 = vxor.u32 %v1972, 2147483648
    %v1975 = vxor.u32 %v1973, 2147483648
    %v1976 = vmul.f32 %v1974, 1.442695
    %v1977 = vpow.pop %v1976
    %v1978 = vmul.f32 %v1975, 1.442695
    %v1979 = vpow.pop %v1978
    %v1980 = vadd.f32 %v1977, 1.0
    %v1981 = vadd.f32 %v1979, 1.0
    %v1982 = vrcp.pop %v1980
    %v1983 = vmul.f32 1.0, %v1982
    %v1984 = vrcp.pop %v1981
    %v1985 = vmul.f32 1.0, %v1984
    %v1986 = vtanh.pop %v1973
    %v1987 = vmul.f32 %v1983, %v1861
    %1989 = vrot.lane.b32.xlu0 %v1986, 64
    %v1990 = vpop.permute.xlu0 %1989
    %v1992 = vmul.f32 %v1983, %v1990
    %1994 = vrot.lane.b32.xlu0 %v1992, 64
    %v1995 = vpop.permute.xlu0 %1994
    %v1997 = vadd.f32 %v1987, %v1995
    %v1998 = vtanh.pop %v1997
    %2000 = vrot.lane.b32.xlu0 %v1998, 64
    %v2001 = vpop.permute.xlu0 %2000
    %v2003 = vmul.f32 %v1985, %v2001
    %v2006 = vunpack.c.l.s4 1966171168
    %v2007 = vunpack.c.0.s8 %v2006
    %v2008 = vlaneseq
    %v2009 = vshrl.u32 %v2008, 7
    %v2010 = vsub.s32 %v2007, %v2009
    %v2011 = vrot.slane %v2003, %v2010
    %v2012 = vcombine.high %v2011, %v2011
    %v2014 = vunpack.c.l.s4 1966171168
    %v2015 = vunpack.c.0.s8 %v2014
    %v2016 = vlaneseq
    %v2017 = vshrl.u32 %v2016, 7
    %v2018 = vsub.s32 %v2015, %v2017
    %v2019 = vrot.slane %v2011, %v2018
    %v2021 = vunpack.c.l.s4 1966171168
    %v2022 = vunpack.c.0.s8 %v2021
    %v2023 = vlaneseq
    %v2024 = vshrl.u32 %v2023, 7
    %v2025 = vsub.s32 %v2022, %v2024
    %v2026 = vrot.slane %v2012, %v2025
    %2029 = vst.msk [vmem:[#allocation2 + $0x6] sm:$0x1] %vm1165, %v2019
    %2030 = vst.msk [vmem:[#allocation2 + $0xe] sm:$0x1] %vm1165, %v2026
    %2031 = vst.msk [vmem:[#allocation2 + $0x1] sm:$0x1] %vm1168, %v2019
    %2032 = vst.msk [vmem:[#allocation2 + $0x9] sm:$0x1] %vm1168, %v2026
    %v2033 = vsel %vm1010, %v1025, %v1018
    %v2034 = vsel %vm1011, %v1028, %v1020
    %v2035 = vsel %vm1033, %v2003, 0
    %2037 = vmatprep.subr.mxu0 %v964
    %2038 = vmatpush1.msra.mxu0 %v963
    %2039 = vmatprep.subr.mxu0 %v966
    %2040 = vmatpush1.msra.mxu0 %v965
    %2041 = vmatprep.subr.mxu0 %v968
    %2042 = vmatpush1.msra.mxu0 %v967
    %2043 = vmatprep.subr.mxu0 %v970
    %2044 = vmatpush1.msra.mxu0 %v969
    %2045 = vmatprep.subr.mxu0 %v972
    %2046 = vmatpush1.msra.mxu0 %v971
    %2047 = vmatprep.subr.mxu0 %v974
    %2048 = vmatpush1.msra.mxu0 %v973
    %2049 = vmatprep.subr.mxu0 %v976
    %2050 = vmatpush1.msra.mxu0 %v975
    %2051 = vmatprep.subr.mxu0 %v978
    %2052 = vmatpush1.msra.mxu0 %v977
    %2053 = vmatprep.subr.mxu0 0.0
    %2054 = vmatpush1.msra.mxu0 0.0
    %2055 = vmatprep.subr.mxu0 0.0
    %2056 = vmatpush1.msra.mxu0 0.0
    %2057 = vmatprep.subr.mxu0 0.0
    %2058 = vmatpush1.msra.mxu0 0.0
    %2059 = vmatprep.subr.mxu0 0.0
    %2060 = vmatpush1.msra.mxu0 0.0
    %2061 = vmatprep.subr.mxu0 0.0
    %2062 = vmatpush1.msra.mxu0 0.0
    %2063 = vmatprep.subr.mxu0 0.0
    %2064 = vmatpush1.msra.mxu0 0.0
    %2065 = vmatprep.subr.mxu0 0.0
    %2066 = vmatpush1.msra.mxu0 0.0
    %2067 = vmatprep.subr.mxu0 0.0
    %2068 = vmatpush1.msra.mxu0 0.0
    %2069 = vmatprep.subr.mxu0 0.0
    %2070 = vmatpush1.msra.mxu0 0.0
    %2071 = vmatprep.subr.mxu0 0.0
    %2072 = vmatpush1.msra.mxu0 0.0
    %2073 = vmatprep.subr.mxu0 0.0
    %2074 = vmatpush1.msra.mxu0 0.0
    %2075 = vmatprep.subr.mxu0 0.0
    %2076 = vmatpush1.msra.mxu0 0.0
    %2077 = vmatprep.subr.mxu0 0.0
    %2078 = vmatpush1.msra.mxu0 0.0
    %2079 = vmatprep.subr.mxu0 0.0
    %2080 = vmatpush1.msra.mxu0 0.0
    %2081 = vmatprep.subr.mxu0 0.0
    %2082 = vmatpush1.msra.mxu0 0.0
    %2083 = vmatprep.subr.mxu0 0.0
    %2084 = vmatpush1.msra.mxu0 0.0
    %2085 = vmatprep.subr.mxu0 0.0
    %2086 = vmatpush1.msra.mxu0 0.0
    %2087 = vmatprep.subr.mxu0 0.0
    %2088 = vmatpush1.msra.mxu0 0.0
    %2089 = vmatprep.subr.mxu0 0.0
    %2090 = vmatpush1.msra.mxu0 0.0
    %2091 = vmatprep.subr.mxu0 0.0
    %2092 = vmatpush1.msra.mxu0 0.0
    %2093 = vmatprep.subr.mxu0 0.0
    %2094 = vmatpush1.msra.mxu0 0.0
    %2095 = vmatprep.subr.mxu0 0.0
    %2096 = vmatpush1.msra.mxu0 0.0
    %2097 = vmatprep.subr.mxu0 0.0
    %2098 = vmatpush1.msra.mxu0 0.0
    %2099 = vmatprep.subr.mxu0 0.0
    %2100 = vmatpush1.msra.mxu0 0.0
    %2101 = vmatprep.mubr.f32.mxu0 0.0
    %2102 = vmatmul.mubr.f32.gmra.mrb[0].mxu0 %v2035
    %v2103 = vpop.f32.mrb[0].mxu0
    %v2104 = vadd.f32 0.0, %v2103
    %v2105 = vpop.f32.mrb[0].mxu0
    %v2106 = vadd.f32 0.0, %v2105
    %2107 = vdwg.mxu0
    %v2108 = vadd.f32 %v2033, %v2104
    %v2109 = vadd.f32 %v2034, %v2106
    %v2110 = vxor.u32 %v2108, 2147483648
    %v2111 = vxor.u32 %v2109, 2147483648
    %v2112 = vmul.f32 %v2110, 1.442695
    %v2113 = vpow.pop %v2112
    %v2114 = vmul.f32 %v2111, 1.442695
    %v2115 = vpow.pop %v2114
    %v2116 = vadd.f32 %v2113, 1.0
    %v2117 = vadd.f32 %v2115, 1.0
    %v2118 = vrcp.pop %v2116
    %v2119 = vmul.f32 1.0, %v2118
    %v2120 = vrcp.pop %v2117
    %v2121 = vmul.f32 1.0, %v2120
    %v2122 = vtanh.pop %v2109
    %v2123 = vmul.f32 %v2119, %v1997
    %2125 = vrot.lane.b32.xlu0 %v2122, 64
    %v2126 = vpop.permute.xlu0 %2125
    %v2128 = vmul.f32 %v2119, %v2126
    %2130 = vrot.lane.b32.xlu0 %v2128, 64
    %v2131 = vpop.permute.xlu0 %2130
    %v2133 = vadd.f32 %v2123, %v2131
    %v2134 = vtanh.pop %v2133
    %2136 = vrot.lane.b32.xlu0 %v2134, 64
    %v2137 = vpop.permute.xlu0 %2136
    %v2139 = vmul.f32 %v2121, %v2137
    %v2142 = vunpack.c.l.s4 1966171168
    %v2143 = vunpack.c.0.s8 %v2142
    %v2144 = vlaneseq
    %v2145 = vshrl.u32 %v2144, 7
    %v2146 = vsub.s32 %v2143, %v2145
    %v2147 = vrot.slane %v2139, %v2146
    %v2148 = vcombine.high %v2147, %v2147
    %v2150 = vunpack.c.l.s4 1966171168
    %v2151 = vunpack.c.0.s8 %v2150
    %v2152 = vlaneseq
    %v2153 = vshrl.u32 %v2152, 7
    %v2154 = vsub.s32 %v2151, %v2153
    %v2155 = vrot.slane %v2147, %v2154
    %v2157 = vunpack.c.l.s4 1966171168
    %v2158 = vunpack.c.0.s8 %v2157
    %v2159 = vlaneseq
    %v2160 = vshrl.u32 %v2159, 7
    %v2161 = vsub.s32 %v2158, %v2160
    %v2162 = vrot.slane %v2148, %v2161
    %2165 = vst.msk [vmem:[#allocation2 + $0x7] sm:$0x1] %vm1165, %v2155
    %2166 = vst.msk [vmem:[#allocation2 + $0xf] sm:$0x1] %vm1165, %v2162
    %2167 = vst.msk [vmem:[#allocation2] sm:$0x1] %vm1168, %v2155
    %2168 = vst.msk [vmem:[#allocation2 + $0x8] sm:$0x1] %vm1168, %v2162
    %v2169 = vld [vmem:[#allocation2] sm:$0xff]
    %v2170 = vld [vmem:[#allocation2 + $0x8] sm:$0xff]
    %v2171 = vmax.f32 %v2169, 0.0
    %v2172 = vmax.f32 %v2170, 0.0
    %v2173 = vld [vmem:[%s12] sm:$0xff]
    %v2174 = vld [vmem:[%s12 + $0x8] sm:$0xff]
    %v2175 = vld [vmem:[%s12 + $0x10] sm:$0xff]
    %v2176 = vld [vmem:[%s12 + $0x18] sm:$0xff]
    %v2177 = vld [vmem:[%s12 + $0x20] sm:$0xff]
    %v2178 = vld [vmem:[%s12 + $0x28] sm:$0xff]
    %v2179 = vld [vmem:[%s12 + $0x30] sm:$0xff]
    %v2180 = vld [vmem:[%s12 + $0x38] sm:$0xff]
    %v2181 = vld [vmem:[%s13] sm:$0x1]
    %v2183 = vlaneseq
    %v2184 = vshrl.u32 %v2183, 7
    %v2185 = vsub.s32 0, %v2184
    %v2186 = vrot.slane %v2181, %v2185
    %v2189 = vsel %vm1033, %v2171, 0
    %v2192 = vsel %vm1033, %v2172, 0
    %2194 = vmatprep.subr.mxu0 0.0
    %2195 = vmatpush1.msra.mxu0 %v2173
    %2196 = vmatprep.subr.mxu0 0.0
    %2197 = vmatpush1.msra.mxu0 %v2174
    %2198 = vmatprep.subr.mxu0 0.0
    %2199 = vmatpush1.msra.mxu0 %v2175
    %2200 = vmatprep.subr.mxu0 0.0
    %2201 = vmatpush1.msra.mxu0 %v2176
    %2202 = vmatprep.subr.mxu0 0.0
    %2203 = vmatpush1.msra.mxu0 %v2177
    %2204 = vmatprep.subr.mxu0 0.0
    %2205 = vmatpush1.msra.mxu0 %v2178
    %2206 = vmatprep.subr.mxu0 0.0
    %2207 = vmatpush1.msra.mxu0 %v2179
    %2208 = vmatprep.subr.mxu0 0.0
    %2209 = vmatpush1.msra.mxu0 %v2180
    %2210 = vmatprep.subr.mxu0 0.0
    %2211 = vmatpush1.msra.mxu0 0.0
    %2212 = vmatprep.subr.mxu0 0.0
    %2213 = vmatpush1.msra.mxu0 0.0
    %2214 = vmatprep.subr.mxu0 0.0
    %2215 = vmatpush1.msra.mxu0 0.0
    %2216 = vmatprep.subr.mxu0 0.0
    %2217 = vmatpush1.msra.mxu0 0.0
    %2218 = vmatprep.subr.mxu0 0.0
    %2219 = vmatpush1.msra.mxu0 0.0
    %2220 = vmatprep.subr.mxu0 0.0
    %2221 = vmatpush1.msra.mxu0 0.0
    %2222 = vmatprep.subr.mxu0 0.0
    %2223 = vmatpush1.msra.mxu0 0.0
    %2224 = vmatprep.subr.mxu0 0.0
    %2225 = vmatpush1.msra.mxu0 0.0
    %2226 = vmatprep.subr.mxu0 0.0
    %2227 = vmatpush1.msra.mxu0 0.0
    %2228 = vmatprep.subr.mxu0 0.0
    %2229 = vmatpush1.msra.mxu0 0.0
    %2230 = vmatprep.subr.mxu0 0.0
    %2231 = vmatpush1.msra.mxu0 0.0
    %2232 = vmatprep.subr.mxu0 0.0
    %2233 = vmatpush1.msra.mxu0 0.0
    %2234 = vmatprep.subr.mxu0 0.0
    %2235 = vmatpush1.msra.mxu0 0.0
    %2236 = vmatprep.subr.mxu0 0.0
    %2237 = vmatpush1.msra.mxu0 0.0
    %2238 = vmatprep.subr.mxu0 0.0
    %2239 = vmatpush1.msra.mxu0 0.0
    %2240 = vmatprep.subr.mxu0 0.0
    %2241 = vmatpush1.msra.mxu0 0.0
    %2242 = vmatprep.subr.mxu0 0.0
    %2243 = vmatpush1.msra.mxu0 0.0
    %2244 = vmatprep.subr.mxu0 0.0
    %2245 = vmatpush1.msra.mxu0 0.0
    %2246 = vmatprep.subr.mxu0 0.0
    %2247 = vmatpush1.msra.mxu0 0.0
    %2248 = vmatprep.subr.mxu0 0.0
    %2249 = vmatpush1.msra.mxu0 0.0
    %2250 = vmatprep.subr.mxu0 0.0
    %2251 = vmatpush1.msra.mxu0 0.0
    %2252 = vmatprep.subr.mxu0 0.0
    %2253 = vmatpush1.msra.mxu0 0.0
    %2254 = vmatprep.subr.mxu0 0.0
    %2255 = vmatpush1.msra.mxu0 0.0
    %2256 = vmatprep.subr.mxu0 0.0
    %2257 = vmatpush1.msra.mxu0 0.0
    %2258 = vmatprep.mubr.f32.mxu0 0.0
    %2259 = vmatmul.mubr.f32.gmra.mrb[0].mxu0 %v2189
    %v2260 = vpop.f32.mrb[0].mxu0
    %v2261 = vadd.f32 %v2186, %v2260
    %v2262 = vpop.f32.mrb[0].mxu0
    %2263 = vmatprep.mubr.f32.mxu0 0.0
    %2264 = vmatmul.mubr.f32.gmra.mrb[0].mxu0 %v2192
    %v2265 = vpop.f32.mrb[0].mxu0
    %v2266 = vadd.f32 %v2186, %v2265
    %v2267 = vpop.f32.mrb[0].mxu0
    %2268 = vdwg.mxu0
    %v2269 = vadd.f32 %v862, %v2261
    %v2270 = vadd.f32 %v863, %v2266
    %v2271 = vld [vmem:[%s14] sm:$0x1]
    %v2272 = vld [vmem:[%s15] sm:$0x1]
    %v2273 = vsel %vm131, %v2269, 0.0
    %2274 = vadd.xlane.f32.xlu0 %v2273
    %v2275 = vpop.xlane.xlu0 %2274
    %v2276 = vsel %vm131, %v2270, 0.0
    %2277 = vadd.xlane.f32.xlu0 %v2276
    %v2278 = vpop.xlane.xlu0 %2277
    %v2279 = vmul.f32 %v2275, %v827
    %v2280 = vmul.f32 %v2278, %v827
    %v2281 = vsub.f32 %v2269, %v2279
    %v2282 = vsub.f32 %v2270, %v2280
    %v2283 = vmul.f32 %v2281, %v2281
    %v2284 = vmul.f32 %v2282, %v2282
    %v2285 = vsel %vm131, %v2283, 0.0
    %2286 = vadd.xlane.f32.xlu0 %v2285
    %v2287 = vpop.xlane.xlu0 %2286
    %v2288 = vsel %vm131, %v2284, 0.0
    %2289 = vadd.xlane.f32.xlu0 %v2288
    %v2290 = vpop.xlane.xlu0 %2289
    %v2291 = vmul.f32 %v2287, %v827
    %v2292 = vmul.f32 %v2290, %v827
    %v2293 = vadd.f32 %v2291, 1e-05
    %v2294 = vadd.f32 %v2292, 1e-05
    %v2295 = vrsqrt.pop %v2293
    %v2296 = vrsqrt.pop %v2294
    %v2297 = vmul.f32 %v2281, %v2295
    %v2298 = vmul.f32 %v2282, %v2296
    %v2300 = vlaneseq
    %v2301 = vshrl.u32 %v2300, 7
    %v2302 = vsub.s32 0, %v2301
    %v2303 = vrot.slane %v2271, %v2302
    %v2305 = vmul.f32 %v2297, %v2303
    %v2306 = vmul.f32 %v2298, %v2303
    %v2308 = vlaneseq
    %v2309 = vshrl.u32 %v2308, 7
    %v2310 = vsub.s32 0, %v2309
    %v2311 = vrot.slane %v2272, %v2310
    %v2313 = vadd.f32 %v2305, %v2311
    %v2314 = vadd.f32 %v2306, %v2311
    %2315 = vst.msk [vmem:[#allocation12] sm:$0xff] %vm131, %v2313
    %2316 = vst.msk [vmem:[#allocation12 + $0x8] sm:$0xff] %vm131, %v2314
    // Predicated region
    $region86: #{tpu_custom_call.1} parent=1 // pred_check
      _
    $region87: #{tpu_custom_call.1} parent=1 // pred_check_branch
      %2318 = sbr.rel (0) target = $region89
    $region88: #{tpu_custom_call.1} parent=1 // pred_region
      %s2320 = ssub.s32 256, 256
      %2321 = vsyncadd [#allocation5], %s2320
      %s2322 = sshll.u32 [#allocation12], 4
      %s2323 = int_to_ptr.vmem [resolvable:$true] %s2322
      %2328 = dma.vmem_to_hbm [thread:$0]  %s2323, 256, %s16, [#allocation5], 128, 128, 8
    $region89: #{tpu_custom_call.1} parent=1 // pred_fallthru
      _
    // Predicated region
    $region90: #{tpu_custom_call.1} parent=1 // pred_check
      _
    $region91: #{tpu_custom_call.1} parent=1 // pred_check_branch
      %2330 = sbr.rel (0) target = $region93
    $region92: #{tpu_custom_call.1} parent=1 // pred_region
      %2331 = dma.done [#allocation5], 256
    $region93: #{tpu_custom_call.1} parent=1 // pred_fallthru
      _
    %2332 = vsyncpa [#allocation4], 1
    %2333 = vsyncpa [#allocation7], 1
    %2334 = vsyncpa [#allocation10], 1
    %2335 = vsyncpa [#allocation5], 1

</llo_original>
